<compile_context>
chip_gen: v5e
topology: v5e:2x2
jax: 0.10.0
libtpu: 0.0.40
codegen_flags: <defaults>
</compile_context>

<pallas_src>
import functools

import jax
import jax.numpy as jnp
from jax.experimental import pallas as pl
from jax.experimental.pallas import tpu as pltpu

MXU_DTYPE = jnp.bfloat16        # matmul operand dtype (accumulation stays f32)
VMEM_LIMIT = 48 * 1024 * 1024   # above default scoped limit on v5e/v6e/v7x, below v7x 64 MiB phys
_EPS = 1e-5
_INV_SQRT2 = 0.7071067811865476


# ------------------------------------------------------------------ in-kernel helpers
def _dot(a, b):
    return jnp.dot(a.astype(MXU_DTYPE), b.astype(MXU_DTYPE),
                   preferred_element_type=jnp.float32)


def _layernorm(x, g, b):
    mu = jnp.mean(x, axis=-1, keepdims=True)
    xc = x - mu
    var = jnp.mean(xc * xc, axis=-1, keepdims=True)
    return xc * jax.lax.rsqrt(var + _EPS) * g + b


def _gelu(x):
    # exact (erf-based) GELU, matching torch.nn.GELU(approximate='none')
    return 0.5 * x * (1.0 + jax.lax.erf(x * _INV_SQRT2))


# ------------------------------------------------------------------ kernels
def _patch_embed_kernel(x_ref, w_ref, b_ref, g_ref, beta_ref, o_ref):
    # Conv2d(k=P, s=P) as a patchify matmul + bias, fused with the patch-embed LayerNorm.
    h = _dot(x_ref[...], w_ref[...]) + b_ref[...]
    o_ref[...] = _layernorm(h, g_ref[...], beta_ref[...])


def _merge_kernel(x_ref, g_ref, b_ref, w_ref, o_ref):
    # PatchMerging: LayerNorm(4C) + bias-free reduction Linear(4C -> 2C), fused.
    xn = _layernorm(x_ref[...], g_ref[...], b_ref[...])
    o_ref[...] = _dot(xn, w_ref[...])


def _swin_block_kernel(x_ref, ln1g_ref, ln1b_ref, qkvw_ref, qkvb_ref, bias_ref,
                       projw_ref, projb_ref, ln2g_ref, ln2b_ref,
                       w1_ref, b1_ref, w2_ref, b2_ref, o_ref, *, nheads, scale):
    # Fully fused Swin block operating on a chunk of windows (WC, T, C).
    # Residual / LN / MLP are per-token, so doing the whole block in window-token layout
    # is equivalent to the spatial-layout formulation.
    WC, T, C = x_ref.shape
    hd = C // nheads
    xt = x_ref[...].reshape(WC * T, C)

    # ---- windowed multi-head self-attention ----
    xn = _layernorm(xt, ln1g_ref[...], ln1b_ref[...])
    qkv = (_dot(xn, qkvw_ref[...]) + qkvb_ref[...]).reshape(WC, T, 3 * C)
    bias = bias_ref[...]                               # (nheads, T, T), VMEM-resident
    head_outs = []
    for h in range(nheads):                            # static head loop (heads are few)
        q = qkv[:, :, h * hd:(h + 1) * hd] * scale
        k = qkv[:, :, C + h * hd:C + (h + 1) * hd]
        v = qkv[:, :, 2 * C + h * hd:2 * C + (h + 1) * hd]
        s = jnp.einsum("wtd,wsd->wts", q.astype(MXU_DTYPE), k.astype(MXU_DTYPE),
                       preferred_element_type=jnp.float32)
        s = s + bias[h][None]
        s = s - jnp.max(s, axis=-1, keepdims=True)
        p = jnp.exp(s)
        p = p * pl.reciprocal(jnp.sum(p, axis=-1, keepdims=True), approx=True)
        head_outs.append(
            jnp.einsum("wts,wsd->wtd", p.astype(MXU_DTYPE), v.astype(MXU_DTYPE),
                       preferred_element_type=jnp.float32))
    attn = jnp.concatenate(head_outs, axis=-1).reshape(WC * T, C)
    y = _dot(attn, projw_ref[...]) + projb_ref[...] + xt      # proj + residual

    # ---- MLP ----
    yn = _layernorm(y, ln2g_ref[...], ln2b_ref[...])
    hmid = _gelu(_dot(yn, w1_ref[...]) + b1_ref[...])
    o = _dot(hmid, w2_ref[...]) + b2_ref[...] + y             # residual
    o_ref[...] = o.reshape(WC, T, C)


def _final_kernel(x_ref, g_ref, b_ref, wh_ref, bh_ref, bng_ref, bnb_ref, wc_ref,
                  ft_ref, fi_ref, out_ref):
    # Fused tail: final LayerNorm -> global average pool -> swin.head Linear
    #             -> BatchNorm1d (training-mode batch statistics) -> bias-free classifier.
    B, L, C = x_ref.shape
    xn = _layernorm(x_ref[...].reshape(B * L, C), g_ref[...], b_ref[...])
    pooled = jnp.mean(xn.reshape(B, L, C), axis=1)            # (B, C)
    f_t = _dot(pooled, wh_ref[...]) + bh_ref[...]             # swin.head
    mu = jnp.mean(f_t, axis=0, keepdims=True)
    fc = f_t - mu
    var = jnp.mean(fc * fc, axis=0, keepdims=True)
    f_i = fc * jax.lax.rsqrt(var + _EPS) * bng_ref[...] + bnb_ref[...]
    ft_ref[...] = f_t
    fi_ref[...] = f_i
    out_ref[...] = _dot(f_i, wc_ref[...])                     # classifier (no bias)


# ------------------------------------------------------------------ wrappers
def _row_tile(m, cap=512):
    # Largest row tile that divides m.  If m splits into two sublane-aligned halves, use two
    # blocks so both v7x TensorCores get a 'parallel' block; otherwise keep the whole slab.
    if m % 16 == 0 and m // 2 <= cap:
        return m // 2
    for t in (cap, 256, 128, 64, 32, 16, 8):
        if t < m and m % t == 0:
            return t
    return m


def _cparams(n_parallel):
    kw = dict(vmem_limit_bytes=VMEM_LIMIT)
    if n_parallel:
        kw["dimension_semantics"] = ("parallel",) * n_parallel
    return pltpu.CompilerParams(**kw)


def pallas_patch_embed(xp, w, b, g, beta):
    M, K = xp.shape
    E = w.shape[1]
    TM = _row_tile(M)
    cost = pl.CostEstimate(flops=int(2 * M * K * E), transcendentals=0,
                           bytes_accessed=int(4 * (M * K + K * E + 2 * M * E)))
    return pl.pallas_call(
        _patch_embed_kernel,
        out_shape=jax.ShapeDtypeStruct((M, E), jnp.float32),
        grid=(M // TM,),
        in_specs=[
            pl.BlockSpec((TM, K), lambda i: (i, 0)),
            pl.BlockSpec((K, E), lambda i: (0, 0)),
            pl.BlockSpec((1, E), lambda i: (0, 0)),
            pl.BlockSpec((1, E), lambda i: (0, 0)),
            pl.BlockSpec((1, E), lambda i: (0, 0)),
        ],
        out_specs=pl.BlockSpec((TM, E), lambda i: (i, 0)),
        compiler_params=_cparams(1),
        cost_estimate=cost,
    )(xp, w, b.reshape(1, E), g.reshape(1, E), beta.reshape(1, E))


def pallas_patch_merge(x, g, b, w):
    M, K = x.shape
    N = w.shape[1]
    TM = _row_tile(M)
    return pl.pallas_call(
        _merge_kernel,
        out_shape=jax.ShapeDtypeStruct((M, N), jnp.float32),
        grid=(M // TM,),
        in_specs=[
            pl.BlockSpec((TM, K), lambda i: (i, 0)),
            pl.BlockSpec((1, K), lambda i: (0, 0)),
            pl.BlockSpec((1, K), lambda i: (0, 0)),
            pl.BlockSpec((K, N), lambda i: (0, 0)),
        ],
        out_specs=pl.BlockSpec((TM, N), lambda i: (i, 0)),
        compiler_params=_cparams(1),
    )(x, g.reshape(1, K), b.reshape(1, K), w)


def pallas_swin_block(xw, p, nheads, scale):
    WT, T, C = xw.shape
    WCHUNK = WT // 2 if WT % 2 == 0 else WT          # >=2 parallel blocks when possible
    C3 = 3 * C
    Ch = p["mlp_w1"].shape[1]
    hd = C // nheads
    mm_flops = 2 * WT * T * C * (C3 + C + 2 * Ch) + 4 * WT * nheads * T * T * hd
    trans = WT * T * Ch + WT * nheads * T * T + WT * T
    bytes_acc = 4 * (2 * WT * T * C + C * C3 + C * C + 2 * C * Ch + nheads * T * T)
    kern = functools.partial(_swin_block_kernel, nheads=nheads, scale=scale)
    return pl.pallas_call(
        kern,
        out_shape=jax.ShapeDtypeStruct((WT, T, C), jnp.float32),
        grid=(WT // WCHUNK,),
        in_specs=[
            pl.BlockSpec((WCHUNK, T, C), lambda i: (i, 0, 0)),      # window tokens
            pl.BlockSpec((1, C), lambda i: (0, 0)),                 # ln1 gamma
            pl.BlockSpec((1, C), lambda i: (0, 0)),                 # ln1 beta
            pl.BlockSpec((C, C3), lambda i: (0, 0)),                # qkv weight
            pl.BlockSpec((1, C3), lambda i: (0, 0)),                # qkv bias
            pl.BlockSpec((nheads, T, T), lambda i: (0, 0, 0)),      # relative position bias
            pl.BlockSpec((C, C), lambda i: (0, 0)),                 # proj weight
            pl.BlockSpec((1, C), lambda i: (0, 0)),                 # proj bias
            pl.BlockSpec((1, C), lambda i: (0, 0)),                 # ln2 gamma
            pl.BlockSpec((1, C), lambda i: (0, 0)),                 # ln2 beta
            pl.BlockSpec((C, Ch), lambda i: (0, 0)),                # mlp w1
            pl.BlockSpec((1, Ch), lambda i: (0, 0)),                # mlp b1
            pl.BlockSpec((Ch, C), lambda i: (0, 0)),                # mlp w2
            pl.BlockSpec((1, C), lambda i: (0, 0)),                 # mlp b2
        ],
        out_specs=pl.BlockSpec((WCHUNK, T, C), lambda i: (i, 0, 0)),
        compiler_params=_cparams(1),
        cost_estimate=pl.CostEstimate(flops=int(mm_flops), transcendentals=int(trans),
                                      bytes_accessed=int(bytes_acc)),
    )(xw, p["ln1_g"].reshape(1, C), p["ln1_b"].reshape(1, C),
      p["qkv_w"], p["qkv_b"].reshape(1, C3), p["rel_bias"],
      p["proj_w"], p["proj_b"].reshape(1, C),
      p["ln2_g"].reshape(1, C), p["ln2_b"].reshape(1, C),
      p["mlp_w1"], p["mlp_b1"].reshape(1, Ch),
      p["mlp_w2"], p["mlp_b2"].reshape(1, C))


def pallas_final_head(x, g, b, w_head, b_head, bn_g, bn_b, w_cls):
    B, L, C = x.shape
    E = w_head.shape[1]
    NC = w_cls.shape[1]
    # BatchNorm needs whole-batch statistics -> single grid step; everything here is tiny.
    return pl.pallas_call(
        _final_kernel,
        out_shape=(
            jax.ShapeDtypeStruct((B, E), jnp.float32),
            jax.ShapeDtypeStruct((B, E), jnp.float32),
            jax.ShapeDtypeStruct((B, NC), jnp.float32),
        ),
        compiler_params=_cparams(0),
    )(x, g.reshape(1, C), b.reshape(1, C), w_head, b_head.reshape(1, E),
      bn_g.reshape(1, E), bn_b.reshape(1, E), w_cls)


# ------------------------------------------------------------------ model glue
def rel_pos_index(ws):
    coords = jnp.stack(
        jnp.meshgrid(jnp.arange(ws), jnp.arange(ws), indexing="ij"), axis=0
    ).reshape(2, -1)
    rel = coords[:, :, None] - coords[:, None, :] + (ws - 1)
    return rel[0] * (2 * ws - 1) + rel[1]  # (T, T)


# TODO(synk): window partition / un-partition stays as an XLA reshape+transpose — a BlockSpec
# index_map gather needs the (8,128)-divisible block rule and ws=2 (or 7 in real Swin) breaks it.
def window_partition(x, ws):
    B, H, W, C = x.shape
    x = x.reshape(B, H // ws, ws, W // ws, ws, C).transpose(0, 1, 3, 2, 4, 5)
    return x.reshape(B * (H // ws) * (W // ws), ws * ws, C)


def window_unpartition(xw, ws, B, H, W, C):
    x = xw.reshape(B, H // ws, W // ws, ws, ws, C).transpose(0, 1, 3, 2, 4, 5)
    return x.reshape(B, H, W, C)


def patch_merging(x, p, H, W, C):
    B = x.shape[0]
    x0 = x[:, 0::2, 0::2, :]
    x1 = x[:, 1::2, 0::2, :]
    x2 = x[:, 0::2, 1::2, :]
    x3 = x[:, 1::2, 1::2, :]
    xm = jnp.concatenate([x0, x1, x2, x3], axis=-1)
    Hn, Wn = H // 2, W // 2
    ym = pallas_patch_merge(xm.reshape(B * Hn * Wn, 4 * C), p["ln_g"], p["ln_b"], p["red_w"])
    return ym.reshape(B, Hn, Wn, 2 * C), Hn, Wn, 2 * C


def swin_reid_forward(x_nchw, params, cfg):
    B = x_nchw.shape[0]
    x = jnp.transpose(x_nchw, (0, 2, 3, 1))  # NCHW -> NHWC
    P = cfg["patch"]
    _, H, W, Cin = x.shape
    xp = (
        x.reshape(B, H // P, P, W // P, P, Cin)
        .transpose(0, 1, 3, 2, 4, 5)
        .reshape(B * (H // P) * (W // P), P * P * Cin)
    )
    x = pallas_patch_embed(xp, params["patch_w"], params["patch_b"],
                           params["patch_ln_g"], params["patch_ln_b"])
    Hc, Wc = H // P, W // P
    dim = cfg["embed"]
    ws = cfg["window"]
    x = x.reshape(B, Hc, Wc, dim)

    for si, (depth, nheads) in enumerate(zip(cfg["depths"], cfg["heads"])):
        if si > 0:
            x, Hc, Wc, dim = patch_merging(x, params[f"merge{si}"], Hc, Wc, dim)
        for bi in range(depth):
            shift = 0 if bi % 2 == 0 else ws // 2
            xi = x
            if shift > 0:
                xi = jnp.roll(xi, shift=(-shift, -shift), axis=(1, 2))
                # TODO(synk): shifted-window attention mask omitted; every block in this config has shift=0.
            xw = window_partition(xi, ws)
            hd = dim // nheads
            xw = pallas_swin_block(xw, params[f"stage{si}_block{bi}"], nheads, float(hd) ** -0.5)
            xo = window_unpartition(xw, ws, B, Hc, Wc, dim)
            if shift > 0:
                xo = jnp.roll(xo, shift=(shift, shift), axis=(1, 2))
            x = xo

    f_t, f_i, out = pallas_final_head(
        x.reshape(B, Hc * Wc, dim),
        params["norm_g"], params["norm_b"],
        params["head_w"], params["head_b"],
        params["bn_g"], params["bn_b"],
        params["cls_w"],
    )
    return f_t, f_i, out


# ------------------------------------------------------------------ params
def init_params(key, cfg, embedding_dim, num_classes):
    keys = iter(jax.random.split(key, 64))

    def nrm(shape, scale=0.02):
        return jax.random.normal(next(keys), shape, jnp.float32) * scale

    Cin, P, E, ws = 3, cfg["patch"], cfg["embed"], cfg["window"]
    idx = rel_pos_index(ws)
    p = {
        "patch_w": nrm((P * P * Cin, E)),
        "patch_b": jnp.zeros((E,), jnp.float32),
        "patch_ln_g": jnp.ones((E,), jnp.float32),
        "patch_ln_b": jnp.zeros((E,), jnp.float32),
    }
    dim = E
    for si, (depth, nh) in enumerate(zip(cfg["depths"], cfg["heads"])):
        if si > 0:
            p[f"merge{si}"] = {
                "ln_g": jnp.ones((4 * dim,), jnp.float32),
                "ln_b": jnp.zeros((4 * dim,), jnp.float32),
                "red_w": nrm((4 * dim, 2 * dim)),
            }
            dim = 2 * dim
        for bi in range(depth):
            table = nrm(((2 * ws - 1) ** 2, nh))
            bias = jnp.transpose(table[idx], (2, 0, 1))  # (heads, T, T)
            p[f"stage{si}_block{bi}"] = {
                "ln1_g": jnp.ones((dim,), jnp.float32),
                "ln1_b": jnp.zeros((dim,), jnp.float32),
                "qkv_w": nrm((dim, 3 * dim)),
                "qkv_b": jnp.zeros((3 * dim,), jnp.float32),
                "proj_w": nrm((dim, dim)),
                "proj_b": jnp.zeros((dim,), jnp.float32),
                "rel_bias": bias,
                "ln2_g": jnp.ones((dim,), jnp.float32),
                "ln2_b": jnp.zeros((dim,), jnp.float32),
                "mlp_w1": nrm((dim, 4 * dim)),
                "mlp_b1": jnp.zeros((4 * dim,), jnp.float32),
                "mlp_w2": nrm((4 * dim, dim)),
                "mlp_b2": jnp.zeros((dim,), jnp.float32),
            }
    p["norm_g"] = jnp.ones((dim,), jnp.float32)
    p["norm_b"] = jnp.zeros((dim,), jnp.float32)
    p["head_w"] = nrm((dim, embedding_dim))
    p["head_b"] = jnp.zeros((embedding_dim,), jnp.float32)
    p["bn_g"] = jnp.ones((embedding_dim,), jnp.float32)
    p["bn_b"] = jnp.zeros((embedding_dim,), jnp.float32)  # bias frozen in the PyTorch module
    p["cls_w"] = nrm((embedding_dim, num_classes))
    return p


# ------------------------------------------------------------------ main
if __name__ == "__main__":
    # tiny Swin config (real Swin-B: embed=128, depths=(2,2,18,2), heads=(4,8,16,32), window=7)
    cfg = dict(patch=4, embed=16, window=2, depths=(1, 1), heads=(2, 4))
    num_classes, embedding_dim = 8, 32

    key = jax.random.PRNGKey(0)
    kx, kp = jax.random.split(key)
    x = jax.random.normal(kx, (2, 3, 16, 16), jnp.float32)  # NCHW, like the PyTorch module
    params = init_params(kp, cfg, embedding_dim, num_classes)

    fwd = jax.jit(lambda xx, pp: swin_reid_forward(xx, pp, cfg))
    f_t, f_i, out = fwd(x, params)
    jax.block_until_ready((f_t, f_i, out))
    assert f_t.shape == (2, embedding_dim)
    assert f_i.shape == (2, embedding_dim)
    assert out.shape == (2, num_classes)
    print("KERNEL_OK")
</pallas_src>

<mosaic_0001>
module attributes {stable_mosaic.version = 11 : i64} {
  func.func @_swin_block_kernel(%arg0: i32, %arg1: memref<4x4x16xf32, #tpu.memory_space<vmem>>, %arg2: memref<1x16xf32, #tpu.memory_space<vmem>>, %arg3: memref<1x16xf32, #tpu.memory_space<vmem>>, %arg4: memref<16x48xf32, #tpu.memory_space<vmem>>, %arg5: memref<1x48xf32, #tpu.memory_space<vmem>>, %arg6: memref<2x4x4xf32, #tpu.memory_space<vmem>>, %arg7: memref<16x16xf32, #tpu.memory_space<vmem>>, %arg8: memref<1x16xf32, #tpu.memory_space<vmem>>, %arg9: memref<1x16xf32, #tpu.memory_space<vmem>>, %arg10: memref<1x16xf32, #tpu.memory_space<vmem>>, %arg11: memref<16x64xf32, #tpu.memory_space<vmem>>, %arg12: memref<1x64xf32, #tpu.memory_space<vmem>>, %arg13: memref<64x16xf32, #tpu.memory_space<vmem>>, %arg14: memref<1x16xf32, #tpu.memory_space<vmem>>, %arg15: memref<4x4x16xf32, #tpu.memory_space<vmem>>) attributes {dimension_semantics = [#tpu.dimension_semantics<parallel>], iteration_bounds = array<i64: 2>, scalar_prefetch = 0 : i64, scratch_operands = 0 : i64, tpu.core_type = #tpu.core_type<tc>, window_params = [{transform_indices = @transform_0, window_bounds = array<i64: 4, 4, 16>}, {pipeline_mode = #tpu.pipeline_mode<synchronous>, transform_indices = @transform_1, window_bounds = array<i64: 1, 16>}, {pipeline_mode = #tpu.pipeline_mode<synchronous>, transform_indices = @transform_2, window_bounds = array<i64: 1, 16>}, {pipeline_mode = #tpu.pipeline_mode<synchronous>, transform_indices = @transform_3, window_bounds = array<i64: 16, 48>}, {pipeline_mode = #tpu.pipeline_mode<synchronous>, transform_indices = @transform_4, window_bounds = array<i64: 1, 48>}, {pipeline_mode = #tpu.pipeline_mode<synchronous>, transform_indices = @transform_5, window_bounds = array<i64: 2, 4, 4>}, {pipeline_mode = #tpu.pipeline_mode<synchronous>, transform_indices = @transform_6, window_bounds = array<i64: 16, 16>}, {pipeline_mode = #tpu.pipeline_mode<synchronous>, transform_indices = @transform_7, window_bounds = array<i64: 1, 16>}, {pipeline_mode = #tpu.pipeline_mode<synchronous>, transform_indices = @transform_8, window_bounds = array<i64: 1, 16>}, {pipeline_mode = #tpu.pipeline_mode<synchronous>, transform_indices = @transform_9, window_bounds = array<i64: 1, 16>}, {pipeline_mode = #tpu.pipeline_mode<synchronous>, transform_indices = @transform_10, window_bounds = array<i64: 16, 64>}, {pipeline_mode = #tpu.pipeline_mode<synchronous>, transform_indices = @transform_11, window_bounds = array<i64: 1, 64>}, {pipeline_mode = #tpu.pipeline_mode<synchronous>, transform_indices = @transform_12, window_bounds = array<i64: 64, 16>}, {pipeline_mode = #tpu.pipeline_mode<synchronous>, transform_indices = @transform_13, window_bounds = array<i64: 1, 16>}, {transform_indices = @transform_14, window_bounds = array<i64: 4, 4, 16>}]} {
    %c0 = arith.constant 0 : index
    %c0_0 = arith.constant 0 : index
    %c0_1 = arith.constant 0 : index
    %0 = vector.load %arg1[%c0, %c0_0, %c0_1] : memref<4x4x16xf32, #tpu.memory_space<vmem>>, vector<4x4x16xf32>
    %1 = vector.shape_cast %0 : vector<4x4x16xf32> to vector<16x16xf32>
    %c0_2 = arith.constant 0 : index
    %c0_3 = arith.constant 0 : index
    %2 = vector.load %arg2[%c0_2, %c0_3] : memref<1x16xf32, #tpu.memory_space<vmem>>, vector<1x16xf32>
    %c0_4 = arith.constant 0 : index
    %c0_5 = arith.constant 0 : index
    %3 = vector.load %arg3[%c0_4, %c0_5] : memref<1x16xf32, #tpu.memory_space<vmem>>, vector<1x16xf32>
    %cst = arith.constant dense<0.000000e+00> : vector<16xf32>
    %4 = vector.multi_reduction <add>, %1, %cst [1] : vector<16x16xf32> to vector<16xf32>
    %5 = vector.shape_cast %4 : vector<16xf32> to vector<16x1xf32>
    %cst_6 = arith.constant 1.600000e+01 : f32
    %6 = vector.broadcast %cst_6 : f32 to vector<16x1xf32>
    %7 = arith.divf %5, %6 : vector<16x1xf32>
    %8 = vector.broadcast %7 : vector<16x1xf32> to vector<16x16xf32>
    %9 = arith.subf %1, %8 : vector<16x16xf32>
    %10 = arith.mulf %9, %9 : vector<16x16xf32>
    %cst_7 = arith.constant dense<0.000000e+00> : vector<16xf32>
    %11 = vector.multi_reduction <add>, %10, %cst_7 [1] : vector<16x16xf32> to vector<16xf32>
    %12 = vector.shape_cast %11 : vector<16xf32> to vector<16x1xf32>
    %cst_8 = arith.constant 1.600000e+01 : f32
    %13 = vector.broadcast %cst_8 : f32 to vector<16x1xf32>
    %14 = arith.divf %12, %13 : vector<16x1xf32>
    %cst_9 = arith.constant 9.99999974E-6 : f32
    %15 = vector.broadcast %cst_9 : f32 to vector<16x1xf32>
    %16 = arith.addf %14, %15 : vector<16x1xf32>
    %17 = math.rsqrt %16 : vector<16x1xf32>
    %18 = vector.broadcast %17 : vector<16x1xf32> to vector<16x16xf32>
    %19 = arith.mulf %9, %18 : vector<16x16xf32>
    %20 = vector.broadcast %2 : vector<1x16xf32> to vector<16x16xf32>
    %21 = arith.mulf %19, %20 : vector<16x16xf32>
    %22 = vector.broadcast %3 : vector<1x16xf32> to vector<16x16xf32>
    %23 = arith.addf %21, %22 : vector<16x16xf32>
    %c0_10 = arith.constant 0 : index
    %c0_11 = arith.constant 0 : index
    %24 = vector.load %arg4[%c0_10, %c0_11] : memref<16x48xf32, #tpu.memory_space<vmem>>, vector<16x48xf32>
    %25 = arith.truncf %23 : vector<16x16xf32> to vector<16x16xbf16>
    %26 = arith.truncf %24 : vector<16x48xf32> to vector<16x48xbf16>
    %cst_12 = arith.constant dense<0.000000e+00> : vector<16x48xf32>
    %27 = tpu.matmul %25, %26, %cst_12 {dimension_numbers = #tpu.dot_dimension_numbers<[1], [0], [0], [1], [0, 0, 1, 1], [], []>} : vector<16x16xbf16>, vector<16x48xbf16>, vector<16x48xf32> -> vector<16x48xf32>
    %c0_13 = arith.constant 0 : index
    %c0_14 = arith.constant 0 : index
    %28 = vector.load %arg5[%c0_13, %c0_14] : memref<1x48xf32, #tpu.memory_space<vmem>>, vector<1x48xf32>
    %29 = vector.broadcast %28 : vector<1x48xf32> to vector<16x48xf32>
    %30 = arith.addf %27, %29 : vector<16x48xf32>
    %31 = vector.shape_cast %30 : vector<16x48xf32> to vector<4x4x48xf32>
    %c0_15 = arith.constant 0 : index
    %c0_16 = arith.constant 0 : index
    %c0_17 = arith.constant 0 : index
    %32 = vector.load %arg6[%c0_15, %c0_16, %c0_17] : memref<2x4x4xf32, #tpu.memory_space<vmem>>, vector<2x4x4xf32>
    %33 = vector.extract_strided_slice %31 {offsets = [0, 0, 0], sizes = [4, 4, 8], strides = [1, 1, 1]} : vector<4x4x48xf32> to vector<4x4x8xf32>
    %cst_18 = arith.constant 0.353553385 : f32
    %34 = vector.broadcast %cst_18 : f32 to vector<4x4x8xf32>
    %35 = arith.mulf %33, %34 : vector<4x4x8xf32>
    %36 = vector.extract_strided_slice %31 {offsets = [0, 0, 16], sizes = [4, 4, 8], strides = [1, 1, 1]} : vector<4x4x48xf32> to vector<4x4x8xf32>
    %37 = vector.extract_strided_slice %31 {offsets = [0, 0, 32], sizes = [4, 4, 8], strides = [1, 1, 1]} : vector<4x4x48xf32> to vector<4x4x8xf32>
    %38 = arith.truncf %35 : vector<4x4x8xf32> to vector<4x4x8xbf16>
    %39 = arith.truncf %36 : vector<4x4x8xf32> to vector<4x4x8xbf16>
    "tpu.trace_start"() <{level = 10 : i32, message = "wtd,wsd->wts"}> : () -> ()
    %cst_19 = arith.constant dense<0.000000e+00> : vector<4x4x4xf32>
    %40 = tpu.matmul %38, %39, %cst_19 {dimension_numbers = #tpu.dot_dimension_numbers<[2], [2], [1], [1], [0, 0, 0, 1, 1, 1], [0], [0]>} : vector<4x4x8xbf16>, vector<4x4x8xbf16>, vector<4x4x4xf32> -> vector<4x4x4xf32>
    "tpu.trace_stop"() : () -> ()
    %41 = vector.extract_strided_slice %32 {offsets = [0, 0, 0], sizes = [1, 4, 4], strides = [1, 1, 1]} : vector<2x4x4xf32> to vector<1x4x4xf32>
    %42 = vector.shape_cast %41 : vector<1x4x4xf32> to vector<4x4xf32>
    %43 = vector.shape_cast %42 : vector<4x4xf32> to vector<1x4x4xf32>
    %44 = vector.broadcast %43 : vector<1x4x4xf32> to vector<4x4x4xf32>
    %45 = arith.addf %40, %44 : vector<4x4x4xf32>
    %cst_20 = arith.constant dense<0xFF800000> : vector<4x4xf32>
    %46 = vector.multi_reduction <maximumf>, %45, %cst_20 [2] : vector<4x4x4xf32> to vector<4x4xf32>
    %47 = vector.shape_cast %46 : vector<4x4xf32> to vector<4x4x1xf32>
    %48 = vector.broadcast %47 : vector<4x4x1xf32> to vector<4x4x4xf32>
    %49 = arith.subf %45, %48 : vector<4x4x4xf32>
    %50 = math.exp %49 : vector<4x4x4xf32>
    %cst_21 = arith.constant dense<0.000000e+00> : vector<4x4xf32>
    %51 = vector.multi_reduction <add>, %50, %cst_21 [2] : vector<4x4x4xf32> to vector<4x4xf32>
    %52 = vector.shape_cast %51 : vector<4x4xf32> to vector<4x4x1xf32>
    %53 = tpu.reciprocal %52 {approx = true} : vector<4x4x1xf32> -> vector<4x4x1xf32>
    %54 = vector.broadcast %53 : vector<4x4x1xf32> to vector<4x4x4xf32>
    %55 = arith.mulf %50, %54 : vector<4x4x4xf32>
    %56 = arith.truncf %55 : vector<4x4x4xf32> to vector<4x4x4xbf16>
    %57 = arith.truncf %37 : vector<4x4x8xf32> to vector<4x4x8xbf16>
    "tpu.trace_start"() <{level = 10 : i32, message = "wts,wsd->wtd"}> : () -> ()
    %cst_22 = arith.constant dense<0.000000e+00> : vector<4x4x8xf32>
    %58 = tpu.matmul %56, %57, %cst_22 {dimension_numbers = #tpu.dot_dimension_numbers<[2], [1], [1], [2], [0, 0, 0, 1, 1, 2], [0], [0]>} : vector<4x4x4xbf16>, vector<4x4x8xbf16>, vector<4x4x8xf32> -> vector<4x4x8xf32>
    "tpu.trace_stop"() : () -> ()
    %59 = vector.extract_strided_slice %31 {offsets = [0, 0, 8], sizes = [4, 4, 8], strides = [1, 1, 1]} : vector<4x4x48xf32> to vector<4x4x8xf32>
    %cst_23 = arith.constant 0.353553385 : f32
    %60 = vector.broadcast %cst_23 : f32 to vector<4x4x8xf32>
    %61 = arith.mulf %59, %60 : vector<4x4x8xf32>
    %62 = vector.extract_strided_slice %31 {offsets = [0, 0, 24], sizes = [4, 4, 8], strides = [1, 1, 1]} : vector<4x4x48xf32> to vector<4x4x8xf32>
    %63 = vector.extract_strided_slice %31 {offsets = [0, 0, 40], sizes = [4, 4, 8], strides = [1, 1, 1]} : vector<4x4x48xf32> to vector<4x4x8xf32>
    %64 = arith.truncf %61 : vector<4x4x8xf32> to vector<4x4x8xbf16>
    %65 = arith.truncf %62 : vector<4x4x8xf32> to vector<4x4x8xbf16>
    "tpu.trace_start"() <{level = 10 : i32, message = "wtd,wsd->wts"}> : () -> ()
    %cst_24 = arith.constant dense<0.000000e+00> : vector<4x4x4xf32>
    %66 = tpu.matmul %64, %65, %cst_24 {dimension_numbers = #tpu.dot_dimension_numbers<[2], [2], [1], [1], [0, 0, 0, 1, 1, 1], [0], [0]>} : vector<4x4x8xbf16>, vector<4x4x8xbf16>, vector<4x4x4xf32> -> vector<4x4x4xf32>
    "tpu.trace_stop"() : () -> ()
    %67 = vector.extract_strided_slice %32 {offsets = [1, 0, 0], sizes = [1, 4, 4], strides = [1, 1, 1]} : vector<2x4x4xf32> to vector<1x4x4xf32>
    %68 = vector.shape_cast %67 : vector<1x4x4xf32> to vector<4x4xf32>
    %69 = vector.shape_cast %68 : vector<4x4xf32> to vector<1x4x4xf32>
    %70 = vector.broadcast %69 : vector<1x4x4xf32> to vector<4x4x4xf32>
    %71 = arith.addf %66, %70 : vector<4x4x4xf32>
    %cst_25 = arith.constant dense<0xFF800000> : vector<4x4xf32>
    %72 = vector.multi_reduction <maximumf>, %71, %cst_25 [2] : vector<4x4x4xf32> to vector<4x4xf32>
    %73 = vector.shape_cast %72 : vector<4x4xf32> to vector<4x4x1xf32>
    %74 = vector.broadcast %73 : vector<4x4x1xf32> to vector<4x4x4xf32>
    %75 = arith.subf %71, %74 : vector<4x4x4xf32>
    %76 = math.exp %75 : vector<4x4x4xf32>
    %cst_26 = arith.constant dense<0.000000e+00> : vector<4x4xf32>
    %77 = vector.multi_reduction <add>, %76, %cst_26 [2] : vector<4x4x4xf32> to vector<4x4xf32>
    %78 = vector.shape_cast %77 : vector<4x4xf32> to vector<4x4x1xf32>
    %79 = tpu.reciprocal %78 {approx = true} : vector<4x4x1xf32> -> vector<4x4x1xf32>
    %80 = vector.broadcast %79 : vector<4x4x1xf32> to vector<4x4x4xf32>
    %81 = arith.mulf %76, %80 : vector<4x4x4xf32>
    %82 = arith.truncf %81 : vector<4x4x4xf32> to vector<4x4x4xbf16>
    %83 = arith.truncf %63 : vector<4x4x8xf32> to vector<4x4x8xbf16>
    "tpu.trace_start"() <{level = 10 : i32, message = "wts,wsd->wtd"}> : () -> ()
    %cst_27 = arith.constant dense<0.000000e+00> : vector<4x4x8xf32>
    %84 = tpu.matmul %82, %83, %cst_27 {dimension_numbers = #tpu.dot_dimension_numbers<[2], [1], [1], [2], [0, 0, 0, 1, 1, 2], [0], [0]>} : vector<4x4x4xbf16>, vector<4x4x8xbf16>, vector<4x4x8xf32> -> vector<4x4x8xf32>
    "tpu.trace_stop"() : () -> ()
    %85 = tpu.concatenate %58, %84 in 2 : vector<4x4x8xf32>, vector<4x4x8xf32> -> vector<4x4x16xf32>
    %86 = vector.shape_cast %85 : vector<4x4x16xf32> to vector<16x16xf32>
    %c0_28 = arith.constant 0 : index
    %c0_29 = arith.constant 0 : index
    %87 = vector.load %arg7[%c0_28, %c0_29] : memref<16x16xf32, #tpu.memory_space<vmem>>, vector<16x16xf32>
    %88 = arith.truncf %86 : vector<16x16xf32> to vector<16x16xbf16>
    %89 = arith.truncf %87 : vector<16x16xf32> to vector<16x16xbf16>
    %cst_30 = arith.constant dense<0.000000e+00> : vector<16x16xf32>
    %90 = tpu.matmul %88, %89, %cst_30 {dimension_numbers = #tpu.dot_dimension_numbers<[1], [0], [0], [1], [0, 0, 1, 1], [], []>} : vector<16x16xbf16>, vector<16x16xbf16>, vector<16x16xf32> -> vector<16x16xf32>
    %c0_31 = arith.constant 0 : index
    %c0_32 = arith.constant 0 : index
    %91 = vector.load %arg8[%c0_31, %c0_32] : memref<1x16xf32, #tpu.memory_space<vmem>>, vector<1x16xf32>
    %92 = vector.broadcast %91 : vector<1x16xf32> to vector<16x16xf32>
    %93 = arith.addf %90, %92 : vector<16x16xf32>
    %94 = arith.addf %93, %1 : vector<16x16xf32>
    %c0_33 = arith.constant 0 : index
    %c0_34 = arith.constant 0 : index
    %95 = vector.load %arg9[%c0_33, %c0_34] : memref<1x16xf32, #tpu.memory_space<vmem>>, vector<1x16xf32>
    %c0_35 = arith.constant 0 : index
    %c0_36 = arith.constant 0 : index
    %96 = vector.load %arg10[%c0_35, %c0_36] : memref<1x16xf32, #tpu.memory_space<vmem>>, vector<1x16xf32>
    %cst_37 = arith.constant dense<0.000000e+00> : vector<16xf32>
    %97 = vector.multi_reduction <add>, %94, %cst_37 [1] : vector<16x16xf32> to vector<16xf32>
    %98 = vector.shape_cast %97 : vector<16xf32> to vector<16x1xf32>
    %cst_38 = arith.constant 1.600000e+01 : f32
    %99 = vector.broadcast %cst_38 : f32 to vector<16x1xf32>
    %100 = arith.divf %98, %99 : vector<16x1xf32>
    %101 = vector.broadcast %100 : vector<16x1xf32> to vector<16x16xf32>
    %102 = arith.subf %94, %101 : vector<16x16xf32>
    %103 = arith.mulf %102, %102 : vector<16x16xf32>
    %cst_39 = arith.constant dense<0.000000e+00> : vector<16xf32>
    %104 = vector.multi_reduction <add>, %103, %cst_39 [1] : vector<16x16xf32> to vector<16xf32>
    %105 = vector.shape_cast %104 : vector<16xf32> to vector<16x1xf32>
    %cst_40 = arith.constant 1.600000e+01 : f32
    %106 = vector.broadcast %cst_40 : f32 to vector<16x1xf32>
    %107 = arith.divf %105, %106 : vector<16x1xf32>
    %cst_41 = arith.constant 9.99999974E-6 : f32
    %108 = vector.broadcast %cst_41 : f32 to vector<16x1xf32>
    %109 = arith.addf %107, %108 : vector<16x1xf32>
    %110 = math.rsqrt %109 : vector<16x1xf32>
    %111 = vector.broadcast %110 : vector<16x1xf32> to vector<16x16xf32>
    %112 = arith.mulf %102, %111 : vector<16x16xf32>
    %113 = vector.broadcast %95 : vector<1x16xf32> to vector<16x16xf32>
    %114 = arith.mulf %112, %113 : vector<16x16xf32>
    %115 = vector.broadcast %96 : vector<1x16xf32> to vector<16x16xf32>
    %116 = arith.addf %114, %115 : vector<16x16xf32>
    %c0_42 = arith.constant 0 : index
    %c0_43 = arith.constant 0 : index
    %117 = vector.load %arg11[%c0_42, %c0_43] : memref<16x64xf32, #tpu.memory_space<vmem>>, vector<16x64xf32>
    %118 = arith.truncf %116 : vector<16x16xf32> to vector<16x16xbf16>
    %119 = arith.truncf %117 : vector<16x64xf32> to vector<16x64xbf16>
    %cst_44 = arith.constant dense<0.000000e+00> : vector<16x64xf32>
    %120 = tpu.matmul %118, %119, %cst_44 {dimension_numbers = #tpu.dot_dimension_numbers<[1], [0], [0], [1], [0, 0, 1, 1], [], []>} : vector<16x16xbf16>, vector<16x64xbf16>, vector<16x64xf32> -> vector<16x64xf32>
    %c0_45 = arith.constant 0 : index
    %c0_46 = arith.constant 0 : index
    %121 = vector.load %arg12[%c0_45, %c0_46] : memref<1x64xf32, #tpu.memory_space<vmem>>, vector<1x64xf32>
    %122 = vector.broadcast %121 : vector<1x64xf32> to vector<16x64xf32>
    %123 = arith.addf %120, %122 : vector<16x64xf32>
    %cst_47 = arith.constant 5.000000e-01 : f32
    %124 = vector.broadcast %cst_47 : f32 to vector<16x64xf32>
    %125 = arith.mulf %124, %123 : vector<16x64xf32>
    %cst_48 = arith.constant 0.707106769 : f32
    %126 = vector.broadcast %cst_48 : f32 to vector<16x64xf32>
    %127 = arith.mulf %123, %126 : vector<16x64xf32>
    %128 = math.erf %127 : vector<16x64xf32>
    %cst_49 = arith.constant 1.000000e+00 : f32
    %129 = vector.broadcast %cst_49 : f32 to vector<16x64xf32>
    %130 = arith.addf %129, %128 : vector<16x64xf32>
    %131 = arith.mulf %125, %130 : vector<16x64xf32>
    %c0_50 = arith.constant 0 : index
    %c0_51 = arith.constant 0 : index
    %132 = vector.load %arg13[%c0_50, %c0_51] : memref<64x16xf32, #tpu.memory_space<vmem>>, vector<64x16xf32>
    %133 = arith.truncf %131 : vector<16x64xf32> to vector<16x64xbf16>
    %134 = arith.truncf %132 : vector<64x16xf32> to vector<64x16xbf16>
    %cst_52 = arith.constant dense<0.000000e+00> : vector<16x16xf32>
    %135 = tpu.matmul %133, %134, %cst_52 {dimension_numbers = #tpu.dot_dimension_numbers<[1], [0], [0], [1], [0, 0, 1, 1], [], []>} : vector<16x64xbf16>, vector<64x16xbf16>, vector<16x16xf32> -> vector<16x16xf32>
    %c0_53 = arith.constant 0 : index
    %c0_54 = arith.constant 0 : index
    %136 = vector.load %arg14[%c0_53, %c0_54] : memref<1x16xf32, #tpu.memory_space<vmem>>, vector<1x16xf32>
    %137 = vector.broadcast %136 : vector<1x16xf32> to vector<16x16xf32>
    %138 = arith.addf %135, %137 : vector<16x16xf32>
    %139 = arith.addf %138, %94 : vector<16x16xf32>
    %140 = vector.shape_cast %139 : vector<16x16xf32> to vector<4x4x16xf32>
    %c0_55 = arith.constant 0 : index
    %c0_56 = arith.constant 0 : index
    %c0_57 = arith.constant 0 : index
    %141 = vector.load %arg15[%c0_55, %c0_56, %c0_57] : memref<4x4x16xf32, #tpu.memory_space<vmem>>, vector<4x4x16xf32>
    tpu.vector_store %arg15[%c0_55, %c0_56, %c0_57], %140 {strides = array<i32>} : memref<4x4x16xf32, #tpu.memory_space<vmem>>, vector<4x4x16xf32>,
    return
  }
  func.func @transform_0(%arg0: i32) -> (i32, i32, i32) {
    %c0_i32 = arith.constant 0 : i32
    %c0_i32_0 = arith.constant 0 : i32
    %c0_i32_1 = arith.constant 0 : i32
    return %arg0, %c0_i32, %c0_i32_0 : i32, i32, i32
  }
  func.func @transform_1(%arg0: i32) -> (i32, i32) {
    %c0_i32 = arith.constant 0 : i32
    %c0_i32_0 = arith.constant 0 : i32
    %c0_i32_1 = arith.constant 0 : i32
    return %c0_i32, %c0_i32_0 : i32, i32
  }
  func.func @transform_2(%arg0: i32) -> (i32, i32) {
    %c0_i32 = arith.constant 0 : i32
    %c0_i32_0 = arith.constant 0 : i32
    %c0_i32_1 = arith.constant 0 : i32
    return %c0_i32, %c0_i32_0 : i32, i32
  }
  func.func @transform_3(%arg0: i32) -> (i32, i32) {
    %c0_i32 = arith.constant 0 : i32
    %c0_i32_0 = arith.constant 0 : i32
    %c0_i32_1 = arith.constant 0 : i32
    return %c0_i32, %c0_i32_0 : i32, i32
  }
  func.func @transform_4(%arg0: i32) -> (i32, i32) {
    %c0_i32 = arith.constant 0 : i32
    %c0_i32_0 = arith.constant 0 : i32
    %c0_i32_1 = arith.constant 0 : i32
    return %c0_i32, %c0_i32_0 : i32, i32
  }
  func.func @transform_5(%arg0: i32) -> (i32, i32, i32) {
    %c0_i32 = arith.constant 0 : i32
    %c0_i32_0 = arith.constant 0 : i32
    %c0_i32_1 = arith.constant 0 : i32
    %c0_i32_2 = arith.constant 0 : i32
    return %c0_i32, %c0_i32_0, %c0_i32_1 : i32, i32, i32
  }
  func.func @transform_6(%arg0: i32) -> (i32, i32) {
    %c0_i32 = arith.constant 0 : i32
    %c0_i32_0 = arith.constant 0 : i32
    %c0_i32_1 = arith.constant 0 : i32
    return %c0_i32, %c0_i32_0 : i32, i32
  }
  func.func @transform_7(%arg0: i32) -> (i32, i32) {
    %c0_i32 = arith.constant 0 : i32
    %c0_i32_0 = arith.constant 0 : i32
    %c0_i32_1 = arith.constant 0 : i32
    return %c0_i32, %c0_i32_0 : i32, i32
  }
  func.func @transform_8(%arg0: i32) -> (i32, i32) {
    %c0_i32 = arith.constant 0 : i32
    %c0_i32_0 = arith.constant 0 : i32
    %c0_i32_1 = arith.constant 0 : i32
    return %c0_i32, %c0_i32_0 : i32, i32
  }
  func.func @transform_9(%arg0: i32) -> (i32, i32) {
    %c0_i32 = arith.constant 0 : i32
    %c0_i32_0 = arith.constant 0 : i32
    %c0_i32_1 = arith.constant 0 : i32
    return %c0_i32, %c0_i32_0 : i32, i32
  }
  func.func @transform_10(%arg0: i32) -> (i32, i32) {
    %c0_i32 = arith.constant 0 : i32
    %c0_i32_0 = arith.constant 0 : i32
    %c0_i32_1 = arith.constant 0 : i32
    return %c0_i32, %c0_i32_0 : i32, i32
  }
  func.func @transform_11(%arg0: i32) -> (i32, i32) {
    %c0_i32 = arith.constant 0 : i32
    %c0_i32_0 = arith.constant 0 : i32
    %c0_i32_1 = arith.constant 0 : i32
    return %c0_i32, %c0_i32_0 : i32, i32
  }
  func.func @transform_12(%arg0: i32) -> (i32, i32) {
    %c0_i32 = arith.constant 0 : i32
    %c0_i32_0 = arith.constant 0 : i32
    %c0_i32_1 = arith.constant 0 : i32
    return %c0_i32, %c0_i32_0 : i32, i32
  }
  func.func @transform_13(%arg0: i32) -> (i32, i32) {
    %c0_i32 = arith.constant 0 : i32
    %c0_i32_0 = arith.constant 0 : i32
    %c0_i32_1 = arith.constant 0 : i32
    return %c0_i32, %c0_i32_0 : i32, i32
  }
  func.func @transform_14(%arg0: i32) -> (i32, i32, i32) {
    %c0_i32 = arith.constant 0 : i32
    %c0_i32_0 = arith.constant 0 : i32
    %c0_i32_1 = arith.constant 0 : i32
    return %arg0, %c0_i32, %c0_i32_0 : i32, i32, i32
  }
}

module attributes {stable_mosaic.version = 11 : i64} {
  func.func @_patch_embed_kernel(%arg0: i32, %arg1: memref<16x48xf32, #tpu.memory_space<vmem>>, %arg2: memref<48x16xf32, #tpu.memory_space<vmem>>, %arg3: memref<1x16xf32, #tpu.memory_space<vmem>>, %arg4: memref<1x16xf32, #tpu.memory_space<vmem>>, %arg5: memref<1x16xf32, #tpu.memory_space<vmem>>, %arg6: memref<16x16xf32, #tpu.memory_space<vmem>>) attributes {dimension_semantics = [#tpu.dimension_semantics<parallel>], iteration_bounds = array<i64: 2>, scalar_prefetch = 0 : i64, scratch_operands = 0 : i64, tpu.core_type = #tpu.core_type<tc>, window_params = [{transform_indices = @transform_0, window_bounds = array<i64: 16, 48>}, {pipeline_mode = #tpu.pipeline_mode<synchronous>, transform_indices = @transform_1, window_bounds = array<i64: 48, 16>}, {pipeline_mode = #tpu.pipeline_mode<synchronous>, transform_indices = @transform_2, window_bounds = array<i64: 1, 16>}, {pipeline_mode = #tpu.pipeline_mode<synchronous>, transform_indices = @transform_3, window_bounds = array<i64: 1, 16>}, {pipeline_mode = #tpu.pipeline_mode<synchronous>, transform_indices = @transform_4, window_bounds = array<i64: 1, 16>}, {transform_indices = @transform_5, window_bounds = array<i64: 16, 16>}]} {
    %c0 = arith.constant 0 : index
    %c0_0 = arith.constant 0 : index
    %0 = vector.load %arg1[%c0, %c0_0] : memref<16x48xf32, #tpu.memory_space<vmem>>, vector<16x48xf32>
    %c0_1 = arith.constant 0 : index
    %c0_2 = arith.constant 0 : index
    %1 = vector.load %arg2[%c0_1, %c0_2] : memref<48x16xf32, #tpu.memory_space<vmem>>, vector<48x16xf32>
    %2 = arith.truncf %0 : vector<16x48xf32> to vector<16x48xbf16>
    %3 = arith.truncf %1 : vector<48x16xf32> to vector<48x16xbf16>
    %cst = arith.constant dense<0.000000e+00> : vector<16x16xf32>
    %4 = tpu.matmul %2, %3, %cst {dimension_numbers = #tpu.dot_dimension_numbers<[1], [0], [0], [1], [0, 0, 1, 1], [], []>} : vector<16x48xbf16>, vector<48x16xbf16>, vector<16x16xf32> -> vector<16x16xf32>
    %c0_3 = arith.constant 0 : index
    %c0_4 = arith.constant 0 : index
    %5 = vector.load %arg3[%c0_3, %c0_4] : memref<1x16xf32, #tpu.memory_space<vmem>>, vector<1x16xf32>
    %6 = vector.broadcast %5 : vector<1x16xf32> to vector<16x16xf32>
    %7 = arith.addf %4, %6 : vector<16x16xf32>
    %c0_5 = arith.constant 0 : index
    %c0_6 = arith.constant 0 : index
    %8 = vector.load %arg4[%c0_5, %c0_6] : memref<1x16xf32, #tpu.memory_space<vmem>>, vector<1x16xf32>
    %c0_7 = arith.constant 0 : index
    %c0_8 = arith.constant 0 : index
    %9 = vector.load %arg5[%c0_7, %c0_8] : memref<1x16xf32, #tpu.memory_space<vmem>>, vector<1x16xf32>
    %cst_9 = arith.constant dense<0.000000e+00> : vector<16xf32>
    %10 = vector.multi_reduction <add>, %7, %cst_9 [1] : vector<16x16xf32> to vector<16xf32>
    %11 = vector.shape_cast %10 : vector<16xf32> to vector<16x1xf32>
    %cst_10 = arith.constant 1.600000e+01 : f32
    %12 = vector.broadcast %cst_10 : f32 to vector<16x1xf32>
    %13 = arith.divf %11, %12 : vector<16x1xf32>
    %14 = vector.broadcast %13 : vector<16x1xf32> to vector<16x16xf32>
    %15 = arith.subf %7, %14 : vector<16x16xf32>
    %16 = arith.mulf %15, %15 : vector<16x16xf32>
    %cst_11 = arith.constant dense<0.000000e+00> : vector<16xf32>
    %17 = vector.multi_reduction <add>, %16, %cst_11 [1] : vector<16x16xf32> to vector<16xf32>
    %18 = vector.shape_cast %17 : vector<16xf32> to vector<16x1xf32>
    %cst_12 = arith.constant 1.600000e+01 : f32
    %19 = vector.broadcast %cst_12 : f32 to vector<16x1xf32>
    %20 = arith.divf %18, %19 : vector<16x1xf32>
    %cst_13 = arith.constant 9.99999974E-6 : f32
    %21 = vector.broadcast %cst_13 : f32 to vector<16x1xf32>
    %22 = arith.addf %20, %21 : vector<16x1xf32>
    %23 = math.rsqrt %22 : vector<16x1xf32>
    %24 = vector.broadcast %23 : vector<16x1xf32> to vector<16x16xf32>
    %25 = arith.mulf %15, %24 : vector<16x16xf32>
    %26 = vector.broadcast %8 : vector<1x16xf32> to vector<16x16xf32>
    %27 = arith.mulf %25, %26 : vector<16x16xf32>
    %28 = vector.broadcast %9 : vector<1x16xf32> to vector<16x16xf32>
    %29 = arith.addf %27, %28 : vector<16x16xf32>
    %c0_14 = arith.constant 0 : index
    %c0_15 = arith.constant 0 : index
    %30 = vector.load %arg6[%c0_14, %c0_15] : memref<16x16xf32, #tpu.memory_space<vmem>>, vector<16x16xf32>
    tpu.vector_store %arg6[%c0_14, %c0_15], %29 {strides = array<i32>} : memref<16x16xf32, #tpu.memory_space<vmem>>, vector<16x16xf32>,
    return
  }
  func.func @transform_0(%arg0: i32) -> (i32, i32) {
    %c0_i32 = arith.constant 0 : i32
    %c0_i32_0 = arith.constant 0 : i32
    return %arg0, %c0_i32 : i32, i32
  }
  func.func @transform_1(%arg0: i32) -> (i32, i32) {
    %c0_i32 = arith.constant 0 : i32
    %c0_i32_0 = arith.constant 0 : i32
    %c0_i32_1 = arith.constant 0 : i32
    return %c0_i32, %c0_i32_0 : i32, i32
  }
  func.func @transform_2(%arg0: i32) -> (i32, i32) {
    %c0_i32 = arith.constant 0 : i32
    %c0_i32_0 = arith.constant 0 : i32
    %c0_i32_1 = arith.constant 0 : i32
    return %c0_i32, %c0_i32_0 : i32, i32
  }
  func.func @transform_3(%arg0: i32) -> (i32, i32) {
    %c0_i32 = arith.constant 0 : i32
    %c0_i32_0 = arith.constant 0 : i32
    %c0_i32_1 = arith.constant 0 : i32
    return %c0_i32, %c0_i32_0 : i32, i32
  }
  func.func @transform_4(%arg0: i32) -> (i32, i32) {
    %c0_i32 = arith.constant 0 : i32
    %c0_i32_0 = arith.constant 0 : i32
    %c0_i32_1 = arith.constant 0 : i32
    return %c0_i32, %c0_i32_0 : i32, i32
  }
  func.func @transform_5(%arg0: i32) -> (i32, i32) {
    %c0_i32 = arith.constant 0 : i32
    %c0_i32_0 = arith.constant 0 : i32
    return %arg0, %c0_i32 : i32, i32
  }
}

module attributes {stable_mosaic.version = 11 : i64} {
  func.func @_merge_kernel(%arg0: i32, %arg1: memref<8x64xf32, #tpu.memory_space<vmem>>, %arg2: memref<1x64xf32, #tpu.memory_space<vmem>>, %arg3: memref<1x64xf32, #tpu.memory_space<vmem>>, %arg4: memref<64x32xf32, #tpu.memory_space<vmem>>, %arg5: memref<8x32xf32, #tpu.memory_space<vmem>>) attributes {dimension_semantics = [#tpu.dimension_semantics<parallel>], iteration_bounds = array<i64: 1>, scalar_prefetch = 0 : i64, scratch_operands = 0 : i64, tpu.core_type = #tpu.core_type<tc>, window_params = [{transform_indices = @transform_0, window_bounds = array<i64: 8, 64>}, {pipeline_mode = #tpu.pipeline_mode<synchronous>, transform_indices = @transform_1, window_bounds = array<i64: 1, 64>}, {pipeline_mode = #tpu.pipeline_mode<synchronous>, transform_indices = @transform_2, window_bounds = array<i64: 1, 64>}, {pipeline_mode = #tpu.pipeline_mode<synchronous>, transform_indices = @transform_3, window_bounds = array<i64: 64, 32>}, {transform_indices = @transform_4, window_bounds = array<i64: 8, 32>}]} {
    %c0 = arith.constant 0 : index
    %c0_0 = arith.constant 0 : index
    %0 = vector.load %arg1[%c0, %c0_0] : memref<8x64xf32, #tpu.memory_space<vmem>>, vector<8x64xf32>
    %c0_1 = arith.constant 0 : index
    %c0_2 = arith.constant 0 : index
    %1 = vector.load %arg2[%c0_1, %c0_2] : memref<1x64xf32, #tpu.memory_space<vmem>>, vector<1x64xf32>
    %c0_3 = arith.constant 0 : index
    %c0_4 = arith.constant 0 : index
    %2 = vector.load %arg3[%c0_3, %c0_4] : memref<1x64xf32, #tpu.memory_space<vmem>>, vector<1x64xf32>
    %cst = arith.constant dense<0.000000e+00> : vector<8xf32>
    %3 = vector.multi_reduction <add>, %0, %cst [1] : vector<8x64xf32> to vector<8xf32>
    %4 = vector.shape_cast %3 : vector<8xf32> to vector<8x1xf32>
    %cst_5 = arith.constant 6.400000e+01 : f32
    %5 = vector.broadcast %cst_5 : f32 to vector<8x1xf32>
    %6 = arith.divf %4, %5 : vector<8x1xf32>
    %7 = vector.broadcast %6 : vector<8x1xf32> to vector<8x64xf32>
    %8 = arith.subf %0, %7 : vector<8x64xf32>
    %9 = arith.mulf %8, %8 : vector<8x64xf32>
    %cst_6 = arith.constant dense<0.000000e+00> : vector<8xf32>
    %10 = vector.multi_reduction <add>, %9, %cst_6 [1] : vector<8x64xf32> to vector<8xf32>
    %11 = vector.shape_cast %10 : vector<8xf32> to vector<8x1xf32>
    %cst_7 = arith.constant 6.400000e+01 : f32
    %12 = vector.broadcast %cst_7 : f32 to vector<8x1xf32>
    %13 = arith.divf %11, %12 : vector<8x1xf32>
    %cst_8 = arith.constant 9.99999974E-6 : f32
    %14 = vector.broadcast %cst_8 : f32 to vector<8x1xf32>
    %15 = arith.addf %13, %14 : vector<8x1xf32>
    %16 = math.rsqrt %15 : vector<8x1xf32>
    %17 = vector.broadcast %16 : vector<8x1xf32> to vector<8x64xf32>
    %18 = arith.mulf %8, %17 : vector<8x64xf32>
    %19 = vector.broadcast %1 : vector<1x64xf32> to vector<8x64xf32>
    %20 = arith.mulf %18, %19 : vector<8x64xf32>
    %21 = vector.broadcast %2 : vector<1x64xf32> to vector<8x64xf32>
    %22 = arith.addf %20, %21 : vector<8x64xf32>
    %c0_9 = arith.constant 0 : index
    %c0_10 = arith.constant 0 : index
    %23 = vector.load %arg4[%c0_9, %c0_10] : memref<64x32xf32, #tpu.memory_space<vmem>>, vector<64x32xf32>
    %24 = arith.truncf %22 : vector<8x64xf32> to vector<8x64xbf16>
    %25 = arith.truncf %23 : vector<64x32xf32> to vector<64x32xbf16>
    %cst_11 = arith.constant dense<0.000000e+00> : vector<8x32xf32>
    %26 = tpu.matmul %24, %25, %cst_11 {dimension_numbers = #tpu.dot_dimension_numbers<[1], [0], [0], [1], [0, 0, 1, 1], [], []>} : vector<8x64xbf16>, vector<64x32xbf16>, vector<8x32xf32> -> vector<8x32xf32>
    %c0_12 = arith.constant 0 : index
    %c0_13 = arith.constant 0 : index
    %27 = vector.load %arg5[%c0_12, %c0_13] : memref<8x32xf32, #tpu.memory_space<vmem>>, vector<8x32xf32>
    tpu.vector_store %arg5[%c0_12, %c0_13], %26 {strides = array<i32>} : memref<8x32xf32, #tpu.memory_space<vmem>>, vector<8x32xf32>,
    return
  }
  func.func @transform_0(%arg0: i32) -> (i32, i32) {
    %c0_i32 = arith.constant 0 : i32
    %c0_i32_0 = arith.constant 0 : i32
    return %arg0, %c0_i32 : i32, i32
  }
  func.func @transform_1(%arg0: i32) -> (i32, i32) {
    %c0_i32 = arith.constant 0 : i32
    %c0_i32_0 = arith.constant 0 : i32
    %c0_i32_1 = arith.constant 0 : i32
    return %c0_i32, %c0_i32_0 : i32, i32
  }
  func.func @transform_2(%arg0: i32) -> (i32, i32) {
    %c0_i32 = arith.constant 0 : i32
    %c0_i32_0 = arith.constant 0 : i32
    %c0_i32_1 = arith.constant 0 : i32
    return %c0_i32, %c0_i32_0 : i32, i32
  }
  func.func @transform_3(%arg0: i32) -> (i32, i32) {
    %c0_i32 = arith.constant 0 : i32
    %c0_i32_0 = arith.constant 0 : i32
    %c0_i32_1 = arith.constant 0 : i32
    return %c0_i32, %c0_i32_0 : i32, i32
  }
  func.func @transform_4(%arg0: i32) -> (i32, i32) {
    %c0_i32 = arith.constant 0 : i32
    %c0_i32_0 = arith.constant 0 : i32
    return %arg0, %c0_i32 : i32, i32
  }
}

module attributes {stable_mosaic.version = 11 : i64} {
  func.func @_final_kernel(%arg0: memref<2x4x32xf32, #tpu.memory_space<vmem>>, %arg1: memref<1x32xf32, #tpu.memory_space<vmem>>, %arg2: memref<1x32xf32, #tpu.memory_space<vmem>>, %arg3: memref<32x32xf32, #tpu.memory_space<vmem>>, %arg4: memref<1x32xf32, #tpu.memory_space<vmem>>, %arg5: memref<1x32xf32, #tpu.memory_space<vmem>>, %arg6: memref<1x32xf32, #tpu.memory_space<vmem>>, %arg7: memref<32x8xf32, #tpu.memory_space<vmem>>, %arg8: memref<2x32xf32, #tpu.memory_space<vmem>>, %arg9: memref<2x32xf32, #tpu.memory_space<vmem>>, %arg10: memref<2x8xf32, #tpu.memory_space<vmem>>) attributes {dimension_semantics = [], scalar_prefetch = 0 : i64, scratch_operands = 0 : i64, tpu.core_type = #tpu.core_type<tc>} {
    %c0 = arith.constant 0 : index
    %c0_0 = arith.constant 0 : index
    %c0_1 = arith.constant 0 : index
    %0 = vector.load %arg0[%c0, %c0_0, %c0_1] : memref<2x4x32xf32, #tpu.memory_space<vmem>>, vector<2x4x32xf32>
    %1 = vector.shape_cast %0 : vector<2x4x32xf32> to vector<8x32xf32>
    %c0_2 = arith.constant 0 : index
    %c0_3 = arith.constant 0 : index
    %2 = vector.load %arg1[%c0_2, %c0_3] : memref<1x32xf32, #tpu.memory_space<vmem>>, vector<1x32xf32>
    %c0_4 = arith.constant 0 : index
    %c0_5 = arith.constant 0 : index
    %3 = vector.load %arg2[%c0_4, %c0_5] : memref<1x32xf32, #tpu.memory_space<vmem>>, vector<1x32xf32>
    %cst = arith.constant dense<0.000000e+00> : vector<8xf32>
    %4 = vector.multi_reduction <add>, %1, %cst [1] : vector<8x32xf32> to vector<8xf32>
    %5 = vector.shape_cast %4 : vector<8xf32> to vector<8x1xf32>
    %cst_6 = arith.constant 3.200000e+01 : f32
    %6 = vector.broadcast %cst_6 : f32 to vector<8x1xf32>
    %7 = arith.divf %5, %6 : vector<8x1xf32>
    %8 = vector.broadcast %7 : vector<8x1xf32> to vector<8x32xf32>
    %9 = arith.subf %1, %8 : vector<8x32xf32>
    %10 = arith.mulf %9, %9 : vector<8x32xf32>
    %cst_7 = arith.constant dense<0.000000e+00> : vector<8xf32>
    %11 = vector.multi_reduction <add>, %10, %cst_7 [1] : vector<8x32xf32> to vector<8xf32>
    %12 = vector.shape_cast %11 : vector<8xf32> to vector<8x1xf32>
    %cst_8 = arith.constant 3.200000e+01 : f32
    %13 = vector.broadcast %cst_8 : f32 to vector<8x1xf32>
    %14 = arith.divf %12, %13 : vector<8x1xf32>
    %cst_9 = arith.constant 9.99999974E-6 : f32
    %15 = vector.broadcast %cst_9 : f32 to vector<8x1xf32>
    %16 = arith.addf %14, %15 : vector<8x1xf32>
    %17 = math.rsqrt %16 : vector<8x1xf32>
    %18 = vector.broadcast %17 : vector<8x1xf32> to vector<8x32xf32>
    %19 = arith.mulf %9, %18 : vector<8x32xf32>
    %20 = vector.broadcast %2 : vector<1x32xf32> to vector<8x32xf32>
    %21 = arith.mulf %19, %20 : vector<8x32xf32>
    %22 = vector.broadcast %3 : vector<1x32xf32> to vector<8x32xf32>
    %23 = arith.addf %21, %22 : vector<8x32xf32>
    %24 = vector.shape_cast %23 : vector<8x32xf32> to vector<2x4x32xf32>
    %cst_10 = arith.constant dense<0.000000e+00> : vector<2x32xf32>
    %25 = vector.multi_reduction <add>, %24, %cst_10 [1] : vector<2x4x32xf32> to vector<2x32xf32>
    %cst_11 = arith.constant 4.000000e+00 : f32
    %26 = vector.broadcast %cst_11 : f32 to vector<2x32xf32>
    %27 = arith.divf %25, %26 : vector<2x32xf32>
    %c0_12 = arith.constant 0 : index
    %c0_13 = arith.constant 0 : index
    %28 = vector.load %arg3[%c0_12, %c0_13] : memref<32x32xf32, #tpu.memory_space<vmem>>, vector<32x32xf32>
    %29 = arith.truncf %27 : vector<2x32xf32> to vector<2x32xbf16>
    %30 = arith.truncf %28 : vector<32x32xf32> to vector<32x32xbf16>
    %cst_14 = arith.constant dense<0.000000e+00> : vector<2x32xf32>
    %31 = tpu.matmul %29, %30, %cst_14 {dimension_numbers = #tpu.dot_dimension_numbers<[1], [0], [0], [1], [0, 0, 1, 1], [], []>} : vector<2x32xbf16>, vector<32x32xbf16>, vector<2x32xf32> -> vector<2x32xf32>
    %c0_15 = arith.constant 0 : index
    %c0_16 = arith.constant 0 : index
    %32 = vector.load %arg4[%c0_15, %c0_16] : memref<1x32xf32, #tpu.memory_space<vmem>>, vector<1x32xf32>
    %33 = vector.broadcast %32 : vector<1x32xf32> to vector<2x32xf32>
    %34 = arith.addf %31, %33 : vector<2x32xf32>
    %cst_17 = arith.constant dense<0.000000e+00> : vector<32xf32>
    %35 = vector.multi_reduction <add>, %34, %cst_17 [0] : vector<2x32xf32> to vector<32xf32>
    %36 = vector.shape_cast %35 : vector<32xf32> to vector<1x32xf32>
    %cst_18 = arith.constant 2.000000e+00 : f32
    %37 = vector.broadcast %cst_18 : f32 to vector<1x32xf32>
    %38 = arith.divf %36, %37 : vector<1x32xf32>
    %39 = vector.broadcast %38 : vector<1x32xf32> to vector<2x32xf32>
    %40 = arith.subf %34, %39 : vector<2x32xf32>
    %41 = arith.mulf %40, %40 : vector<2x32xf32>
    %cst_19 = arith.constant dense<0.000000e+00> : vector<32xf32>
    %42 = vector.multi_reduction <add>, %41, %cst_19 [0] : vector<2x32xf32> to vector<32xf32>
    %43 = vector.shape_cast %42 : vector<32xf32> to vector<1x32xf32>
    %cst_20 = arith.constant 2.000000e+00 : f32
    %44 = vector.broadcast %cst_20 : f32 to vector<1x32xf32>
    %45 = arith.divf %43, %44 : vector<1x32xf32>
    %cst_21 = arith.constant 9.99999974E-6 : f32
    %46 = vector.broadcast %cst_21 : f32 to vector<1x32xf32>
    %47 = arith.addf %45, %46 : vector<1x32xf32>
    %48 = math.rsqrt %47 : vector<1x32xf32>
    %49 = vector.broadcast %48 : vector<1x32xf32> to vector<2x32xf32>
    %50 = arith.mulf %40, %49 : vector<2x32xf32>
    %c0_22 = arith.constant 0 : index
    %c0_23 = arith.constant 0 : index
    %51 = vector.load %arg5[%c0_22, %c0_23] : memref<1x32xf32, #tpu.memory_space<vmem>>, vector<1x32xf32>
    %52 = vector.broadcast %51 : vector<1x32xf32> to vector<2x32xf32>
    %53 = arith.mulf %50, %52 : vector<2x32xf32>
    %c0_24 = arith.constant 0 : index
    %c0_25 = arith.constant 0 : index
    %54 = vector.load %arg6[%c0_24, %c0_25] : memref<1x32xf32, #tpu.memory_space<vmem>>, vector<1x32xf32>
    %55 = vector.broadcast %54 : vector<1x32xf32> to vector<2x32xf32>
    %56 = arith.addf %53, %55 : vector<2x32xf32>
    %c0_26 = arith.constant 0 : index
    %c0_27 = arith.constant 0 : index
    %57 = vector.load %arg8[%c0_26, %c0_27] : memref<2x32xf32, #tpu.memory_space<vmem>>, vector<2x32xf32>
    tpu.vector_store %arg8[%c0_26, %c0_27], %34 {strides = array<i32>} : memref<2x32xf32, #tpu.memory_space<vmem>>, vector<2x32xf32>,
    %c0_28 = arith.constant 0 : index
    %c0_29 = arith.constant 0 : index
    %58 = vector.load %arg9[%c0_28, %c0_29] : memref<2x32xf32, #tpu.memory_space<vmem>>, vector<2x32xf32>
    tpu.vector_store %arg9[%c0_28, %c0_29], %56 {strides = array<i32>} : memref<2x32xf32, #tpu.memory_space<vmem>>, vector<2x32xf32>,
    %c0_30 = arith.constant 0 : index
    %c0_31 = arith.constant 0 : index
    %59 = vector.load %arg7[%c0_30, %c0_31] : memref<32x8xf32, #tpu.memory_space<vmem>>, vector<32x8xf32>
    %60 = arith.truncf %56 : vector<2x32xf32> to vector<2x32xbf16>
    %61 = arith.truncf %59 : vector<32x8xf32> to vector<32x8xbf16>
    %cst_32 = arith.constant dense<0.000000e+00> : vector<2x8xf32>
    %62 = tpu.matmul %60, %61, %cst_32 {dimension_numbers = #tpu.dot_dimension_numbers<[1], [0], [0], [1], [0, 0, 1, 1], [], []>} : vector<2x32xbf16>, vector<32x8xbf16>, vector<2x8xf32> -> vector<2x8xf32>
    %c0_33 = arith.constant 0 : index
    %c0_34 = arith.constant 0 : index
    %63 = vector.load %arg10[%c0_33, %c0_34] : memref<2x8xf32, #tpu.memory_space<vmem>>, vector<2x8xf32>
    tpu.vector_store %arg10[%c0_33, %c0_34], %62 {strides = array<i32>} : memref<2x8xf32, #tpu.memory_space<vmem>>, vector<2x8xf32>,
    return
  }
}

module attributes {stable_mosaic.version = 11 : i64} {
  func.func @_swin_block_kernel(%arg0: i32, %arg1: memref<1x4x32xf32, #tpu.memory_space<vmem>>, %arg2: memref<1x32xf32, #tpu.memory_space<vmem>>, %arg3: memref<1x32xf32, #tpu.memory_space<vmem>>, %arg4: memref<32x96xf32, #tpu.memory_space<vmem>>, %arg5: memref<1x96xf32, #tpu.memory_space<vmem>>, %arg6: memref<4x4x4xf32, #tpu.memory_space<vmem>>, %arg7: memref<32x32xf32, #tpu.memory_space<vmem>>, %arg8: memref<1x32xf32, #tpu.memory_space<vmem>>, %arg9: memref<1x32xf32, #tpu.memory_space<vmem>>, %arg10: memref<1x32xf32, #tpu.memory_space<vmem>>, %arg11: memref<32x128xf32, #tpu.memory_space<vmem>>, %arg12: memref<1x128xf32, #tpu.memory_space<vmem>>, %arg13: memref<128x32xf32, #tpu.memory_space<vmem>>, %arg14: memref<1x32xf32, #tpu.memory_space<vmem>>, %arg15: memref<1x4x32xf32, #tpu.memory_space<vmem>>) attributes {dimension_semantics = [#tpu.dimension_semantics<parallel>], iteration_bounds = array<i64: 2>, scalar_prefetch = 0 : i64, scratch_operands = 0 : i64, tpu.core_type = #tpu.core_type<tc>, window_params = [{transform_indices = @transform_0, window_bounds = array<i64: 1, 4, 32>}, {pipeline_mode = #tpu.pipeline_mode<synchronous>, transform_indices = @transform_1, window_bounds = array<i64: 1, 32>}, {pipeline_mode = #tpu.pipeline_mode<synchronous>, transform_indices = @transform_2, window_bounds = array<i64: 1, 32>}, {pipeline_mode = #tpu.pipeline_mode<synchronous>, transform_indices = @transform_3, window_bounds = array<i64: 32, 96>}, {pipeline_mode = #tpu.pipeline_mode<synchronous>, transform_indices = @transform_4, window_bounds = array<i64: 1, 96>}, {pipeline_mode = #tpu.pipeline_mode<synchronous>, transform_indices = @transform_5, window_bounds = array<i64: 4, 4, 4>}, {pipeline_mode = #tpu.pipeline_mode<synchronous>, transform_indices = @transform_6, window_bounds = array<i64: 32, 32>}, {pipeline_mode = #tpu.pipeline_mode<synchronous>, transform_indices = @transform_7, window_bounds = array<i64: 1, 32>}, {pipeline_mode = #tpu.pipeline_mode<synchronous>, transform_indices = @transform_8, window_bounds = array<i64: 1, 32>}, {pipeline_mode = #tpu.pipeline_mode<synchronous>, transform_indices = @transform_9, window_bounds = array<i64: 1, 32>}, {pipeline_mode = #tpu.pipeline_mode<synchronous>, transform_indices = @transform_10, window_bounds = array<i64: 32, 128>}, {pipeline_mode = #tpu.pipeline_mode<synchronous>, transform_indices = @transform_11, window_bounds = array<i64: 1, 128>}, {pipeline_mode = #tpu.pipeline_mode<synchronous>, transform_indices = @transform_12, window_bounds = array<i64: 128, 32>}, {pipeline_mode = #tpu.pipeline_mode<synchronous>, transform_indices = @transform_13, window_bounds = array<i64: 1, 32>}, {transform_indices = @transform_14, window_bounds = array<i64: 1, 4, 32>}]} {
    %c0 = arith.constant 0 : index
    %c0_0 = arith.constant 0 : index
    %c0_1 = arith.constant 0 : index
    %0 = vector.load %arg1[%c0, %c0_0, %c0_1] : memref<1x4x32xf32, #tpu.memory_space<vmem>>, vector<1x4x32xf32>
    %1 = vector.shape_cast %0 : vector<1x4x32xf32> to vector<4x32xf32>
    %c0_2 = arith.constant 0 : index
    %c0_3 = arith.constant 0 : index
    %2 = vector.load %arg2[%c0_2, %c0_3] : memref<1x32xf32, #tpu.memory_space<vmem>>, vector<1x32xf32>
    %c0_4 = arith.constant 0 : index
    %c0_5 = arith.constant 0 : index
    %3 = vector.load %arg3[%c0_4, %c0_5] : memref<1x32xf32, #tpu.memory_space<vmem>>, vector<1x32xf32>
    %cst = arith.constant dense<0.000000e+00> : vector<4xf32>
    %4 = vector.multi_reduction <add>, %1, %cst [1] : vector<4x32xf32> to vector<4xf32>
    %5 = vector.shape_cast %4 : vector<4xf32> to vector<4x1xf32>
    %cst_6 = arith.constant 3.200000e+01 : f32
    %6 = vector.broadcast %cst_6 : f32 to vector<4x1xf32>
    %7 = arith.divf %5, %6 : vector<4x1xf32>
    %8 = vector.broadcast %7 : vector<4x1xf32> to vector<4x32xf32>
    %9 = arith.subf %1, %8 : vector<4x32xf32>
    %10 = arith.mulf %9, %9 : vector<4x32xf32>
    %cst_7 = arith.constant dense<0.000000e+00> : vector<4xf32>
    %11 = vector.multi_reduction <add>, %10, %cst_7 [1] : vector<4x32xf32> to vector<4xf32>
    %12 = vector.shape_cast %11 : vector<4xf32> to vector<4x1xf32>
    %cst_8 = arith.constant 3.200000e+01 : f32
    %13 = vector.broadcast %cst_8 : f32 to vector<4x1xf32>
    %14 = arith.divf %12, %13 : vector<4x1xf32>
    %cst_9 = arith.constant 9.99999974E-6 : f32
    %15 = vector.broadcast %cst_9 : f32 to vector<4x1xf32>
    %16 = arith.addf %14, %15 : vector<4x1xf32>
    %17 = math.rsqrt %16 : vector<4x1xf32>
    %18 = vector.broadcast %17 : vector<4x1xf32> to vector<4x32xf32>
    %19 = arith.mulf %9, %18 : vector<4x32xf32>
    %20 = vector.broadcast %2 : vector<1x32xf32> to vector<4x32xf32>
    %21 = arith.mulf %19, %20 : vector<4x32xf32>
    %22 = vector.broadcast %3 : vector<1x32xf32> to vector<4x32xf32>
    %23 = arith.addf %21, %22 : vector<4x32xf32>
    %c0_10 = arith.constant 0 : index
    %c0_11 = arith.constant 0 : index
    %24 = vector.load %arg4[%c0_10, %c0_11] : memref<32x96xf32, #tpu.memory_space<vmem>>, vector<32x96xf32>
    %25 = arith.truncf %23 : vector<4x32xf32> to vector<4x32xbf16>
    %26 = arith.truncf %24 : vector<32x96xf32> to vector<32x96xbf16>
    %cst_12 = arith.constant dense<0.000000e+00> : vector<4x96xf32>
    %27 = tpu.matmul %25, %26, %cst_12 {dimension_numbers = #tpu.dot_dimension_numbers<[1], [0], [0], [1], [0, 0, 1, 1], [], []>} : vector<4x32xbf16>, vector<32x96xbf16>, vector<4x96xf32> -> vector<4x96xf32>
    %c0_13 = arith.constant 0 : index
    %c0_14 = arith.constant 0 : index
    %28 = vector.load %arg5[%c0_13, %c0_14] : memref<1x96xf32, #tpu.memory_space<vmem>>, vector<1x96xf32>
    %29 = vector.broadcast %28 : vector<1x96xf32> to vector<4x96xf32>
    %30 = arith.addf %27, %29 : vector<4x96xf32>
    %31 = vector.shape_cast %30 : vector<4x96xf32> to vector<1x4x96xf32>
    %c0_15 = arith.constant 0 : index
    %c0_16 = arith.constant 0 : index
    %c0_17 = arith.constant 0 : index
    %32 = vector.load %arg6[%c0_15, %c0_16, %c0_17] : memref<4x4x4xf32, #tpu.memory_space<vmem>>, vector<4x4x4xf32>
    %33 = vector.extract_strided_slice %31 {offsets = [0, 0, 0], sizes = [1, 4, 8], strides = [1, 1, 1]} : vector<1x4x96xf32> to vector<1x4x8xf32>
    %cst_18 = arith.constant 0.353553385 : f32
    %34 = vector.broadcast %cst_18 : f32 to vector<1x4x8xf32>
    %35 = arith.mulf %33, %34 : vector<1x4x8xf32>
    %36 = vector.extract_strided_slice %31 {offsets = [0, 0, 32], sizes = [1, 4, 8], strides = [1, 1, 1]} : vector<1x4x96xf32> to vector<1x4x8xf32>
    %37 = vector.extract_strided_slice %31 {offsets = [0, 0, 64], sizes = [1, 4, 8], strides = [1, 1, 1]} : vector<1x4x96xf32> to vector<1x4x8xf32>
    %38 = arith.truncf %35 : vector<1x4x8xf32> to vector<1x4x8xbf16>
    %39 = arith.truncf %36 : vector<1x4x8xf32> to vector<1x4x8xbf16>
    "tpu.trace_start"() <{level = 10 : i32, message = "wtd,wsd->wts"}> : () -> ()
    %cst_19 = arith.constant dense<0.000000e+00> : vector<1x4x4xf32>
    %40 = tpu.matmul %38, %39, %cst_19 {dimension_numbers = #tpu.dot_dimension_numbers<[2], [2], [1], [1], [0, 0, 0, 1, 1, 1], [0], [0]>} : vector<1x4x8xbf16>, vector<1x4x8xbf16>, vector<1x4x4xf32> -> vector<1x4x4xf32>
    "tpu.trace_stop"() : () -> ()
    %41 = vector.extract_strided_slice %32 {offsets = [0, 0, 0], sizes = [1, 4, 4], strides = [1, 1, 1]} : vector<4x4x4xf32> to vector<1x4x4xf32>
    %42 = vector.shape_cast %41 : vector<1x4x4xf32> to vector<4x4xf32>
    %43 = vector.shape_cast %42 : vector<4x4xf32> to vector<1x4x4xf32>
    %44 = arith.addf %40, %43 : vector<1x4x4xf32>
    %cst_20 = arith.constant dense<0xFF800000> : vector<1x4xf32>
    %45 = vector.multi_reduction <maximumf>, %44, %cst_20 [2] : vector<1x4x4xf32> to vector<1x4xf32>
    %46 = vector.shape_cast %45 : vector<1x4xf32> to vector<1x4x1xf32>
    %47 = vector.broadcast %46 : vector<1x4x1xf32> to vector<1x4x4xf32>
    %48 = arith.subf %44, %47 : vector<1x4x4xf32>
    %49 = math.exp %48 : vector<1x4x4xf32>
    %cst_21 = arith.constant dense<0.000000e+00> : vector<1x4xf32>
    %50 = vector.multi_reduction <add>, %49, %cst_21 [2] : vector<1x4x4xf32> to vector<1x4xf32>
    %51 = vector.shape_cast %50 : vector<1x4xf32> to vector<1x4x1xf32>
    %52 = tpu.reciprocal %51 {approx = true} : vector<1x4x1xf32> -> vector<1x4x1xf32>
    %53 = vector.broadcast %52 : vector<1x4x1xf32> to vector<1x4x4xf32>
    %54 = arith.mulf %49, %53 : vector<1x4x4xf32>
    %55 = arith.truncf %54 : vector<1x4x4xf32> to vector<1x4x4xbf16>
    %56 = arith.truncf %37 : vector<1x4x8xf32> to vector<1x4x8xbf16>
    "tpu.trace_start"() <{level = 10 : i32, message = "wts,wsd->wtd"}> : () -> ()
    %cst_22 = arith.constant dense<0.000000e+00> : vector<1x4x8xf32>
    %57 = tpu.matmul %55, %56, %cst_22 {dimension_numbers = #tpu.dot_dimension_numbers<[2], [1], [1], [2], [0, 0, 0, 1, 1, 2], [0], [0]>} : vector<1x4x4xbf16>, vector<1x4x8xbf16>, vector<1x4x8xf32> -> vector<1x4x8xf32>
    "tpu.trace_stop"() : () -> ()
    %58 = vector.extract_strided_slice %31 {offsets = [0, 0, 8], sizes = [1, 4, 8], strides = [1, 1, 1]} : vector<1x4x96xf32> to vector<1x4x8xf32>
    %cst_23 = arith.constant 0.353553385 : f32
    %59 = vector.broadcast %cst_23 : f32 to vector<1x4x8xf32>
    %60 = arith.mulf %58, %59 : vector<1x4x8xf32>
    %61 = vector.extract_strided_slice %31 {offsets = [0, 0, 40], sizes = [1, 4, 8], strides = [1, 1, 1]} : vector<1x4x96xf32> to vector<1x4x8xf32>
    %62 = vector.extract_strided_slice %31 {offsets = [0, 0, 72], sizes = [1, 4, 8], strides = [1, 1, 1]} : vector<1x4x96xf32> to vector<1x4x8xf32>
    %63 = arith.truncf %60 : vector<1x4x8xf32> to vector<1x4x8xbf16>
    %64 = arith.truncf %61 : vector<1x4x8xf32> to vector<1x4x8xbf16>
    "tpu.trace_start"() <{level = 10 : i32, message = "wtd,wsd->wts"}> : () -> ()
    %cst_24 = arith.constant dense<0.000000e+00> : vector<1x4x4xf32>
    %65 = tpu.matmul %63, %64, %cst_24 {dimension_numbers = #tpu.dot_dimension_numbers<[2], [2], [1], [1], [0, 0, 0, 1, 1, 1], [0], [0]>} : vector<1x4x8xbf16>, vector<1x4x8xbf16>, vector<1x4x4xf32> -> vector<1x4x4xf32>
    "tpu.trace_stop"() : () -> ()
    %66 = vector.extract_strided_slice %32 {offsets = [1, 0, 0], sizes = [1, 4, 4], strides = [1, 1, 1]} : vector<4x4x4xf32> to vector<1x4x4xf32>
    %67 = vector.shape_cast %66 : vector<1x4x4xf32> to vector<4x4xf32>
    %68 = vector.shape_cast %67 : vector<4x4xf32> to vector<1x4x4xf32>
    %69 = arith.addf %65, %68 : vector<1x4x4xf32>
    %cst_25 = arith.constant dense<0xFF800000> : vector<1x4xf32>
    %70 = vector.multi_reduction <maximumf>, %69, %cst_25 [2] : vector<1x4x4xf32> to vector<1x4xf32>
    %71 = vector.shape_cast %70 : vector<1x4xf32> to vector<1x4x1xf32>
    %72 = vector.broadcast %71 : vector<1x4x1xf32> to vector<1x4x4xf32>
    %73 = arith.subf %69, %72 : vector<1x4x4xf32>
    %74 = math.exp %73 : vector<1x4x4xf32>
    %cst_26 = arith.constant dense<0.000000e+00> : vector<1x4xf32>
    %75 = vector.multi_reduction <add>, %74, %cst_26 [2] : vector<1x4x4xf32> to vector<1x4xf32>
    %76 = vector.shape_cast %75 : vector<1x4xf32> to vector<1x4x1xf32>
    %77 = tpu.reciprocal %76 {approx = true} : vector<1x4x1xf32> -> vector<1x4x1xf32>
    %78 = vector.broadcast %77 : vector<1x4x1xf32> to vector<1x4x4xf32>
    %79 = arith.mulf %74, %78 : vector<1x4x4xf32>
    %80 = arith.truncf %79 : vector<1x4x4xf32> to vector<1x4x4xbf16>
    %81 = arith.truncf %62 : vector<1x4x8xf32> to vector<1x4x8xbf16>
    "tpu.trace_start"() <{level = 10 : i32, message = "wts,wsd->wtd"}> : () -> ()
    %cst_27 = arith.constant dense<0.000000e+00> : vector<1x4x8xf32>
    %82 = tpu.matmul %80, %81, %cst_27 {dimension_numbers = #tpu.dot_dimension_numbers<[2], [1], [1], [2], [0, 0, 0, 1, 1, 2], [0], [0]>} : vector<1x4x4xbf16>, vector<1x4x8xbf16>, vector<1x4x8xf32> -> vector<1x4x8xf32>
    "tpu.trace_stop"() : () -> ()
    %83 = vector.extract_strided_slice %31 {offsets = [0, 0, 16], sizes = [1, 4, 8], strides = [1, 1, 1]} : vector<1x4x96xf32> to vector<1x4x8xf32>
    %cst_28 = arith.constant 0.353553385 : f32
    %84 = vector.broadcast %cst_28 : f32 to vector<1x4x8xf32>
    %85 = arith.mulf %83, %84 : vector<1x4x8xf32>
    %86 = vector.extract_strided_slice %31 {offsets = [0, 0, 48], sizes = [1, 4, 8], strides = [1, 1, 1]} : vector<1x4x96xf32> to vector<1x4x8xf32>
    %87 = vector.extract_strided_slice %31 {offsets = [0, 0, 80], sizes = [1, 4, 8], strides = [1, 1, 1]} : vector<1x4x96xf32> to vector<1x4x8xf32>
    %88 = arith.truncf %85 : vector<1x4x8xf32> to vector<1x4x8xbf16>
    %89 = arith.truncf %86 : vector<1x4x8xf32> to vector<1x4x8xbf16>
    "tpu.trace_start"() <{level = 10 : i32, message = "wtd,wsd->wts"}> : () -> ()
    %cst_29 = arith.constant dense<0.000000e+00> : vector<1x4x4xf32>
    %90 = tpu.matmul %88, %89, %cst_29 {dimension_numbers = #tpu.dot_dimension_numbers<[2], [2], [1], [1], [0, 0, 0, 1, 1, 1], [0], [0]>} : vector<1x4x8xbf16>, vector<1x4x8xbf16>, vector<1x4x4xf32> -> vector<1x4x4xf32>
    "tpu.trace_stop"() : () -> ()
    %91 = vector.extract_strided_slice %32 {offsets = [2, 0, 0], sizes = [1, 4, 4], strides = [1, 1, 1]} : vector<4x4x4xf32> to vector<1x4x4xf32>
    %92 = vector.shape_cast %91 : vector<1x4x4xf32> to vector<4x4xf32>
    %93 = vector.shape_cast %92 : vector<4x4xf32> to vector<1x4x4xf32>
    %94 = arith.addf %90, %93 : vector<1x4x4xf32>
    %cst_30 = arith.constant dense<0xFF800000> : vector<1x4xf32>
    %95 = vector.multi_reduction <maximumf>, %94, %cst_30 [2] : vector<1x4x4xf32> to vector<1x4xf32>
    %96 = vector.shape_cast %95 : vector<1x4xf32> to vector<1x4x1xf32>
    %97 = vector.broadcast %96 : vector<1x4x1xf32> to vector<1x4x4xf32>
    %98 = arith.subf %94, %97 : vector<1x4x4xf32>
    %99 = math.exp %98 : vector<1x4x4xf32>
    %cst_31 = arith.constant dense<0.000000e+00> : vector<1x4xf32>
    %100 = vector.multi_reduction <add>, %99, %cst_31 [2] : vector<1x4x4xf32> to vector<1x4xf32>
    %101 = vector.shape_cast %100 : vector<1x4xf32> to vector<1x4x1xf32>
    %102 = tpu.reciprocal %101 {approx = true} : vector<1x4x1xf32> -> vector<1x4x1xf32>
    %103 = vector.broadcast %102 : vector<1x4x1xf32> to vector<1x4x4xf32>
    %104 = arith.mulf %99, %103 : vector<1x4x4xf32>
    %105 = arith.truncf %104 : vector<1x4x4xf32> to vector<1x4x4xbf16>
    %106 = arith.truncf %87 : vector<1x4x8xf32> to vector<1x4x8xbf16>
    "tpu.trace_start"() <{level = 10 : i32, message = "wts,wsd->wtd"}> : () -> ()
    %cst_32 = arith.constant dense<0.000000e+00> : vector<1x4x8xf32>
    %107 = tpu.matmul %105, %106, %cst_32 {dimension_numbers = #tpu.dot_dimension_numbers<[2], [1], [1], [2], [0, 0, 0, 1, 1, 2], [0], [0]>} : vector<1x4x4xbf16>, vector<1x4x8xbf16>, vector<1x4x8xf32> -> vector<1x4x8xf32>
    "tpu.trace_stop"() : () -> ()
    %108 = vector.extract_strided_slice %31 {offsets = [0, 0, 24], sizes = [1, 4, 8], strides = [1, 1, 1]} : vector<1x4x96xf32> to vector<1x4x8xf32>
    %cst_33 = arith.constant 0.353553385 : f32
    %109 = vector.broadcast %cst_33 : f32 to vector<1x4x8xf32>
    %110 = arith.mulf %108, %109 : vector<1x4x8xf32>
    %111 = vector.extract_strided_slice %31 {offsets = [0, 0, 56], sizes = [1, 4, 8], strides = [1, 1, 1]} : vector<1x4x96xf32> to vector<1x4x8xf32>
    %112 = vector.extract_strided_slice %31 {offsets = [0, 0, 88], sizes = [1, 4, 8], strides = [1, 1, 1]} : vector<1x4x96xf32> to vector<1x4x8xf32>
    %113 = arith.truncf %110 : vector<1x4x8xf32> to vector<1x4x8xbf16>
    %114 = arith.truncf %111 : vector<1x4x8xf32> to vector<1x4x8xbf16>
    "tpu.trace_start"() <{level = 10 : i32, message = "wtd,wsd->wts"}> : () -> ()
    %cst_34 = arith.constant dense<0.000000e+00> : vector<1x4x4xf32>
    %115 = tpu.matmul %113, %114, %cst_34 {dimension_numbers = #tpu.dot_dimension_numbers<[2], [2], [1], [1], [0, 0, 0, 1, 1, 1], [0], [0]>} : vector<1x4x8xbf16>, vector<1x4x8xbf16>, vector<1x4x4xf32> -> vector<1x4x4xf32>
    "tpu.trace_stop"() : () -> ()
    %116 = vector.extract_strided_slice %32 {offsets = [3, 0, 0], sizes = [1, 4, 4], strides = [1, 1, 1]} : vector<4x4x4xf32> to vector<1x4x4xf32>
    %117 = vector.shape_cast %116 : vector<1x4x4xf32> to vector<4x4xf32>
    %118 = vector.shape_cast %117 : vector<4x4xf32> to vector<1x4x4xf32>
    %119 = arith.addf %115, %118 : vector<1x4x4xf32>
    %cst_35 = arith.constant dense<0xFF800000> : vector<1x4xf32>
    %120 = vector.multi_reduction <maximumf>, %119, %cst_35 [2] : vector<1x4x4xf32> to vector<1x4xf32>
    %121 = vector.shape_cast %120 : vector<1x4xf32> to vector<1x4x1xf32>
    %122 = vector.broadcast %121 : vector<1x4x1xf32> to vector<1x4x4xf32>
    %123 = arith.subf %119, %122 : vector<1x4x4xf32>
    %124 = math.exp %123 : vector<1x4x4xf32>
    %cst_36 = arith.constant dense<0.000000e+00> : vector<1x4xf32>
    %125 = vector.multi_reduction <add>, %124, %cst_36 [2] : vector<1x4x4xf32> to vector<1x4xf32>
    %126 = vector.shape_cast %125 : vector<1x4xf32> to vector<1x4x1xf32>
    %127 = tpu.reciprocal %126 {approx = true} : vector<1x4x1xf32> -> vector<1x4x1xf32>
    %128 = vector.broadcast %127 : vector<1x4x1xf32> to vector<1x4x4xf32>
    %129 = arith.mulf %124, %128 : vector<1x4x4xf32>
    %130 = arith.truncf %129 : vector<1x4x4xf32> to vector<1x4x4xbf16>
    %131 = arith.truncf %112 : vector<1x4x8xf32> to vector<1x4x8xbf16>
    "tpu.trace_start"() <{level = 10 : i32, message = "wts,wsd->wtd"}> : () -> ()
    %cst_37 = arith.constant dense<0.000000e+00> : vector<1x4x8xf32>
    %132 = tpu.matmul %130, %131, %cst_37 {dimension_numbers = #tpu.dot_dimension_numbers<[2], [1], [1], [2], [0, 0, 0, 1, 1, 2], [0], [0]>} : vector<1x4x4xbf16>, vector<1x4x8xbf16>, vector<1x4x8xf32> -> vector<1x4x8xf32>
    "tpu.trace_stop"() : () -> ()
    %133 = tpu.concatenate %57, %82, %107, %132 in 2 : vector<1x4x8xf32>, vector<1x4x8xf32>, vector<1x4x8xf32>, vector<1x4x8xf32> -> vector<1x4x32xf32>
    %134 = vector.shape_cast %133 : vector<1x4x32xf32> to vector<4x32xf32>
    %c0_38 = arith.constant 0 : index
    %c0_39 = arith.constant 0 : index
    %135 = vector.load %arg7[%c0_38, %c0_39] : memref<32x32xf32, #tpu.memory_space<vmem>>, vector<32x32xf32>
    %136 = arith.truncf %134 : vector<4x32xf32> to vector<4x32xbf16>
    %137 = arith.truncf %135 : vector<32x32xf32> to vector<32x32xbf16>
    %cst_40 = arith.constant dense<0.000000e+00> : vector<4x32xf32>
    %138 = tpu.matmul %136, %137, %cst_40 {dimension_numbers = #tpu.dot_dimension_numbers<[1], [0], [0], [1], [0, 0, 1, 1], [], []>} : vector<4x32xbf16>, vector<32x32xbf16>, vector<4x32xf32> -> vector<4x32xf32>
    %c0_41 = arith.constant 0 : index
    %c0_42 = arith.constant 0 : index
    %139 = vector.load %arg8[%c0_41, %c0_42] : memref<1x32xf32, #tpu.memory_space<vmem>>, vector<1x32xf32>
    %140 = vector.broadcast %139 : vector<1x32xf32> to vector<4x32xf32>
    %141 = arith.addf %138, %140 : vector<4x32xf32>
    %142 = arith.addf %141, %1 : vector<4x32xf32>
    %c0_43 = arith.constant 0 : index
    %c0_44 = arith.constant 0 : index
    %143 = vector.load %arg9[%c0_43, %c0_44] : memref<1x32xf32, #tpu.memory_space<vmem>>, vector<1x32xf32>
    %c0_45 = arith.constant 0 : index
    %c0_46 = arith.constant 0 : index
    %144 = vector.load %arg10[%c0_45, %c0_46] : memref<1x32xf32, #tpu.memory_space<vmem>>, vector<1x32xf32>
    %cst_47 = arith.constant dense<0.000000e+00> : vector<4xf32>
    %145 = vector.multi_reduction <add>, %142, %cst_47 [1] : vector<4x32xf32> to vector<4xf32>
    %146 = vector.shape_cast %145 : vector<4xf32> to vector<4x1xf32>
    %cst_48 = arith.constant 3.200000e+01 : f32
    %147 = vector.broadcast %cst_48 : f32 to vector<4x1xf32>
    %148 = arith.divf %146, %147 : vector<4x1xf32>
    %149 = vector.broadcast %148 : vector<4x1xf32> to vector<4x32xf32>
    %150 = arith.subf %142, %149 : vector<4x32xf32>
    %151 = arith.mulf %150, %150 : vector<4x32xf32>
    %cst_49 = arith.constant dense<0.000000e+00> : vector<4xf32>
    %152 = vector.multi_reduction <add>, %151, %cst_49 [1] : vector<4x32xf32> to vector<4xf32>
    %153 = vector.shape_cast %152 : vector<4xf32> to vector<4x1xf32>
    %cst_50 = arith.constant 3.200000e+01 : f32
    %154 = vector.broadcast %cst_50 : f32 to vector<4x1xf32>
    %155 = arith.divf %153, %154 : vector<4x1xf32>
    %cst_51 = arith.constant 9.99999974E-6 : f32
    %156 = vector.broadcast %cst_51 : f32 to vector<4x1xf32>
    %157 = arith.addf %155, %156 : vector<4x1xf32>
    %158 = math.rsqrt %157 : vector<4x1xf32>
    %159 = vector.broadcast %158 : vector<4x1xf32> to vector<4x32xf32>
    %160 = arith.mulf %150, %159 : vector<4x32xf32>
    %161 = vector.broadcast %143 : vector<1x32xf32> to vector<4x32xf32>
    %162 = arith.mulf %160, %161 : vector<4x32xf32>
    %163 = vector.broadcast %144 : vector<1x32xf32> to vector<4x32xf32>
    %164 = arith.addf %162, %163 : vector<4x32xf32>
    %c0_52 = arith.constant 0 : index
    %c0_53 = arith.constant 0 : index
    %165 = vector.load %arg11[%c0_52, %c0_53] : memref<32x128xf32, #tpu.memory_space<vmem>>, vector<32x128xf32>
    %166 = arith.truncf %164 : vector<4x32xf32> to vector<4x32xbf16>
    %167 = arith.truncf %165 : vector<32x128xf32> to vector<32x128xbf16>
    %cst_54 = arith.constant dense<0.000000e+00> : vector<4x128xf32>
    %168 = tpu.matmul %166, %167, %cst_54 {dimension_numbers = #tpu.dot_dimension_numbers<[1], [0], [0], [1], [0, 0, 1, 1], [], []>} : vector<4x32xbf16>, vector<32x128xbf16>, vector<4x128xf32> -> vector<4x128xf32>
    %c0_55 = arith.constant 0 : index
    %c0_56 = arith.constant 0 : index
    %169 = vector.load %arg12[%c0_55, %c0_56] : memref<1x128xf32, #tpu.memory_space<vmem>>, vector<1x128xf32>
    %170 = vector.broadcast %169 : vector<1x128xf32> to vector<4x128xf32>
    %171 = arith.addf %168, %170 : vector<4x128xf32>
    %cst_57 = arith.constant 5.000000e-01 : f32
    %172 = vector.broadcast %cst_57 : f32 to vector<4x128xf32>
    %173 = arith.mulf %172, %171 : vector<4x128xf32>
    %cst_58 = arith.constant 0.707106769 : f32
    %174 = vector.broadcast %cst_58 : f32 to vector<4x128xf32>
    %175 = arith.mulf %171, %174 : vector<4x128xf32>
    %176 = math.erf %175 : vector<4x128xf32>
    %cst_59 = arith.constant 1.000000e+00 : f32
    %177 = vector.broadcast %cst_59 : f32 to vector<4x128xf32>
    %178 = arith.addf %177, %176 : vector<4x128xf32>
    %179 = arith.mulf %173, %178 : vector<4x128xf32>
    %c0_60 = arith.constant 0 : index
    %c0_61 = arith.constant 0 : index
    %180 = vector.load %arg13[%c0_60, %c0_61] : memref<128x32xf32, #tpu.memory_space<vmem>>, vector<128x32xf32>
    %181 = arith.truncf %179 : vector<4x128xf32> to vector<4x128xbf16>
    %182 = arith.truncf %180 : vector<128x32xf32> to vector<128x32xbf16>
    %cst_62 = arith.constant dense<0.000000e+00> : vector<4x32xf32>
    %183 = tpu.matmul %181, %182, %cst_62 {dimension_numbers = #tpu.dot_dimension_numbers<[1], [0], [0], [1], [0, 0, 1, 1], [], []>} : vector<4x128xbf16>, vector<128x32xbf16>, vector<4x32xf32> -> vector<4x32xf32>
    %c0_63 = arith.constant 0 : index
    %c0_64 = arith.constant 0 : index
    %184 = vector.load %arg14[%c0_63, %c0_64] : memref<1x32xf32, #tpu.memory_space<vmem>>, vector<1x32xf32>
    %185 = vector.broadcast %184 : vector<1x32xf32> to vector<4x32xf32>
    %186 = arith.addf %183, %185 : vector<4x32xf32>
    %187 = arith.addf %186, %142 : vector<4x32xf32>
    %188 = vector.shape_cast %187 : vector<4x32xf32> to vector<1x4x32xf32>
    %c0_65 = arith.constant 0 : index
    %c0_66 = arith.constant 0 : index
    %c0_67 = arith.constant 0 : index
    %189 = vector.load %arg15[%c0_65, %c0_66, %c0_67] : memref<1x4x32xf32, #tpu.memory_space<vmem>>, vector<1x4x32xf32>
    tpu.vector_store %arg15[%c0_65, %c0_66, %c0_67], %188 {strides = array<i32>} : memref<1x4x32xf32, #tpu.memory_space<vmem>>, vector<1x4x32xf32>,
    return
  }
  func.func @transform_0(%arg0: i32) -> (i32, i32, i32) {
    %c0_i32 = arith.constant 0 : i32
    %c0_i32_0 = arith.constant 0 : i32
    %c0_i32_1 = arith.constant 0 : i32
    return %arg0, %c0_i32, %c0_i32_0 : i32, i32, i32
  }
  func.func @transform_1(%arg0: i32) -> (i32, i32) {
    %c0_i32 = arith.constant 0 : i32
    %c0_i32_0 = arith.constant 0 : i32
    %c0_i32_1 = arith.constant 0 : i32
    return %c0_i32, %c0_i32_0 : i32, i32
  }
  func.func @transform_2(%arg0: i32) -> (i32, i32) {
    %c0_i32 = arith.constant 0 : i32
    %c0_i32_0 = arith.constant 0 : i32
    %c0_i32_1 = arith.constant 0 : i32
    return %c0_i32, %c0_i32_0 : i32, i32
  }
  func.func @transform_3(%arg0: i32) -> (i32, i32) {
    %c0_i32 = arith.constant 0 : i32
    %c0_i32_0 = arith.constant 0 : i32
    %c0_i32_1 = arith.constant 0 : i32
    return %c0_i32, %c0_i32_0 : i32, i32
  }
  func.func @transform_4(%arg0: i32) -> (i32, i32) {
    %c0_i32 = arith.constant 0 : i32
    %c0_i32_0 = arith.constant 0 : i32
    %c0_i32_1 = arith.constant 0 : i32
    return %c0_i32, %c0_i32_0 : i32, i32
  }
  func.func @transform_5(%arg0: i32) -> (i32, i32, i32) {
    %c0_i32 = arith.constant 0 : i32
    %c0_i32_0 = arith.constant 0 : i32
    %c0_i32_1 = arith.constant 0 : i32
    %c0_i32_2 = arith.constant 0 : i32
    return %c0_i32, %c0_i32_0, %c0_i32_1 : i32, i32, i32
  }
  func.func @transform_6(%arg0: i32) -> (i32, i32) {
    %c0_i32 = arith.constant 0 : i32
    %c0_i32_0 = arith.constant 0 : i32
    %c0_i32_1 = arith.constant 0 : i32
    return %c0_i32, %c0_i32_0 : i32, i32
  }
  func.func @transform_7(%arg0: i32) -> (i32, i32) {
    %c0_i32 = arith.constant 0 : i32
    %c0_i32_0 = arith.constant 0 : i32
    %c0_i32_1 = arith.constant 0 : i32
    return %c0_i32, %c0_i32_0 : i32, i32
  }
  func.func @transform_8(%arg0: i32) -> (i32, i32) {
    %c0_i32 = arith.constant 0 : i32
    %c0_i32_0 = arith.constant 0 : i32
    %c0_i32_1 = arith.constant 0 : i32
    return %c0_i32, %c0_i32_0 : i32, i32
  }
  func.func @transform_9(%arg0: i32) -> (i32, i32) {
    %c0_i32 = arith.constant 0 : i32
    %c0_i32_0 = arith.constant 0 : i32
    %c0_i32_1 = arith.constant 0 : i32
    return %c0_i32, %c0_i32_0 : i32, i32
  }
  func.func @transform_10(%arg0: i32) -> (i32, i32) {
    %c0_i32 = arith.constant 0 : i32
    %c0_i32_0 = arith.constant 0 : i32
    %c0_i32_1 = arith.constant 0 : i32
    return %c0_i32, %c0_i32_0 : i32, i32
  }
  func.func @transform_11(%arg0: i32) -> (i32, i32) {
    %c0_i32 = arith.constant 0 : i32
    %c0_i32_0 = arith.constant 0 : i32
    %c0_i32_1 = arith.constant 0 : i32
    return %c0_i32, %c0_i32_0 : i32, i32
  }
  func.func @transform_12(%arg0: i32) -> (i32, i32) {
    %c0_i32 = arith.constant 0 : i32
    %c0_i32_0 = arith.constant 0 : i32
    %c0_i32_1 = arith.constant 0 : i32
    return %c0_i32, %c0_i32_0 : i32, i32
  }
  func.func @transform_13(%arg0: i32) -> (i32, i32) {
    %c0_i32 = arith.constant 0 : i32
    %c0_i32_0 = arith.constant 0 : i32
    %c0_i32_1 = arith.constant 0 : i32
    return %c0_i32, %c0_i32_0 : i32, i32
  }
  func.func @transform_14(%arg0: i32) -> (i32, i32, i32) {
    %c0_i32 = arith.constant 0 : i32
    %c0_i32_0 = arith.constant 0 : i32
    %c0_i32_1 = arith.constant 0 : i32
    return %arg0, %c0_i32, %c0_i32_0 : i32, i32, i32
  }
}

</mosaic_0001>

<llo_original>
// kernel: _lambda_.5
$region0: #{_lambda_.5}
  #allocation0 [shape = 'u32[]', space=smem, size = 0x4, offset = 0x4, fixed_abs, tag = 'smem constant byte address 0x4 - core index']
  #allocation1 [shape = 'u32[72,128]{1,0:T(1,128)}', space=vmem, size = 0x9000, scoped, tag = 'internal scratch']
  %s0 = inlined_call_operand.vmem [shape: f32[32,48], index: 0, kind: input, shape index: {}]
  %s1 = inlined_call_operand.vmem [shape: f32[48,16], index: 1, kind: input, shape index: {}]
  %s2 = inlined_call_operand.vmem [shape: f32[1,16], index: 2, kind: input, shape index: {}]
  %s3 = inlined_call_operand.vmem [shape: f32[1,16], index: 3, kind: input, shape index: {}]
  %s4 = inlined_call_operand.vmem [shape: f32[1,16], index: 4, kind: input, shape index: {}]
  %s5 = inlined_call_operand.vmem [shape: f32[32,16], index: 5, kind: output, shape index: {}]
  %s6 = sld [smem:[#allocation0]]
  $region53: #{_lambda_.5} parent=0
    _
  %s8 = ssub.s32 1, %s6
  %s9 = scalar_select 0, %s8, %s6
  loop: start=0, step=1, limit=4
  $region2: #{_lambda_.5} parent=0 // loop_pre_header
    _
  $region3: #{_lambda_.5} parent=0 // loop_header
    %s11 = sphi 0, %s15
    %p12 = scmp.ge.s32.totalorder %s11, 4
    %s21 = sphi 0, %s23
    %s24 = sphi 0, %s21
    %s25 = sphi 0, %s24
    %s41 = sphi 0, %s25
    %s45 = sphi 0, %s45
    %s47 = sphi 0, %s45
    %s48 = sphi 0, %s47
    %s62 = sphi 0, %s48
    %s66 = sphi 0, %s66
    %s68 = sphi 0, %s66
    %s69 = sphi 0, %s68
    %s83 = sphi 0, %s69
    %s87 = sphi 0, %s87
    %s89 = sphi 0, %s87
    %s90 = sphi 0, %s89
    %s104 = sphi 0, %s90
    %s108 = sphi 0, %s108
    %s110 = sphi 0, %s108
    %s111 = sphi 0, %s110
    %s125 = sphi 0, %s111
    %s131 = sphi 0, %s133
    %s134 = sphi 0, %s131
    %s135 = sphi 0, %s134
    %s151 = sphi 0, %s135
  $region4: #{_lambda_.5} parent=0 // loop_header_branch
    %14 = sbr.rel (%p12) target = $region8
  $region5: #{_lambda_.5} parent=0 // loop_body
    %s16 = ssub.s32 %s11, 1
    %s17 = ssub.s32 %s11, 2
    %s18 = sadd.s32 %s11, 1
    %s19 = ssub.s32 %s11, %s18
    %p20 = scmp.eq.s32.totalorder %s19, 0
    %s22 = sadd.s32 %s21, 1
    %s23 = scalar_select %p20, %s21, %s22
    %p26 = pneg %p20
    %p27 = scmp.eq.s32.totalorder %s11, 1
    %p28 = por %p26, %p27
    %p29 = scmp.ne.s32.totalorder %s21, %s24
    %p30 = scmp.eq.s32.totalorder %s11, 0
    %p31 = por %p29, %p30
    %p32 = scmp.ne.s32.totalorder %s21, %s24
    %p33 = scmp.eq.s32.totalorder %s16, 1
    %p34 = por %p32, %p33
    %p35 = scmp.ne.s32.totalorder %s24, %s25
    %p36 = scmp.eq.s32.totalorder %s16, 0
    %p37 = por %p35, %p36
    %p38 = scmp.ne.s32.totalorder %s24, %s25
    %p39 = scmp.eq.s32.totalorder %s17, 1
    %p40 = por %p38, %p39
    %p42 = scmp.ne.s32.totalorder %s25, %s41
    %p43 = scmp.eq.s32.totalorder %s17, 0
    %p44 = por %p42, %p43
    %s46 = sadd.s32 %s45, 1
    %p49 = scmp.eq.s32.totalorder %s11, 1
    %p50 = scmp.ne.s32.totalorder %s45, %s47
    %p51 = scmp.eq.s32.totalorder %s11, 0
    %p52 = por %p50, %p51
    %p53 = scmp.ne.s32.totalorder %s45, %s47
    %p54 = scmp.eq.s32.totalorder %s16, 1
    %p55 = por %p53, %p54
    %p56 = scmp.ne.s32.totalorder %s47, %s48
    %p57 = scmp.eq.s32.totalorder %s16, 0
    %p58 = por %p56, %p57
    %p59 = scmp.ne.s32.totalorder %s47, %s48
    %p60 = scmp.eq.s32.totalorder %s17, 1
    %p61 = por %p59, %p60
    %p63 = scmp.ne.s32.totalorder %s48, %s62
    %p64 = scmp.eq.s32.totalorder %s17, 0
    %p65 = por %p63, %p64
    %s67 = sadd.s32 %s66, 1
    %p70 = scmp.eq.s32.totalorder %s11, 1
    %p71 = scmp.ne.s32.totalorder %s66, %s68
    %p72 = scmp.eq.s32.totalorder %s11, 0
    %p73 = por %p71, %p72
    %p74 = scmp.ne.s32.totalorder %s66, %s68
    %p75 = scmp.eq.s32.totalorder %s16, 1
    %p76 = por %p74, %p75
    %p77 = scmp.ne.s32.totalorder %s68, %s69
    %p78 = scmp.eq.s32.totalorder %s16, 0
    %p79 = por %p77, %p78
    %p80 = scmp.ne.s32.totalorder %s68, %s69
    %p81 = scmp.eq.s32.totalorder %s17, 1
    %p82 = por %p80, %p81
    %p84 = scmp.ne.s32.totalorder %s69, %s83
    %p85 = scmp.eq.s32.totalorder %s17, 0
    %p86 = por %p84, %p85
    %s88 = sadd.s32 %s87, 1
    %p91 = scmp.eq.s32.totalorder %s11, 1
    %p92 = scmp.ne.s32.totalorder %s87, %s89
    %p93 = scmp.eq.s32.totalorder %s11, 0
    %p94 = por %p92, %p93
    %p95 = scmp.ne.s32.totalorder %s87, %s89
    %p96 = scmp.eq.s32.totalorder %s16, 1
    %p97 = por %p95, %p96
    %p98 = scmp.ne.s32.totalorder %s89, %s90
    %p99 = scmp.eq.s32.totalorder %s16, 0
    %p100 = por %p98, %p99
    %p101 = scmp.ne.s32.totalorder %s89, %s90
    %p102 = scmp.eq.s32.totalorder %s17, 1
    %p103 = por %p101, %p102
    %p105 = scmp.ne.s32.totalorder %s90, %s104
    %p106 = scmp.eq.s32.totalorder %s17, 0
    %p107 = por %p105, %p106
    %s109 = sadd.s32 %s108, 1
    %p112 = scmp.eq.s32.totalorder %s11, 1
    %p113 = scmp.ne.s32.totalorder %s108, %s110
    %p114 = scmp.eq.s32.totalorder %s11, 0
    %p115 = por %p113, %p114
    %p116 = scmp.ne.s32.totalorder %s108, %s110
    %p117 = scmp.eq.s32.totalorder %s16, 1
    %p118 = por %p116, %p117
    %p119 = scmp.ne.s32.totalorder %s110, %s111
    %p120 = scmp.eq.s32.totalorder %s16, 0
    %p121 = por %p119, %p120
    %p122 = scmp.ne.s32.totalorder %s110, %s111
    %p123 = scmp.eq.s32.totalorder %s17, 1
    %p124 = por %p122, %p123
    %p126 = scmp.ne.s32.totalorder %s111, %s125
    %p127 = scmp.eq.s32.totalorder %s17, 0
    %p128 = por %p126, %p127
    %s129 = ssub.s32 %s11, %s18
    %p130 = scmp.eq.s32.totalorder %s129, 0
    %s132 = sadd.s32 %s131, 1
    %s133 = scalar_select %p130, %s131, %s132
    %p136 = pneg %p130
    %p137 = scmp.eq.s32.totalorder %s11, 1
    %p138 = por %p136, %p137
    %p139 = scmp.ne.s32.totalorder %s131, %s134
    %p140 = scmp.eq.s32.totalorder %s11, 0
    %p141 = por %p139, %p140
    %p142 = scmp.ne.s32.totalorder %s131, %s134
    %p143 = scmp.eq.s32.totalorder %s16, 1
    %p144 = por %p142, %p143
    %p145 = scmp.ne.s32.totalorder %s134, %s135
    %p146 = scmp.eq.s32.totalorder %s16, 0
    %p147 = por %p145, %p146
    %p148 = scmp.ne.s32.totalorder %s134, %s135
    %p149 = scmp.eq.s32.totalorder %s17, 1
    %p150 = por %p148, %p149
    %p152 = scmp.ne.s32.totalorder %s135, %s151
    %p153 = scmp.eq.s32.totalorder %s17, 0
    %p154 = por %p152, %p153
    %p155 = scmp.le.s32.totalorder 1, %s11
    %p156 = scmp.lt.s32.totalorder %s11, 3
    %p157 = pnand %p155, %p156
    %p158 = pneg %p157
    // Predicated region
    $region9: #{_lambda_.5} parent=5 // pred_check
      _
    $region10: #{_lambda_.5} parent=5 // pred_check_branch
      %160 = sbr.rel (%p157) target = $region12
    $region11: #{_lambda_.5} parent=5 // pred_region
      %s161 = ssub.s32 %s11, 1
      // Predicated region
      $region13: #{_lambda_.5} parent=11 // pred_check
        %p162 = pneg %p58
      $region14: #{_lambda_.5} parent=11 // pred_check_branch
        %164 = sbr.rel (%p162) target = $region16
      $region15: #{_lambda_.5} parent=11 // pred_region
        _
      $region16: #{_lambda_.5} parent=11 // pred_fallthru
        _
      // Predicated region
      $region17: #{_lambda_.5} parent=11 // pred_check
        %p165 = pneg %p79
      $region18: #{_lambda_.5} parent=11 // pred_check_branch
        %167 = sbr.rel (%p165) target = $region20
      $region19: #{_lambda_.5} parent=11 // pred_region
        _
      $region20: #{_lambda_.5} parent=11 // pred_fallthru
        _
      // Predicated region
      $region21: #{_lambda_.5} parent=11 // pred_check
        %p168 = pneg %p100
      $region22: #{_lambda_.5} parent=11 // pred_check_branch
        %170 = sbr.rel (%p168) target = $region24
      $region23: #{_lambda_.5} parent=11 // pred_region
        _
      $region24: #{_lambda_.5} parent=11 // pred_fallthru
        _
      // Predicated region
      $region25: #{_lambda_.5} parent=11 // pred_check
        %p171 = pneg %p121
      $region26: #{_lambda_.5} parent=11 // pred_check_branch
        %173 = sbr.rel (%p171) target = $region28
      $region27: #{_lambda_.5} parent=11 // pred_region
        _
      $region28: #{_lambda_.5} parent=11 // pred_fallthru
        _
    $region12: #{_lambda_.5} parent=5 // pred_fallthru
      _
    %p174 = scmp.lt.s32.totalorder %s11, 2
    // Predicated region
    $region29: #{_lambda_.5} parent=5 // pred_check
      %p175 = pneg %p174
    $region30: #{_lambda_.5} parent=5 // pred_check_branch
      %177 = sbr.rel (%p175) target = $region32
    $region31: #{_lambda_.5} parent=5 // pred_region
      // Predicated region
      $region33: #{_lambda_.5} parent=31 // pred_check
        %p178 = pneg %p31
      $region34: #{_lambda_.5} parent=31 // pred_check_branch
        %180 = sbr.rel (%p178) target = $region36
      $region35: #{_lambda_.5} parent=31 // pred_region
        %s181 = smul.u32 2, %s11
        %p182 = scmp.lt.s32.totalorder %s181, 3
        %s183 = scalar_select %p182, %s181, 3
        %s184 = smul.addr %s183, 8
        %s185 = scalar_lea.vmem %s0, %s184
        %s186 = smul.u32 2, %s11
      $region36: #{_lambda_.5} parent=31 // pred_fallthru
        _
    $region32: #{_lambda_.5} parent=5 // pred_fallthru
      _
    %p187 = scmp.le.s32.totalorder 1, %s11
    %p188 = scmp.lt.s32.totalorder %s11, 3
    %p189 = pnand %p187, %p188
    %p190 = pneg %p189
    // Predicated region
    $region37: #{_lambda_.5} parent=5 // pred_check
      _
    $region38: #{_lambda_.5} parent=5 // pred_check_branch
      %192 = sbr.rel (%p189) target = $region40
    $region39: #{_lambda_.5} parent=5 // pred_region
      %s193 = ssub.s32 %s11, 1
      %s194 = smul.u32 2, %s16
      %p195 = scmp.lt.s32.totalorder %s194, 3
      %s196 = scalar_select %p195, %s194, 3
      %s197 = smul.addr %s196, 8
      %s198 = scalar_lea.vmem %s0, %s197
      %p199 = pneg %p37
      %p200 = pneg %p34
      %p201 = pneg %p58
      %p202 = pneg %p55
      %p203 = pneg %p79
      %p204 = pneg %p76
      %p205 = pneg %p100
      %p206 = pneg %p97
      %p207 = pneg %p121
      %p208 = pneg %p118
      %p209 = pneg %p147
      %p210 = pneg %p144
      %s211 = smul.u32 2, %s16
      %p212 = scmp.lt.s32.totalorder %s211, 3
      %s213 = scalar_select %p212, %s211, 3
      %s214 = smul.addr %s213, 8
      %s215 = scalar_lea.vmem %s5, %s214
      %s216 = smul.u32 2, %s16
      %p217 = scmp.lt.s32.totalorder %s216, 3
      %s218 = scalar_select %p217, %s216, 3
      %s219 = smul.addr %s218, 8
      %s220 = scalar_lea.vmem %s0, %s219
      %s221 = smul.u32 2, %s16
      %s222 = smul.u32 2, %s16
      %p223 = scmp.lt.s32.totalorder %s222, 3
      %s224 = scalar_select %p223, %s222, 3
      %s225 = smul.addr %s224, 8
      %s226 = scalar_lea.vmem %s5, %s225
      %s227 = smul.u32 2, %s16
      %v229 = vld [vmem:[%s220] sm:$0xff]
      %v230 = vld [vmem:[%s220 + $0x8] sm:$0xff]
      %v231 = vld [vmem:[%s1] sm:$0xff]
      %v232 = vld [vmem:[%s1 + $0x8] sm:$0xff]
      %v233 = vld [vmem:[%s1 + $0x10] sm:$0xff]
      %v234 = vld [vmem:[%s1 + $0x18] sm:$0xff]
      %v235 = vld [vmem:[%s1 + $0x20] sm:$0xff]
      %v236 = vld [vmem:[%s1 + $0x28] sm:$0xff]
      %v237 = vpack.c.bf16 %v230, %v229
      %v238 = vpack.c.bf16 %v232, %v231
      %v239 = vpack.c.bf16 %v234, %v233
      %v240 = vpack.c.bf16 %v236, %v235
      %v241 = vld [vmem:[%s2] sm:$0x1]
      %v243 = vperm.slane %v241, 0
      %vm245 = vcmask 392192
      %v247 = vsel %vm245, %v237, 0
      %249 = vmatpush.bf16.msra.mxu0 0
      %250 = vmatpush.bf16.msra.mxu0 0
      %251 = vmatpush.bf16.msra.mxu0 0
      %252 = vmatpush.bf16.msra.mxu0 0
      %253 = vmatpush.bf16.msra.mxu0 0
      %254 = vmatpush.bf16.msra.mxu0 %v240
      %255 = vmatpush.bf16.msra.mxu0 %v239
      %256 = vmatpush.bf16.msra.mxu0 %v238
      %257 = vmatmul.bf16.gmra.mxu0 %v247
      %v258 = vpop.f32.mrf.mxu0
      %v259 = vadd.f32 %v243, %v258
      %v260 = vpop.f32.mrf.mxu0
      %v261 = vadd.f32 %v243, %v260
      %262 = vdwg.mxu0
      %v263 = vld [vmem:[%s3] sm:$0x1]
      %v264 = vld [vmem:[%s4] sm:$0x1]
      %vm265 = vcmask 130048
      %v266 = vsel %vm265, %v259, 0.0
      %267 = vadd.xlane.f32.xlu0 %v266
      %v268 = vpop.xlane.xlu0 %267
      %v269 = vsel %vm265, %v261, 0.0
      %270 = vadd.xlane.f32.xlu0 %v269
      %v271 = vpop.xlane.xlu0 %270
      %v272 = vrcp.pop 16.0
      %v273 = vmul.f32 16.0, %v272
      %v274 = vsub.f32 1.0, %v273
      %v275 = vmul.f32 %v272, %v274
      %v276 = vadd.f32 %v272, %v275
      %vm277 = vweird.f32 %v272
      %v278 = vsel %vm277, %v272, %v276
      %v279 = vmul.f32 %v268, %v278
      %v280 = vmul.f32 %v271, %v278
      %v281 = vsub.f32 %v259, %v279
      %v282 = vsub.f32 %v261, %v280
      %v283 = vmul.f32 %v281, %v281
      %v284 = vmul.f32 %v282, %v282
      %v285 = vsel %vm265, %v283, 0.0
      %286 = vadd.xlane.f32.xlu0 %v285
      %v287 = vpop.xlane.xlu0 %286
      %v288 = vsel %vm265, %v284, 0.0
      %289 = vadd.xlane.f32.xlu0 %v288
      %v290 = vpop.xlane.xlu0 %289
      %v291 = vmul.f32 %v287, %v278
      %v292 = vmul.f32 %v290, %v278
      %v293 = vadd.f32 %v291, 1e-05
      %v294 = vadd.f32 %v292, 1e-05
      %v295 = vrsqrt.pop %v293
      %v296 = vmul.f32 %v295, %v293
      %v297 = vmul.f32 %v296, %v295
      %v298 = vmul.f32 0.5, %v297
      %v299 = vsub.f32 1.5, %v298
      %v300 = vmul.f32 %v295, %v299
      %vm301 = vweird.f32 %v293
      %vm302 = vweird.f32 %v295
      %vm303 = vmor %vm301, %vm302
      %v304 = vsel %vm303, %v295, %v300
      %v305 = vrsqrt.pop %v294
      %v306 = vmul.f32 %v305, %v294
      %v307 = vmul.f32 %v306, %v305
      %v308 = vmul.f32 0.5, %v307
      %v309 = vsub.f32 1.5, %v308
      %v310 = vmul.f32 %v305, %v309
      %vm311 = vweird.f32 %v294
      %vm312 = vweird.f32 %v305
      %vm313 = vmor %vm311, %vm312
      %v314 = vsel %vm313, %v305, %v310
      %v315 = vmul.f32 %v281, %v304
      %v316 = vmul.f32 %v282, %v314
      %v318 = vperm.slane %v263, 0
      %v320 = vmul.f32 %v315, %v318
      %v321 = vmul.f32 %v316, %v318
      %v323 = vperm.slane %v264, 0
      %v325 = vadd.f32 %v320, %v323
      %v326 = vadd.f32 %v321, %v323
      %327 = vst.msk [vmem:[%s226] sm:$0xff] %vm265, %v325
      %328 = vst.msk [vmem:[%s226 + $0x8] sm:$0xff] %vm265, %v326
      %s329 = smul.u32 2, %s16
      %p330 = scmp.lt.s32.totalorder %s329, 3
      %s331 = scalar_select %p330, %s329, 3
      %s332 = smul.addr %s331, 8
      %s333 = scalar_lea.vmem %s5, %s332
      // Predicated region
      $region41: #{_lambda_.5} parent=39 // pred_check
        %p334 = pneg %p144
      $region42: #{_lambda_.5} parent=39 // pred_check_branch
        %336 = sbr.rel (%p334) target = $region44
      $region43: #{_lambda_.5} parent=39 // pred_region
        %s337 = smul.u32 2, %s16
      $region44: #{_lambda_.5} parent=39 // pred_fallthru
        _
    $region40: #{_lambda_.5} parent=5 // pred_fallthru
      _
    %p338 = scmp.le.s32.totalorder 2, %s11
    // Predicated region
    $region45: #{_lambda_.5} parent=5 // pred_check
      %p339 = pneg %p338
    $region46: #{_lambda_.5} parent=5 // pred_check_branch
      %341 = sbr.rel (%p339) target = $region48
    $region47: #{_lambda_.5} parent=5 // pred_region
      %s342 = ssub.s32 %s11, 2
      // Predicated region
      $region49: #{_lambda_.5} parent=47 // pred_check
        %p343 = pneg %p150
      $region50: #{_lambda_.5} parent=47 // pred_check_branch
        %345 = sbr.rel (%p343) target = $region52
      $region51: #{_lambda_.5} parent=47 // pred_region
        %s346 = smul.u32 2, %s17
        %p347 = scmp.lt.s32.totalorder %s346, 3
        %s348 = scalar_select %p347, %s346, 3
        %s349 = smul.addr %s348, 8
        %s350 = scalar_lea.vmem %s5, %s349
      $region52: #{_lambda_.5} parent=47 // pred_fallthru
        _
    $region48: #{_lambda_.5} parent=5 // pred_fallthru
      _
  $region6: #{_lambda_.5} parent=0 // loop_footer
    %s15 = sadd.s32 1, %s11
  $region7: #{_lambda_.5} parent=0 // loop_footer_branch
    %10 = sbr.rel target = $region3
  $region8: #{_lambda_.5} parent=0 // loop_exit
    _

// kernel: _lambda_.7
$region0: #{_lambda_.7}
  #allocation0 [shape = 'u32[]', space=smem, size = 0x4, offset = 0x4, fixed_abs, tag = 'smem constant byte address 0x4 - core index']
  #allocation1 [shape = 'u32[72,128]{1,0:T(1,128)}', space=vmem, size = 0x9000, scoped, tag = 'internal scratch']
  %s0 = inlined_call_operand.vmem [shape: f32[8,64], index: 0, kind: input, shape index: {}]
  %s1 = inlined_call_operand.vmem [shape: f32[1,64], index: 1, kind: input, shape index: {}]
  %s2 = inlined_call_operand.vmem [shape: f32[1,64], index: 2, kind: input, shape index: {}]
  %s3 = inlined_call_operand.vmem [shape: f32[64,32], index: 3, kind: input, shape index: {}]
  %s4 = inlined_call_operand.vmem [shape: f32[8,32], index: 4, kind: output, shape index: {}]
  %s5 = sld [smem:[#allocation0]]
  $region26: #{_lambda_.7} parent=0
    _
  %s7 = ssub.s32 1, %s5
  %s8 = scalar_select 0, %s7, %s5
  // Predicated region
  $region2: #{_lambda_.7} parent=0 // pred_check
    _
  $region3: #{_lambda_.7} parent=0 // pred_check_branch
    %10 = sbr.rel (0) target = $region5
  $region4: #{_lambda_.7} parent=0 // pred_region
    _
  $region5: #{_lambda_.7} parent=0 // pred_fallthru
    _
  // Predicated region
  $region6: #{_lambda_.7} parent=0 // pred_check
    _
  $region7: #{_lambda_.7} parent=0 // pred_check_branch
    %12 = sbr.rel (0) target = $region9
  $region8: #{_lambda_.7} parent=0 // pred_region
    _
  $region9: #{_lambda_.7} parent=0 // pred_fallthru
    _
  // Predicated region
  $region10: #{_lambda_.7} parent=0 // pred_check
    _
  $region11: #{_lambda_.7} parent=0 // pred_check_branch
    %14 = sbr.rel (0) target = $region13
  $region12: #{_lambda_.7} parent=0 // pred_region
    _
  $region13: #{_lambda_.7} parent=0 // pred_fallthru
    _
  // Predicated region
  $region14: #{_lambda_.7} parent=0 // pred_check
    _
  $region15: #{_lambda_.7} parent=0 // pred_check_branch
    %16 = sbr.rel (0) target = $region17
  $region16: #{_lambda_.7} parent=0 // pred_region
    _
  $region17: #{_lambda_.7} parent=0 // pred_fallthru
    _
  %v18 = vld [vmem:[%s0] sm:$0xff]
  %v19 = vld [vmem:[%s1] sm:$0x1]
  %v20 = vld [vmem:[%s2] sm:$0x1]
  %vm21 = vcmask 523264
  %v22 = vsel %vm21, %v18, 0.0
  %23 = vadd.xlane.f32.xlu0 %v22
  %v24 = vpop.xlane.xlu0 %23
  %v25 = vrcp.pop 64.0
  %v26 = vmul.f32 64.0, %v25
  %v27 = vsub.f32 1.0, %v26
  %v28 = vmul.f32 %v25, %v27
  %v29 = vadd.f32 %v25, %v28
  %vm30 = vweird.f32 %v25
  %v31 = vsel %vm30, %v25, %v29
  %v32 = vmul.f32 %v24, %v31
  %v33 = vsub.f32 %v18, %v32
  %v34 = vmul.f32 %v33, %v33
  %v35 = vsel %vm21, %v34, 0.0
  %36 = vadd.xlane.f32.xlu0 %v35
  %v37 = vpop.xlane.xlu0 %36
  %v38 = vmul.f32 %v37, %v31
  %v39 = vadd.f32 %v38, 1e-05
  %v40 = vrsqrt.pop %v39
  %v41 = vmul.f32 %v40, %v39
  %v42 = vmul.f32 %v41, %v40
  %v43 = vmul.f32 0.5, %v42
  %v44 = vsub.f32 1.5, %v43
  %v45 = vmul.f32 %v40, %v44
  %vm46 = vweird.f32 %v39
  %vm47 = vweird.f32 %v40
  %vm48 = vmor %vm46, %vm47
  %v49 = vsel %vm48, %v40, %v45
  %v50 = vmul.f32 %v33, %v49
  %v52 = vperm.slane %v19, 0
  %v54 = vmul.f32 %v50, %v52
  %v56 = vperm.slane %v20, 0
  %v58 = vadd.f32 %v54, %v56
  %v59 = vld [vmem:[%s3] sm:$0xff]
  %v60 = vld [vmem:[%s3 + $0x8] sm:$0xff]
  %v61 = vld [vmem:[%s3 + $0x10] sm:$0xff]
  %v62 = vld [vmem:[%s3 + $0x18] sm:$0xff]
  %v63 = vld [vmem:[%s3 + $0x20] sm:$0xff]
  %v64 = vld [vmem:[%s3 + $0x28] sm:$0xff]
  %v65 = vld [vmem:[%s3 + $0x30] sm:$0xff]
  %v66 = vld [vmem:[%s3 + $0x38] sm:$0xff]
  %v67 = vpack.c.bf16 %v58, %v58
  %v68 = vpack.c.bf16 %v60, %v59
  %v69 = vpack.c.bf16 %v62, %v61
  %v70 = vpack.c.bf16 %v64, %v63
  %v71 = vpack.c.bf16 %v66, %v65
  %v73 = vsel %vm21, %v67, 0
  %75 = vmatpush.bf16.msra.mxu0 0
  %76 = vmatpush.bf16.msra.mxu0 0
  %77 = vmatpush.bf16.msra.mxu0 0
  %78 = vmatpush.bf16.msra.mxu0 0
  %79 = vmatpush.bf16.msra.mxu0 %v71
  %80 = vmatpush.bf16.msra.mxu0 %v70
  %81 = vmatpush.bf16.msra.mxu0 %v69
  %82 = vmatpush.bf16.msra.mxu0 %v68
  %83 = vmatmul.bf16.gmra.mxu0 %v73
  %v84 = vpop.f32.mrf.mxu0
  %v85 = vadd.f32 0.0, %v84
  %v86 = vpop.f32.mrf.mxu0
  %87 = vdwg.mxu0
  %vm88 = vcmask 261120
  %89 = vst.msk [vmem:[%s4] sm:$0xff] %vm88, %v85
  // Predicated region
  $region18: #{_lambda_.7} parent=0 // pred_check
    _
  $region19: #{_lambda_.7} parent=0 // pred_check_branch
    %91 = sbr.rel (0) target = $region21
  $region20: #{_lambda_.7} parent=0 // pred_region
    _
  $region21: #{_lambda_.7} parent=0 // pred_fallthru
    _
  // Predicated region
  $region22: #{_lambda_.7} parent=0 // pred_check
    _
  $region23: #{_lambda_.7} parent=0 // pred_check_branch
    %93 = sbr.rel (0) target = $region25
  $region24: #{_lambda_.7} parent=0 // pred_region
    _
  $region25: #{_lambda_.7} parent=0 // pred_fallthru
    _

// kernel: _lambda_.6
$region0: #{_lambda_.6}
  #allocation0 [shape = 'u32[]', space=smem, size = 0x4, offset = 0x4, fixed_abs, tag = 'smem constant byte address 0x4 - core index']
  #allocation1 [shape = 'u32[72,128]{1,0:T(1,128)}', space=vmem, size = 0x9000, scoped, tag = 'internal scratch']
  %s0 = inlined_call_operand.vmem [shape: f32[8,4,16], index: 0, kind: input, shape index: {}]
  %s1 = inlined_call_operand.vmem [shape: f32[1,16], index: 1, kind: input, shape index: {}]
  %s2 = inlined_call_operand.vmem [shape: f32[1,16], index: 2, kind: input, shape index: {}]
  %s3 = inlined_call_operand.vmem [shape: f32[16,48], index: 3, kind: input, shape index: {}]
  %s4 = inlined_call_operand.vmem [shape: f32[1,48], index: 4, kind: input, shape index: {}]
  %s5 = inlined_call_operand.vmem [shape: f32[2,4,4], index: 5, kind: input, shape index: {}]
  %s6 = inlined_call_operand.vmem [shape: f32[16,16], index: 6, kind: input, shape index: {}]
  %s7 = inlined_call_operand.vmem [shape: f32[1,16], index: 7, kind: input, shape index: {}]
  %s8 = inlined_call_operand.vmem [shape: f32[1,16], index: 8, kind: input, shape index: {}]
  %s9 = inlined_call_operand.vmem [shape: f32[1,16], index: 9, kind: input, shape index: {}]
  %s10 = inlined_call_operand.vmem [shape: f32[16,64], index: 10, kind: input, shape index: {}]
  %s11 = inlined_call_operand.vmem [shape: f32[1,64], index: 11, kind: input, shape index: {}]
  %s12 = inlined_call_operand.vmem [shape: f32[64,16], index: 12, kind: input, shape index: {}]
  %s13 = inlined_call_operand.vmem [shape: f32[1,16], index: 13, kind: input, shape index: {}]
  %s14 = inlined_call_operand.vmem [shape: f32[8,4,16], index: 14, kind: output, shape index: {}]
  %s15 = sld [smem:[#allocation0]]
  $region89: #{_lambda_.6} parent=0
    _
  %s17 = ssub.s32 1, %s15
  %s18 = scalar_select 0, %s17, %s15
  loop: start=0, step=1, limit=4
  $region2: #{_lambda_.6} parent=0 // loop_pre_header
    _
  $region3: #{_lambda_.6} parent=0 // loop_header
    %s20 = sphi 0, %s24
    %p21 = scmp.ge.s32.totalorder %s20, 4
    %s30 = sphi 0, %s32
    %s33 = sphi 0, %s30
    %s34 = sphi 0, %s33
    %s50 = sphi 0, %s34
    %s54 = sphi 0, %s54
    %s56 = sphi 0, %s54
    %s57 = sphi 0, %s56
    %s71 = sphi 0, %s57
    %s75 = sphi 0, %s75
    %s77 = sphi 0, %s75
    %s78 = sphi 0, %s77
    %s92 = sphi 0, %s78
    %s96 = sphi 0, %s96
    %s98 = sphi 0, %s96
    %s99 = sphi 0, %s98
    %s113 = sphi 0, %s99
    %s117 = sphi 0, %s117
    %s119 = sphi 0, %s117
    %s120 = sphi 0, %s119
    %s134 = sphi 0, %s120
    %s138 = sphi 0, %s138
    %s140 = sphi 0, %s138
    %s141 = sphi 0, %s140
    %s155 = sphi 0, %s141
    %s159 = sphi 0, %s159
    %s161 = sphi 0, %s159
    %s162 = sphi 0, %s161
    %s176 = sphi 0, %s162
    %s180 = sphi 0, %s180
    %s182 = sphi 0, %s180
    %s183 = sphi 0, %s182
    %s197 = sphi 0, %s183
    %s201 = sphi 0, %s201
    %s203 = sphi 0, %s201
    %s204 = sphi 0, %s203
    %s218 = sphi 0, %s204
    %s222 = sphi 0, %s222
    %s224 = sphi 0, %s222
    %s225 = sphi 0, %s224
    %s239 = sphi 0, %s225
    %s243 = sphi 0, %s243
    %s245 = sphi 0, %s243
    %s246 = sphi 0, %s245
    %s260 = sphi 0, %s246
    %s264 = sphi 0, %s264
    %s266 = sphi 0, %s264
    %s267 = sphi 0, %s266
    %s281 = sphi 0, %s267
    %s285 = sphi 0, %s285
    %s287 = sphi 0, %s285
    %s288 = sphi 0, %s287
    %s302 = sphi 0, %s288
    %s306 = sphi 0, %s306
    %s308 = sphi 0, %s306
    %s309 = sphi 0, %s308
    %s323 = sphi 0, %s309
    %s329 = sphi 0, %s331
    %s332 = sphi 0, %s329
    %s333 = sphi 0, %s332
    %s349 = sphi 0, %s333
  $region4: #{_lambda_.6} parent=0 // loop_header_branch
    %23 = sbr.rel (%p21) target = $region8
  $region5: #{_lambda_.6} parent=0 // loop_body
    %s25 = ssub.s32 %s20, 1
    %s26 = ssub.s32 %s20, 2
    %s27 = sadd.s32 %s20, 1
    %s28 = ssub.s32 %s20, %s27
    %p29 = scmp.eq.s32.totalorder %s28, 0
    %s31 = sadd.s32 %s30, 1
    %s32 = scalar_select %p29, %s30, %s31
    %p35 = pneg %p29
    %p36 = scmp.eq.s32.totalorder %s20, 1
    %p37 = por %p35, %p36
    %p38 = scmp.ne.s32.totalorder %s30, %s33
    %p39 = scmp.eq.s32.totalorder %s20, 0
    %p40 = por %p38, %p39
    %p41 = scmp.ne.s32.totalorder %s30, %s33
    %p42 = scmp.eq.s32.totalorder %s25, 1
    %p43 = por %p41, %p42
    %p44 = scmp.ne.s32.totalorder %s33, %s34
    %p45 = scmp.eq.s32.totalorder %s25, 0
    %p46 = por %p44, %p45
    %p47 = scmp.ne.s32.totalorder %s33, %s34
    %p48 = scmp.eq.s32.totalorder %s26, 1
    %p49 = por %p47, %p48
    %p51 = scmp.ne.s32.totalorder %s34, %s50
    %p52 = scmp.eq.s32.totalorder %s26, 0
    %p53 = por %p51, %p52
    %s55 = sadd.s32 %s54, 1
    %p58 = scmp.eq.s32.totalorder %s20, 1
    %p59 = scmp.ne.s32.totalorder %s54, %s56
    %p60 = scmp.eq.s32.totalorder %s20, 0
    %p61 = por %p59, %p60
    %p62 = scmp.ne.s32.totalorder %s54, %s56
    %p63 = scmp.eq.s32.totalorder %s25, 1
    %p64 = por %p62, %p63
    %p65 = scmp.ne.s32.totalorder %s56, %s57
    %p66 = scmp.eq.s32.totalorder %s25, 0
    %p67 = por %p65, %p66
    %p68 = scmp.ne.s32.totalorder %s56, %s57
    %p69 = scmp.eq.s32.totalorder %s26, 1
    %p70 = por %p68, %p69
    %p72 = scmp.ne.s32.totalorder %s57, %s71
    %p73 = scmp.eq.s32.totalorder %s26, 0
    %p74 = por %p72, %p73
    %s76 = sadd.s32 %s75, 1
    %p79 = scmp.eq.s32.totalorder %s20, 1
    %p80 = scmp.ne.s32.totalorder %s75, %s77
    %p81 = scmp.eq.s32.totalorder %s20, 0
    %p82 = por %p80, %p81
    %p83 = scmp.ne.s32.totalorder %s75, %s77
    %p84 = scmp.eq.s32.totalorder %s25, 1
    %p85 = por %p83, %p84
    %p86 = scmp.ne.s32.totalorder %s77, %s78
    %p87 = scmp.eq.s32.totalorder %s25, 0
    %p88 = por %p86, %p87
    %p89 = scmp.ne.s32.totalorder %s77, %s78
    %p90 = scmp.eq.s32.totalorder %s26, 1
    %p91 = por %p89, %p90
    %p93 = scmp.ne.s32.totalorder %s78, %s92
    %p94 = scmp.eq.s32.totalorder %s26, 0
    %p95 = por %p93, %p94
    %s97 = sadd.s32 %s96, 1
    %p100 = scmp.eq.s32.totalorder %s20, 1
    %p101 = scmp.ne.s32.totalorder %s96, %s98
    %p102 = scmp.eq.s32.totalorder %s20, 0
    %p103 = por %p101, %p102
    %p104 = scmp.ne.s32.totalorder %s96, %s98
    %p105 = scmp.eq.s32.totalorder %s25, 1
    %p106 = por %p104, %p105
    %p107 = scmp.ne.s32.totalorder %s98, %s99
    %p108 = scmp.eq.s32.totalorder %s25, 0
    %p109 = por %p107, %p108
    %p110 = scmp.ne.s32.totalorder %s98, %s99
    %p111 = scmp.eq.s32.totalorder %s26, 1
    %p112 = por %p110, %p111
    %p114 = scmp.ne.s32.totalorder %s99, %s113
    %p115 = scmp.eq.s32.totalorder %s26, 0
    %p116 = por %p114, %p115
    %s118 = sadd.s32 %s117, 1
    %p121 = scmp.eq.s32.totalorder %s20, 1
    %p122 = scmp.ne.s32.totalorder %s117, %s119
    %p123 = scmp.eq.s32.totalorder %s20, 0
    %p124 = por %p122, %p123
    %p125 = scmp.ne.s32.totalorder %s117, %s119
    %p126 = scmp.eq.s32.totalorder %s25, 1
    %p127 = por %p125, %p126
    %p128 = scmp.ne.s32.totalorder %s119, %s120
    %p129 = scmp.eq.s32.totalorder %s25, 0
    %p130 = por %p128, %p129
    %p131 = scmp.ne.s32.totalorder %s119, %s120
    %p132 = scmp.eq.s32.totalorder %s26, 1
    %p133 = por %p131, %p132
    %p135 = scmp.ne.s32.totalorder %s120, %s134
    %p136 = scmp.eq.s32.totalorder %s26, 0
    %p137 = por %p135, %p136
    %s139 = sadd.s32 %s138, 1
    %p142 = scmp.eq.s32.totalorder %s20, 1
    %p143 = scmp.ne.s32.totalorder %s138, %s140
    %p144 = scmp.eq.s32.totalorder %s20, 0
    %p145 = por %p143, %p144
    %p146 = scmp.ne.s32.totalorder %s138, %s140
    %p147 = scmp.eq.s32.totalorder %s25, 1
    %p148 = por %p146, %p147
    %p149 = scmp.ne.s32.totalorder %s140, %s141
    %p150 = scmp.eq.s32.totalorder %s25, 0
    %p151 = por %p149, %p150
    %p152 = scmp.ne.s32.totalorder %s140, %s141
    %p153 = scmp.eq.s32.totalorder %s26, 1
    %p154 = por %p152, %p153
    %p156 = scmp.ne.s32.totalorder %s141, %s155
    %p157 = scmp.eq.s32.totalorder %s26, 0
    %p158 = por %p156, %p157
    %s160 = sadd.s32 %s159, 1
    %p163 = scmp.eq.s32.totalorder %s20, 1
    %p164 = scmp.ne.s32.totalorder %s159, %s161
    %p165 = scmp.eq.s32.totalorder %s20, 0
    %p166 = por %p164, %p165
    %p167 = scmp.ne.s32.totalorder %s159, %s161
    %p168 = scmp.eq.s32.totalorder %s25, 1
    %p169 = por %p167, %p168
    %p170 = scmp.ne.s32.totalorder %s161, %s162
    %p171 = scmp.eq.s32.totalorder %s25, 0
    %p172 = por %p170, %p171
    %p173 = scmp.ne.s32.totalorder %s161, %s162
    %p174 = scmp.eq.s32.totalorder %s26, 1
    %p175 = por %p173, %p174
    %p177 = scmp.ne.s32.totalorder %s162, %s176
    %p178 = scmp.eq.s32.totalorder %s26, 0
    %p179 = por %p177, %p178
    %s181 = sadd.s32 %s180, 1
    %p184 = scmp.eq.s32.totalorder %s20, 1
    %p185 = scmp.ne.s32.totalorder %s180, %s182
    %p186 = scmp.eq.s32.totalorder %s20, 0
    %p187 = por %p185, %p186
    %p188 = scmp.ne.s32.totalorder %s180, %s182
    %p189 = scmp.eq.s32.totalorder %s25, 1
    %p190 = por %p188, %p189
    %p191 = scmp.ne.s32.totalorder %s182, %s183
    %p192 = scmp.eq.s32.totalorder %s25, 0
    %p193 = por %p191, %p192
    %p194 = scmp.ne.s32.totalorder %s182, %s183
    %p195 = scmp.eq.s32.totalorder %s26, 1
    %p196 = por %p194, %p195
    %p198 = scmp.ne.s32.totalorder %s183, %s197
    %p199 = scmp.eq.s32.totalorder %s26, 0
    %p200 = por %p198, %p199
    %s202 = sadd.s32 %s201, 1
    %p205 = scmp.eq.s32.totalorder %s20, 1
    %p206 = scmp.ne.s32.totalorder %s201, %s203
    %p207 = scmp.eq.s32.totalorder %s20, 0
    %p208 = por %p206, %p207
    %p209 = scmp.ne.s32.totalorder %s201, %s203
    %p210 = scmp.eq.s32.totalorder %s25, 1
    %p211 = por %p209, %p210
    %p212 = scmp.ne.s32.totalorder %s203, %s204
    %p213 = scmp.eq.s32.totalorder %s25, 0
    %p214 = por %p212, %p213
    %p215 = scmp.ne.s32.totalorder %s203, %s204
    %p216 = scmp.eq.s32.totalorder %s26, 1
    %p217 = por %p215, %p216
    %p219 = scmp.ne.s32.totalorder %s204, %s218
    %p220 = scmp.eq.s32.totalorder %s26, 0
    %p221 = por %p219, %p220
    %s223 = sadd.s32 %s222, 1
    %p226 = scmp.eq.s32.totalorder %s20, 1
    %p227 = scmp.ne.s32.totalorder %s222, %s224
    %p228 = scmp.eq.s32.totalorder %s20, 0
    %p229 = por %p227, %p228
    %p230 = scmp.ne.s32.totalorder %s222, %s224
    %p231 = scmp.eq.s32.totalorder %s25, 1
    %p232 = por %p230, %p231
    %p233 = scmp.ne.s32.totalorder %s224, %s225
    %p234 = scmp.eq.s32.totalorder %s25, 0
    %p235 = por %p233, %p234
    %p236 = scmp.ne.s32.totalorder %s224, %s225
    %p237 = scmp.eq.s32.totalorder %s26, 1
    %p238 = por %p236, %p237
    %p240 = scmp.ne.s32.totalorder %s225, %s239
    %p241 = scmp.eq.s32.totalorder %s26, 0
    %p242 = por %p240, %p241
    %s244 = sadd.s32 %s243, 1
    %p247 = scmp.eq.s32.totalorder %s20, 1
    %p248 = scmp.ne.s32.totalorder %s243, %s245
    %p249 = scmp.eq.s32.totalorder %s20, 0
    %p250 = por %p248, %p249
    %p251 = scmp.ne.s32.totalorder %s243, %s245
    %p252 = scmp.eq.s32.totalorder %s25, 1
    %p253 = por %p251, %p252
    %p254 = scmp.ne.s32.totalorder %s245, %s246
    %p255 = scmp.eq.s32.totalorder %s25, 0
    %p256 = por %p254, %p255
    %p257 = scmp.ne.s32.totalorder %s245, %s246
    %p258 = scmp.eq.s32.totalorder %s26, 1
    %p259 = por %p257, %p258
    %p261 = scmp.ne.s32.totalorder %s246, %s260
    %p262 = scmp.eq.s32.totalorder %s26, 0
    %p263 = por %p261, %p262
    %s265 = sadd.s32 %s264, 1
    %p268 = scmp.eq.s32.totalorder %s20, 1
    %p269 = scmp.ne.s32.totalorder %s264, %s266
    %p270 = scmp.eq.s32.totalorder %s20, 0
    %p271 = por %p269, %p270
    %p272 = scmp.ne.s32.totalorder %s264, %s266
    %p273 = scmp.eq.s32.totalorder %s25, 1
    %p274 = por %p272, %p273
    %p275 = scmp.ne.s32.totalorder %s266, %s267
    %p276 = scmp.eq.s32.totalorder %s25, 0
    %p277 = por %p275, %p276
    %p278 = scmp.ne.s32.totalorder %s266, %s267
    %p279 = scmp.eq.s32.totalorder %s26, 1
    %p280 = por %p278, %p279
    %p282 = scmp.ne.s32.totalorder %s267, %s281
    %p283 = scmp.eq.s32.totalorder %s26, 0
    %p284 = por %p282, %p283
    %s286 = sadd.s32 %s285, 1
    %p289 = scmp.eq.s32.totalorder %s20, 1
    %p290 = scmp.ne.s32.totalorder %s285, %s287
    %p291 = scmp.eq.s32.totalorder %s20, 0
    %p292 = por %p290, %p291
    %p293 = scmp.ne.s32.totalorder %s285, %s287
    %p294 = scmp.eq.s32.totalorder %s25, 1
    %p295 = por %p293, %p294
    %p296 = scmp.ne.s32.totalorder %s287, %s288
    %p297 = scmp.eq.s32.totalorder %s25, 0
    %p298 = por %p296, %p297
    %p299 = scmp.ne.s32.totalorder %s287, %s288
    %p300 = scmp.eq.s32.totalorder %s26, 1
    %p301 = por %p299, %p300
    %p303 = scmp.ne.s32.totalorder %s288, %s302
    %p304 = scmp.eq.s32.totalorder %s26, 0
    %p305 = por %p303, %p304
    %s307 = sadd.s32 %s306, 1
    %p310 = scmp.eq.s32.totalorder %s20, 1
    %p311 = scmp.ne.s32.totalorder %s306, %s308
    %p312 = scmp.eq.s32.totalorder %s20, 0
    %p313 = por %p311, %p312
    %p314 = scmp.ne.s32.totalorder %s306, %s308
    %p315 = scmp.eq.s32.totalorder %s25, 1
    %p316 = por %p314, %p315
    %p317 = scmp.ne.s32.totalorder %s308, %s309
    %p318 = scmp.eq.s32.totalorder %s25, 0
    %p319 = por %p317, %p318
    %p320 = scmp.ne.s32.totalorder %s308, %s309
    %p321 = scmp.eq.s32.totalorder %s26, 1
    %p322 = por %p320, %p321
    %p324 = scmp.ne.s32.totalorder %s309, %s323
    %p325 = scmp.eq.s32.totalorder %s26, 0
    %p326 = por %p324, %p325
    %s327 = ssub.s32 %s20, %s27
    %p328 = scmp.eq.s32.totalorder %s327, 0
    %s330 = sadd.s32 %s329, 1
    %s331 = scalar_select %p328, %s329, %s330
    %p334 = pneg %p328
    %p335 = scmp.eq.s32.totalorder %s20, 1
    %p336 = por %p334, %p335
    %p337 = scmp.ne.s32.totalorder %s329, %s332
    %p338 = scmp.eq.s32.totalorder %s20, 0
    %p339 = por %p337, %p338
    %p340 = scmp.ne.s32.totalorder %s329, %s332
    %p341 = scmp.eq.s32.totalorder %s25, 1
    %p342 = por %p340, %p341
    %p343 = scmp.ne.s32.totalorder %s332, %s333
    %p344 = scmp.eq.s32.totalorder %s25, 0
    %p345 = por %p343, %p344
    %p346 = scmp.ne.s32.totalorder %s332, %s333
    %p347 = scmp.eq.s32.totalorder %s26, 1
    %p348 = por %p346, %p347
    %p350 = scmp.ne.s32.totalorder %s333, %s349
    %p351 = scmp.eq.s32.totalorder %s26, 0
    %p352 = por %p350, %p351
    %p353 = scmp.le.s32.totalorder 1, %s20
    %p354 = scmp.lt.s32.totalorder %s20, 3
    %p355 = pnand %p353, %p354
    %p356 = pneg %p355
    // Predicated region
    $region9: #{_lambda_.6} parent=5 // pred_check
      _
    $region10: #{_lambda_.6} parent=5 // pred_check_branch
      %358 = sbr.rel (%p355) target = $region12
    $region11: #{_lambda_.6} parent=5 // pred_region
      %s359 = ssub.s32 %s20, 1
      // Predicated region
      $region13: #{_lambda_.6} parent=11 // pred_check
        %p360 = pneg %p67
      $region14: #{_lambda_.6} parent=11 // pred_check_branch
        %362 = sbr.rel (%p360) target = $region16
      $region15: #{_lambda_.6} parent=11 // pred_region
        _
      $region16: #{_lambda_.6} parent=11 // pred_fallthru
        _
      // Predicated region
      $region17: #{_lambda_.6} parent=11 // pred_check
        %p363 = pneg %p88
      $region18: #{_lambda_.6} parent=11 // pred_check_branch
        %365 = sbr.rel (%p363) target = $region20
      $region19: #{_lambda_.6} parent=11 // pred_region
        _
      $region20: #{_lambda_.6} parent=11 // pred_fallthru
        _
      // Predicated region
      $region21: #{_lambda_.6} parent=11 // pred_check
        %p366 = pneg %p109
      $region22: #{_lambda_.6} parent=11 // pred_check_branch
        %368 = sbr.rel (%p366) target = $region24
      $region23: #{_lambda_.6} parent=11 // pred_region
        _
      $region24: #{_lambda_.6} parent=11 // pred_fallthru
        _
      // Predicated region
      $region25: #{_lambda_.6} parent=11 // pred_check
        %p369 = pneg %p130
      $region26: #{_lambda_.6} parent=11 // pred_check_branch
        %371 = sbr.rel (%p369) target = $region28
      $region27: #{_lambda_.6} parent=11 // pred_region
        _
      $region28: #{_lambda_.6} parent=11 // pred_fallthru
        _
      // Predicated region
      $region29: #{_lambda_.6} parent=11 // pred_check
        %p372 = pneg %p151
      $region30: #{_lambda_.6} parent=11 // pred_check_branch
        %374 = sbr.rel (%p372) target = $region32
      $region31: #{_lambda_.6} parent=11 // pred_region
        _
      $region32: #{_lambda_.6} parent=11 // pred_fallthru
        _
      // Predicated region
      $region33: #{_lambda_.6} parent=11 // pred_check
        %p375 = pneg %p172
      $region34: #{_lambda_.6} parent=11 // pred_check_branch
        %377 = sbr.rel (%p375) target = $region36
      $region35: #{_lambda_.6} parent=11 // pred_region
        _
      $region36: #{_lambda_.6} parent=11 // pred_fallthru
        _
      // Predicated region
      $region37: #{_lambda_.6} parent=11 // pred_check
        %p378 = pneg %p193
      $region38: #{_lambda_.6} parent=11 // pred_check_branch
        %380 = sbr.rel (%p378) target = $region40
      $region39: #{_lambda_.6} parent=11 // pred_region
        _
      $region40: #{_lambda_.6} parent=11 // pred_fallthru
        _
      // Predicated region
      $region41: #{_lambda_.6} parent=11 // pred_check
        %p381 = pneg %p214
      $region42: #{_lambda_.6} parent=11 // pred_check_branch
        %383 = sbr.rel (%p381) target = $region44
      $region43: #{_lambda_.6} parent=11 // pred_region
        _
      $region44: #{_lambda_.6} parent=11 // pred_fallthru
        _
      // Predicated region
      $region45: #{_lambda_.6} parent=11 // pred_check
        %p384 = pneg %p235
      $region46: #{_lambda_.6} parent=11 // pred_check_branch
        %386 = sbr.rel (%p384) target = $region48
      $region47: #{_lambda_.6} parent=11 // pred_region
        _
      $region48: #{_lambda_.6} parent=11 // pred_fallthru
        _
      // Predicated region
      $region49: #{_lambda_.6} parent=11 // pred_check
        %p387 = pneg %p256
      $region50: #{_lambda_.6} parent=11 // pred_check_branch
        %389 = sbr.rel (%p387) target = $region52
      $region51: #{_lambda_.6} parent=11 // pred_region
        _
      $region52: #{_lambda_.6} parent=11 // pred_fallthru
        _
      // Predicated region
      $region53: #{_lambda_.6} parent=11 // pred_check
        %p390 = pneg %p277
      $region54: #{_lambda_.6} parent=11 // pred_check_branch
        %392 = sbr.rel (%p390) target = $region56
      $region55: #{_lambda_.6} parent=11 // pred_region
        _
      $region56: #{_lambda_.6} parent=11 // pred_fallthru
        _
      // Predicated region
      $region57: #{_lambda_.6} parent=11 // pred_check
        %p393 = pneg %p298
      $region58: #{_lambda_.6} parent=11 // pred_check_branch
        %395 = sbr.rel (%p393) target = $region60
      $region59: #{_lambda_.6} parent=11 // pred_region
        _
      $region60: #{_lambda_.6} parent=11 // pred_fallthru
        _
      // Predicated region
      $region61: #{_lambda_.6} parent=11 // pred_check
        %p396 = pneg %p319
      $region62: #{_lambda_.6} parent=11 // pred_check_branch
        %398 = sbr.rel (%p396) target = $region64
      $region63: #{_lambda_.6} parent=11 // pred_region
        _
      $region64: #{_lambda_.6} parent=11 // pred_fallthru
        _
    $region12: #{_lambda_.6} parent=5 // pred_fallthru
      _
    %p399 = scmp.lt.s32.totalorder %s20, 2
    // Predicated region
    $region65: #{_lambda_.6} parent=5 // pred_check
      %p400 = pneg %p399
    $region66: #{_lambda_.6} parent=5 // pred_check_branch
      %402 = sbr.rel (%p400) target = $region68
    $region67: #{_lambda_.6} parent=5 // pred_region
      // Predicated region
      $region69: #{_lambda_.6} parent=67 // pred_check
        %p403 = pneg %p40
      $region70: #{_lambda_.6} parent=67 // pred_check_branch
        %405 = sbr.rel (%p403) target = $region72
      $region71: #{_lambda_.6} parent=67 // pred_region
        %s406 = smul.u32 4, %s20
        %p407 = scmp.lt.s32.totalorder %s406, 7
        %s408 = scalar_select %p407, %s406, 7
        %s409 = smul.addr %s408, 4
        %s410 = scalar_lea.vmem %s0, %s409
        %s411 = smul.u32 4, %s20
      $region72: #{_lambda_.6} parent=67 // pred_fallthru
        _
    $region68: #{_lambda_.6} parent=5 // pred_fallthru
      _
    %p412 = scmp.le.s32.totalorder 1, %s20
    %p413 = scmp.lt.s32.totalorder %s20, 3
    %p414 = pnand %p412, %p413
    %p415 = pneg %p414
    // Predicated region
    $region73: #{_lambda_.6} parent=5 // pred_check
      _
    $region74: #{_lambda_.6} parent=5 // pred_check_branch
      %417 = sbr.rel (%p414) target = $region76
    $region75: #{_lambda_.6} parent=5 // pred_region
      %s418 = ssub.s32 %s20, 1
      %s419 = smul.u32 4, %s25
      %p420 = scmp.lt.s32.totalorder %s419, 7
      %s421 = scalar_select %p420, %s419, 7
      %s422 = smul.addr %s421, 4
      %s423 = scalar_lea.vmem %s0, %s422
      %p424 = pneg %p46
      %p425 = pneg %p43
      %p426 = pneg %p67
      %p427 = pneg %p64
      %p428 = pneg %p88
      %p429 = pneg %p85
      %p430 = pneg %p109
      %p431 = pneg %p106
      %p432 = pneg %p130
      %p433 = pneg %p127
      %p434 = pneg %p151
      %p435 = pneg %p148
      %p436 = pneg %p172
      %p437 = pneg %p169
      %p438 = pneg %p193
      %p439 = pneg %p190
      %p440 = pneg %p214
      %p441 = pneg %p211
      %p442 = pneg %p235
      %p443 = pneg %p232
      %p444 = pneg %p256
      %p445 = pneg %p253
      %p446 = pneg %p277
      %p447 = pneg %p274
      %p448 = pneg %p298
      %p449 = pneg %p295
      %p450 = pneg %p319
      %p451 = pneg %p316
      %p452 = pneg %p345
      %p453 = pneg %p342
      %s454 = smul.u32 4, %s25
      %p455 = scmp.lt.s32.totalorder %s454, 7
      %s456 = scalar_select %p455, %s454, 7
      %s457 = smul.addr %s456, 4
      %s458 = scalar_lea.vmem %s14, %s457
      %s459 = smul.u32 4, %s25
      %p460 = scmp.lt.s32.totalorder %s459, 7
      %s461 = scalar_select %p460, %s459, 7
      %s462 = smul.addr %s461, 4
      %s463 = scalar_lea.vmem %s0, %s462
      %s464 = smul.u32 4, %s25
      %s465 = smul.u32 4, %s25
      %p466 = scmp.lt.s32.totalorder %s465, 7
      %s467 = scalar_select %p466, %s465, 7
      %s468 = smul.addr %s467, 4
      %s469 = scalar_lea.vmem %s14, %s468
      %s470 = smul.u32 4, %s25
      %v472 = vld [vmem:[%s463] sm:$0xf]
      %v473 = vld [vmem:[%s463 + $0x4] sm:$0xf]
      %v474 = vld [vmem:[%s463 + $0x8] sm:$0xf]
      %v475 = vld [vmem:[%s463 + $0xc] sm:$0xf]
      %v476 = vld [vmem:[%s1] sm:$0x1]
      %v477 = vld [vmem:[%s2] sm:$0x1]
      %482 = vst [vmem:[#allocation1] ss:$2 sm:$0xff] %v472
      %s483 = scalar_lea.vmem [#allocation1], 1
      %484 = vst [vmem:[%s483] ss:$2 sm:$0xff] %v473
      %s485 = scalar_lea.vmem [#allocation1], 16
      %486 = vst [vmem:[%s485] ss:$2 sm:$0xff] %v474
      %s487 = scalar_lea.vmem [#allocation1], 17
      %488 = vst [vmem:[%s487] ss:$2 sm:$0xff] %v475
      %v489 = vld.sshfl [vmem:[#allocation1] sm:$0xff pattern:$0x75316420]
      %v490 = vld.sshfl [vmem:[#allocation1 + $0x10] sm:$0xff pattern:$0x75316420]
      %vm493 = vcmask 130048
      %v494 = vsel %vm493, %v489, 0.0
      %495 = vadd.xlane.f32.xlu0 %v494
      %v496 = vpop.xlane.xlu0 %495
      %v497 = vsel %vm493, %v490, 0.0
      %498 = vadd.xlane.f32.xlu0 %v497
      %v499 = vpop.xlane.xlu0 %498
      %v500 = vrcp.pop 16.0
      %v501 = vmul.f32 16.0, %v500
      %v502 = vsub.f32 1.0, %v501
      %v503 = vmul.f32 %v500, %v502
      %v504 = vadd.f32 %v500, %v503
      %vm505 = vweird.f32 %v500
      %v506 = vsel %vm505, %v500, %v504
      %v507 = vmul.f32 %v496, %v506
      %v508 = vmul.f32 %v499, %v506
      %v512 = vunpack.c.l.s4 839922192
      %v513 = vunpack.c.0.s8 %v512
      %v514 = vperm.slane %v507, %v513
      %v516 = vunpack.c.l.s4 1985246804
      %v517 = vunpack.c.0.s8 %v516
      %v518 = vperm.slane %v507, %v517
      %v520 = vunpack.c.l.s4 839922192
      %v521 = vunpack.c.0.s8 %v520
      %v522 = vperm.slane %v508, %v521
      %v524 = vunpack.c.l.s4 1985246804
      %v525 = vunpack.c.0.s8 %v524
      %v526 = vperm.slane %v508, %v525
      %v531 = vsub.f32 %v472, %v514
      %v532 = vsub.f32 %v473, %v518
      %v533 = vsub.f32 %v474, %v522
      %v534 = vsub.f32 %v475, %v526
      %v535 = vmul.f32 %v531, %v531
      %v536 = vmul.f32 %v532, %v532
      %v537 = vmul.f32 %v533, %v533
      %v538 = vmul.f32 %v534, %v534
      %543 = vst [vmem:[#allocation1] ss:$2 sm:$0xff] %v535
      %s544 = scalar_lea.vmem [#allocation1], 1
      %545 = vst [vmem:[%s544] ss:$2 sm:$0xff] %v536
      %s546 = scalar_lea.vmem [#allocation1], 16
      %547 = vst [vmem:[%s546] ss:$2 sm:$0xff] %v537
      %s548 = scalar_lea.vmem [#allocation1], 17
      %549 = vst [vmem:[%s548] ss:$2 sm:$0xff] %v538
      %v550 = vld.sshfl [vmem:[#allocation1] sm:$0xff pattern:$0x75316420]
      %v551 = vld.sshfl [vmem:[#allocation1 + $0x10] sm:$0xff pattern:$0x75316420]
      %v554 = vsel %vm493, %v550, 0.0
      %555 = vadd.xlane.f32.xlu0 %v554
      %v556 = vpop.xlane.xlu0 %555
      %v557 = vsel %vm493, %v551, 0.0
      %558 = vadd.xlane.f32.xlu0 %v557
      %v559 = vpop.xlane.xlu0 %558
      %v560 = vmul.f32 %v556, %v506
      %v561 = vmul.f32 %v559, %v506
      %v562 = vadd.f32 %v560, 1e-05
      %v563 = vadd.f32 %v561, 1e-05
      %v564 = vrsqrt.pop %v562
      %v565 = vmul.f32 %v564, %v562
      %v566 = vmul.f32 %v565, %v564
      %v567 = vmul.f32 0.5, %v566
      %v568 = vsub.f32 1.5, %v567
      %v569 = vmul.f32 %v564, %v568
      %vm570 = vweird.f32 %v562
      %vm571 = vweird.f32 %v564
      %vm572 = vmor %vm570, %vm571
      %v573 = vsel %vm572, %v564, %v569
      %v574 = vrsqrt.pop %v563
      %v575 = vmul.f32 %v574, %v563
      %v576 = vmul.f32 %v575, %v574
      %v577 = vmul.f32 0.5, %v576
      %v578 = vsub.f32 1.5, %v577
      %v579 = vmul.f32 %v574, %v578
      %vm580 = vweird.f32 %v563
      %vm581 = vweird.f32 %v574
      %vm582 = vmor %vm580, %vm581
      %v583 = vsel %vm582, %v574, %v579
      %v587 = vunpack.c.l.s4 839922192
      %v588 = vunpack.c.0.s8 %v587
      %v589 = vperm.slane %v573, %v588
      %v591 = vunpack.c.l.s4 1985246804
      %v592 = vunpack.c.0.s8 %v591
      %v593 = vperm.slane %v573, %v592
      %v595 = vunpack.c.l.s4 839922192
      %v596 = vunpack.c.0.s8 %v595
      %v597 = vperm.slane %v583, %v596
      %v599 = vunpack.c.l.s4 1985246804
      %v600 = vunpack.c.0.s8 %v599
      %v601 = vperm.slane %v583, %v600
      %v606 = vmul.f32 %v531, %v589
      %v607 = vmul.f32 %v532, %v593
      %v608 = vmul.f32 %v533, %v597
      %v609 = vmul.f32 %v534, %v601
      %v611 = vperm.slane %v476, 0
      %v613 = vrot.slane %v611, 4
      %v615 = vmul.f32 %v606, %v611
      %v616 = vmul.f32 %v607, %v613
      %v617 = vmul.f32 %v608, %v611
      %v618 = vmul.f32 %v609, %v613
      %v620 = vperm.slane %v477, 0
      %v622 = vrot.slane %v620, 4
      %v624 = vadd.f32 %v615, %v620
      %v625 = vadd.f32 %v616, %v622
      %v626 = vadd.f32 %v617, %v620
      %v627 = vadd.f32 %v618, %v622
      %v628 = vld [vmem:[%s3] sm:$0xff]
      %v629 = vld [vmem:[%s3 + $0x8] sm:$0xff]
      %634 = vst [vmem:[#allocation1] ss:$2 sm:$0xff] %v624
      %s635 = scalar_lea.vmem [#allocation1], 1
      %636 = vst [vmem:[%s635] ss:$2 sm:$0xff] %v625
      %s637 = scalar_lea.vmem [#allocation1], 16
      %638 = vst [vmem:[%s637] ss:$2 sm:$0xff] %v626
      %s639 = scalar_lea.vmem [#allocation1], 17
      %640 = vst [vmem:[%s639] ss:$2 sm:$0xff] %v627
      %v641 = vld.sshfl [vmem:[#allocation1] sm:$0xff pattern:$0x75316420]
      %v642 = vld.sshfl [vmem:[#allocation1 + $0x10] sm:$0xff pattern:$0x75316420]
      %v645 = vpack.c.bf16 %v642, %v641
      %v646 = vpack.c.bf16 %v629, %v628
      %v647 = vld [vmem:[%s4] sm:$0x1]
      %v649 = vperm.slane %v647, 0
      %v652 = vsel %vm493, %v645, 0
      %654 = vmatpush.bf16.msra.mxu0 0
      %655 = vmatpush.bf16.msra.mxu0 0
      %656 = vmatpush.bf16.msra.mxu0 0
      %657 = vmatpush.bf16.msra.mxu0 0
      %658 = vmatpush.bf16.msra.mxu0 0
      %659 = vmatpush.bf16.msra.mxu0 0
      %660 = vmatpush.bf16.msra.mxu0 0
      %661 = vmatpush.bf16.msra.mxu0 %v646
      %662 = vmatmul.bf16.gmra.mxu0 %v652
      %v663 = vpop.f32.mrf.mxu0
      %v664 = vadd.f32 %v649, %v663
      %v665 = vpop.f32.mrf.mxu0
      %v666 = vadd.f32 %v649, %v665
      %667 = vdwg.mxu0
      %v670 = vrot.slane %v664, 4
      %v671 = vrot.slane %v666, 4
      %v674 = vld [vmem:[%s5] sm:$0xf]
      %v675 = vld [vmem:[%s5 + $0x4] sm:$0xf]
      %v676 = vmul.f32 %v664, 0.35355338
      %v677 = vmul.f32 %v670, 0.35355338
      %v678 = vmul.f32 %v666, 0.35355338
      %v679 = vmul.f32 %v671, 0.35355338
      %v680 = vpack.c.bf16 %v676, %v676
      %v681 = vpack.c.bf16 %v677, %v677
      %v682 = vpack.c.bf16 %v678, %v678
      %v683 = vpack.c.bf16 %v679, %v679
      %v684 = vpack.c.bf16 %v664, %v664
      %v685 = vpack.c.bf16 %v670, %v670
      %v686 = vpack.c.bf16 %v666, %v666
      %v687 = vpack.c.bf16 %v671, %v671
      %v689 = vunpack.c.l.b16 %v684
      %v690 = vpack.c.b16 %v689, %v689
      %691 = vrot.lane.b32.xlu0 %v690, 112
      %v692 = vpop.permute.xlu0 %691
      %vm693 = vcmask 64512
      %v695 = vsel %vm693, %v680, 0
      %v698 = vsel %vm693, %v692, 0
      %700 = vmatpush.bf16.xpose.msra.mxu0 0
      %701 = vmatpush.bf16.xpose.msra.mxu0 0
      %702 = vmatpush.bf16.xpose.msra.mxu0 0
      %703 = vmatpush.bf16.xpose.msra.mxu0 0
      %704 = vmatpush.bf16.xpose.msra.mxu0 0
      %705 = vmatpush.bf16.xpose.msra.mxu0 0
      %706 = vmatpush.bf16.xpose.msra.mxu0 0
      %707 = vmatpush.bf16.xpose.msra.mxu0 %v698
      %708 = vmatmul.bf16.gmra.mxu0 %v695
      %v709 = vpop.f32.mrf.mxu0
      %v710 = vadd.f32 %v674, %v709
      %v711 = vpop.f32.mrf.mxu0
      %712 = vdwg.mxu0
      %v714 = vunpack.c.l.b16 %v685
      %v715 = vpack.c.b16 %v714, %v714
      %716 = vrot.lane.b32.xlu0 %v715, 112
      %v717 = vpop.permute.xlu0 %716
      %v719 = vsel %vm693, %v681, 0
      %v722 = vsel %vm693, %v717, 0
      %724 = vmatpush.bf16.xpose.msra.mxu0 0
      %725 = vmatpush.bf16.xpose.msra.mxu0 0
      %726 = vmatpush.bf16.xpose.msra.mxu0 0
      %727 = vmatpush.bf16.xpose.msra.mxu0 0
      %728 = vmatpush.bf16.xpose.msra.mxu0 0
      %729 = vmatpush.bf16.xpose.msra.mxu0 0
      %730 = vmatpush.bf16.xpose.msra.mxu0 0
      %731 = vmatpush.bf16.xpose.msra.mxu0 %v722
      %732 = vmatmul.bf16.gmra.mxu0 %v719
      %v733 = vpop.f32.mrf.mxu0
      %v734 = vadd.f32 %v674, %v733
      %v735 = vpop.f32.mrf.mxu0
      %736 = vdwg.mxu0
      %v738 = vunpack.c.l.b16 %v686
      %v739 = vpack.c.b16 %v738, %v738
      %740 = vrot.lane.b32.xlu0 %v739, 112
      %v741 = vpop.permute.xlu0 %740
      %v743 = vsel %vm693, %v682, 0
      %v746 = vsel %vm693, %v741, 0
      %748 = vmatpush.bf16.xpose.msra.mxu0 0
      %749 = vmatpush.bf16.xpose.msra.mxu0 0
      %750 = vmatpush.bf16.xpose.msra.mxu0 0
      %751 = vmatpush.bf16.xpose.msra.mxu0 0
      %752 = vmatpush.bf16.xpose.msra.mxu0 0
      %753 = vmatpush.bf16.xpose.msra.mxu0 0
      %754 = vmatpush.bf16.xpose.msra.mxu0 0
      %755 = vmatpush.bf16.xpose.msra.mxu0 %v746
      %756 = vmatmul.bf16.gmra.mxu0 %v743
      %v757 = vpop.f32.mrf.mxu0
      %v758 = vadd.f32 %v674, %v757
      %v759 = vpop.f32.mrf.mxu0
      %760 = vdwg.mxu0
      %v762 = vunpack.c.l.b16 %v687
      %v763 = vpack.c.b16 %v762, %v762
      %764 = vrot.lane.b32.xlu0 %v763, 112
      %v765 = vpop.permute.xlu0 %764
      %v767 = vsel %vm693, %v683, 0
      %v770 = vsel %vm693, %v765, 0
      %772 = vmatpush.bf16.xpose.msra.mxu0 0
      %773 = vmatpush.bf16.xpose.msra.mxu0 0
      %774 = vmatpush.bf16.xpose.msra.mxu0 0
      %775 = vmatpush.bf16.xpose.msra.mxu0 0
      %776 = vmatpush.bf16.xpose.msra.mxu0 0
      %777 = vmatpush.bf16.xpose.msra.mxu0 0
      %778 = vmatpush.bf16.xpose.msra.mxu0 0
      %779 = vmatpush.bf16.xpose.msra.mxu0 %v770
      %780 = vmatmul.bf16.gmra.mxu0 %v767
      %v781 = vpop.f32.mrf.mxu0
      %v782 = vadd.f32 %v674, %v781
      %v783 = vpop.f32.mrf.mxu0
      %784 = vdwg.mxu0
      %vm785 = vcmask 27648
      %v786 = vsel %vm785, %v710, -inf
      %787 = vmax.xlane.f32.xlu0 %v786
      %v788 = vpop.xlane.xlu0 %787
      %v789 = vsel %vm785, %v734, -inf
      %790 = vmax.xlane.f32.xlu0 %v789
      %v791 = vpop.xlane.xlu0 %790
      %v792 = vsel %vm785, %v758, -inf
      %793 = vmax.xlane.f32.xlu0 %v792
      %v794 = vpop.xlane.xlu0 %793
      %v795 = vsel %vm785, %v782, -inf
      %796 = vmax.xlane.f32.xlu0 %v795
      %v797 = vpop.xlane.xlu0 %796
      %v798 = vsub.f32 %v710, %v788
      %v799 = vsub.f32 %v734, %v791
      %v800 = vsub.f32 %v758, %v794
      %v801 = vsub.f32 %v782, %v797
      %v802 = vmul.f32 %v798, 1.442695
      %v803 = vpow.pop %v802
      %v804 = vmul.f32 %v799, 1.442695
      %v805 = vpow.pop %v804
      %v806 = vmul.f32 %v800, 1.442695
      %v807 = vpow.pop %v806
      %v808 = vmul.f32 %v801, 1.442695
      %v809 = vpow.pop %v808
      %v810 = vsel %vm785, %v803, 0.0
      %811 = vadd.xlane.f32.xlu0 %v810
      %v812 = vpop.xlane.xlu0 %811
      %v813 = vsel %vm785, %v805, 0.0
      %814 = vadd.xlane.f32.xlu0 %v813
      %v815 = vpop.xlane.xlu0 %814
      %v816 = vsel %vm785, %v807, 0.0
      %817 = vadd.xlane.f32.xlu0 %v816
      %v818 = vpop.xlane.xlu0 %817
      %v819 = vsel %vm785, %v809, 0.0
      %820 = vadd.xlane.f32.xlu0 %v819
      %v821 = vpop.xlane.xlu0 %820
      %v822 = vrcp.pop %v812
      %v823 = vrcp.pop %v815
      %v824 = vrcp.pop %v818
      %v825 = vrcp.pop %v821
      %v826 = vmul.f32 %v803, %v822
      %v827 = vmul.f32 %v805, %v823
      %v828 = vmul.f32 %v807, %v824
      %v829 = vmul.f32 %v809, %v825
      %v830 = vpack.c.bf16 %v826, %v826
      %v831 = vpack.c.bf16 %v827, %v827
      %v832 = vpack.c.bf16 %v828, %v828
      %v833 = vpack.c.bf16 %v829, %v829
      %834 = vrot.lane.b32.xlu0 %v690, 96
      %v835 = vpop.permute.xlu0 %834
      %vm836 = vcmask 31744
      %v838 = vsel %vm836, %v830, 0
      %vm840 = vcmask 1041408
      %v842 = vsel %vm840, %v835, 0
      %844 = vmatpush.bf16.msra.mxu0 0
      %845 = vmatpush.bf16.msra.mxu0 0
      %846 = vmatpush.bf16.msra.mxu0 0
      %847 = vmatpush.bf16.msra.mxu0 0
      %848 = vmatpush.bf16.msra.mxu0 0
      %849 = vmatpush.bf16.msra.mxu0 0
      %850 = vmatpush.bf16.msra.mxu0 0
      %851 = vmatpush.bf16.msra.mxu0 %v842
      %852 = vmatmul.bf16.gmra.mxu0 %v838
      %v853 = vpop.f32.mrf.mxu0
      %v854 = vadd.f32 0.0, %v853
      %v855 = vpop.f32.mrf.mxu0
      %856 = vdwg.mxu0
      %857 = vrot.lane.b32.xlu0 %v715, 96
      %v858 = vpop.permute.xlu0 %857
      %v860 = vsel %vm836, %v831, 0
      %v863 = vsel %vm840, %v858, 0
      %865 = vmatpush.bf16.msra.mxu0 0
      %866 = vmatpush.bf16.msra.mxu0 0
      %867 = vmatpush.bf16.msra.mxu0 0
      %868 = vmatpush.bf16.msra.mxu0 0
      %869 = vmatpush.bf16.msra.mxu0 0
      %870 = vmatpush.bf16.msra.mxu0 0
      %871 = vmatpush.bf16.msra.mxu0 0
      %872 = vmatpush.bf16.msra.mxu0 %v863
      %873 = vmatmul.bf16.gmra.mxu0 %v860
      %v874 = vpop.f32.mrf.mxu0
      %v875 = vadd.f32 0.0, %v874
      %v876 = vpop.f32.mrf.mxu0
      %877 = vdwg.mxu0
      %878 = vrot.lane.b32.xlu0 %v739, 96
      %v879 = vpop.permute.xlu0 %878
      %v881 = vsel %vm836, %v832, 0
      %v884 = vsel %vm840, %v879, 0
      %886 = vmatpush.bf16.msra.mxu0 0
      %887 = vmatpush.bf16.msra.mxu0 0
      %888 = vmatpush.bf16.msra.mxu0 0
      %889 = vmatpush.bf16.msra.mxu0 0
      %890 = vmatpush.bf16.msra.mxu0 0
      %891 = vmatpush.bf16.msra.mxu0 0
      %892 = vmatpush.bf16.msra.mxu0 0
      %893 = vmatpush.bf16.msra.mxu0 %v884
      %894 = vmatmul.bf16.gmra.mxu0 %v881
      %v895 = vpop.f32.mrf.mxu0
      %v896 = vadd.f32 0.0, %v895
      %v897 = vpop.f32.mrf.mxu0
      %898 = vdwg.mxu0
      %899 = vrot.lane.b32.xlu0 %v763, 96
      %v900 = vpop.permute.xlu0 %899
      %v902 = vsel %vm836, %v833, 0
      %v905 = vsel %vm840, %v900, 0
      %907 = vmatpush.bf16.msra.mxu0 0
      %908 = vmatpush.bf16.msra.mxu0 0
      %909 = vmatpush.bf16.msra.mxu0 0
      %910 = vmatpush.bf16.msra.mxu0 0
      %911 = vmatpush.bf16.msra.mxu0 0
      %912 = vmatpush.bf16.msra.mxu0 0
      %913 = vmatpush.bf16.msra.mxu0 0
      %914 = vmatpush.bf16.msra.mxu0 %v905
      %915 = vmatmul.bf16.gmra.mxu0 %v902
      %v916 = vpop.f32.mrf.mxu0
      %v917 = vadd.f32 0.0, %v916
      %v918 = vpop.f32.mrf.mxu0
      %919 = vdwg.mxu0
      %v921 = vunpack.c.l.b16 %v680
      %v922 = vpack.c.b16 %v921, %v921
      %923 = vrot.lane.b32.xlu0 %v922, 120
      %v924 = vpop.permute.xlu0 %923
      %925 = vrot.lane.b32.xlu0 %v690, 104
      %v926 = vpop.permute.xlu0 %925
      %v928 = vsel %vm693, %v924, 0
      %v931 = vsel %vm693, %v926, 0
      %933 = vmatpush.bf16.xpose.msra.mxu0 0
      %934 = vmatpush.bf16.xpose.msra.mxu0 0
      %935 = vmatpush.bf16.xpose.msra.mxu0 0
      %936 = vmatpush.bf16.xpose.msra.mxu0 0
      %937 = vmatpush.bf16.xpose.msra.mxu0 0
      %938 = vmatpush.bf16.xpose.msra.mxu0 0
      %939 = vmatpush.bf16.xpose.msra.mxu0 0
      %940 = vmatpush.bf16.xpose.msra.mxu0 %v931
      %941 = vmatmul.bf16.gmra.mxu0 %v928
      %v942 = vpop.f32.mrf.mxu0
      %v943 = vadd.f32 %v675, %v942
      %v944 = vpop.f32.mrf.mxu0
      %945 = vdwg.mxu0
      %v947 = vunpack.c.l.b16 %v681
      %v948 = vpack.c.b16 %v947, %v947
      %949 = vrot.lane.b32.xlu0 %v948, 120
      %v950 = vpop.permute.xlu0 %949
      %951 = vrot.lane.b32.xlu0 %v715, 104
      %v952 = vpop.permute.xlu0 %951
      %v954 = vsel %vm693, %v950, 0
      %v957 = vsel %vm693, %v952, 0
      %959 = vmatpush.bf16.xpose.msra.mxu0 0
      %960 = vmatpush.bf16.xpose.msra.mxu0 0
      %961 = vmatpush.bf16.xpose.msra.mxu0 0
      %962 = vmatpush.bf16.xpose.msra.mxu0 0
      %963 = vmatpush.bf16.xpose.msra.mxu0 0
      %964 = vmatpush.bf16.xpose.msra.mxu0 0
      %965 = vmatpush.bf16.xpose.msra.mxu0 0
      %966 = vmatpush.bf16.xpose.msra.mxu0 %v957
      %967 = vmatmul.bf16.gmra.mxu0 %v954
      %v968 = vpop.f32.mrf.mxu0
      %v969 = vadd.f32 %v675, %v968
      %v970 = vpop.f32.mrf.mxu0
      %971 = vdwg.mxu0
      %v973 = vunpack.c.l.b16 %v682
      %v974 = vpack.c.b16 %v973, %v973
      %975 = vrot.lane.b32.xlu0 %v974, 120
      %v976 = vpop.permute.xlu0 %975
      %977 = vrot.lane.b32.xlu0 %v739, 104
      %v978 = vpop.permute.xlu0 %977
      %v980 = vsel %vm693, %v976, 0
      %v983 = vsel %vm693, %v978, 0
      %985 = vmatpush.bf16.xpose.msra.mxu0 0
      %986 = vmatpush.bf16.xpose.msra.mxu0 0
      %987 = vmatpush.bf16.xpose.msra.mxu0 0
      %988 = vmatpush.bf16.xpose.msra.mxu0 0
      %989 = vmatpush.bf16.xpose.msra.mxu0 0
      %990 = vmatpush.bf16.xpose.msra.mxu0 0
      %991 = vmatpush.bf16.xpose.msra.mxu0 0
      %992 = vmatpush.bf16.xpose.msra.mxu0 %v983
      %993 = vmatmul.bf16.gmra.mxu0 %v980
      %v994 = vpop.f32.mrf.mxu0
      %v995 = vadd.f32 %v675, %v994
      %v996 = vpop.f32.mrf.mxu0
      %997 = vdwg.mxu0
      %v999 = vunpack.c.l.b16 %v683
      %v1000 = vpack.c.b16 %v999, %v999
      %1001 = vrot.lane.b32.xlu0 %v1000, 120
      %v1002 = vpop.permute.xlu0 %1001
      %1003 = vrot.lane.b32.xlu0 %v763, 104
      %v1004 = vpop.permute.xlu0 %1003
      %v1006 = vsel %vm693, %v1002, 0
      %v1009 = vsel %vm693, %v1004, 0
      %1011 = vmatpush.bf16.xpose.msra.mxu0 0
      %1012 = vmatpush.bf16.xpose.msra.mxu0 0
      %1013 = vmatpush.bf16.xpose.msra.mxu0 0
      %1014 = vmatpush.bf16.xpose.msra.mxu0 0
      %1015 = vmatpush.bf16.xpose.msra.mxu0 0
      %1016 = vmatpush.bf16.xpose.msra.mxu0 0
      %1017 = vmatpush.bf16.xpose.msra.mxu0 0
      %1018 = vmatpush.bf16.xpose.msra.mxu0 %v1009
      %1019 = vmatmul.bf16.gmra.mxu0 %v1006
      %v1020 = vpop.f32.mrf.mxu0
      %v1021 = vadd.f32 %v675, %v1020
      %v1022 = vpop.f32.mrf.mxu0
      %1023 = vdwg.mxu0
      %v1024 = vsel %vm785, %v943, -inf
      %1025 = vmax.xlane.f32.xlu0 %v1024
      %v1026 = vpop.xlane.xlu0 %1025
      %v1027 = vsel %vm785, %v969, -inf
      %1028 = vmax.xlane.f32.xlu0 %v1027
      %v1029 = vpop.xlane.xlu0 %1028
      %v1030 = vsel %vm785, %v995, -inf
      %1031 = vmax.xlane.f32.xlu0 %v1030
      %v1032 = vpop.xlane.xlu0 %1031
      %v1033 = vsel %vm785, %v1021, -inf
      %1034 = vmax.xlane.f32.xlu0 %v1033
      %v1035 = vpop.xlane.xlu0 %1034
      %v1036 = vsub.f32 %v943, %v1026
      %v1037 = vsub.f32 %v969, %v1029
      %v1038 = vsub.f32 %v995, %v1032
      %v1039 = vsub.f32 %v1021, %v1035
      %v1040 = vmul.f32 %v1036, 1.442695
      %v1041 = vpow.pop %v1040
      %v1042 = vmul.f32 %v1037, 1.442695
      %v1043 = vpow.pop %v1042
      %v1044 = vmul.f32 %v1038, 1.442695
      %v1045 = vpow.pop %v1044
      %v1046 = vmul.f32 %v1039, 1.442695
      %v1047 = vpow.pop %v1046
      %v1048 = vsel %vm785, %v1041, 0.0
      %1049 = vadd.xlane.f32.xlu0 %v1048
      %v1050 = vpop.xlane.xlu0 %1049
      %v1051 = vsel %vm785, %v1043, 0.0
      %1052 = vadd.xlane.f32.xlu0 %v1051
      %v1053 = vpop.xlane.xlu0 %1052
      %v1054 = vsel %vm785, %v1045, 0.0
      %1055 = vadd.xlane.f32.xlu0 %v1054
      %v1056 = vpop.xlane.xlu0 %1055
      %v1057 = vsel %vm785, %v1047, 0.0
      %1058 = vadd.xlane.f32.xlu0 %v1057
      %v1059 = vpop.xlane.xlu0 %1058
      %v1060 = vrcp.pop %v1050
      %v1061 = vrcp.pop %v1053
      %v1062 = vrcp.pop %v1056
      %v1063 = vrcp.pop %v1059
      %v1064 = vmul.f32 %v1041, %v1060
      %v1065 = vmul.f32 %v1043, %v1061
      %v1066 = vmul.f32 %v1045, %v1062
      %v1067 = vmul.f32 %v1047, %v1063
      %v1068 = vpack.c.bf16 %v1064, %v1064
      %v1069 = vpack.c.bf16 %v1065, %v1065
      %v1070 = vpack.c.bf16 %v1066, %v1066
      %v1071 = vpack.c.bf16 %v1067, %v1067
      %1072 = vrot.lane.b32.xlu0 %v690, 88
      %v1073 = vpop.permute.xlu0 %1072
      %v1075 = vsel %vm836, %v1068, 0
      %v1078 = vsel %vm840, %v1073, 0
      %1080 = vmatpush.bf16.msra.mxu0 0
      %1081 = vmatpush.bf16.msra.mxu0 0
      %1082 = vmatpush.bf16.msra.mxu0 0
      %1083 = vmatpush.bf16.msra.mxu0 0
      %1084 = vmatpush.bf16.msra.mxu0 0
      %1085 = vmatpush.bf16.msra.mxu0 0
      %1086 = vmatpush.bf16.msra.mxu0 0
      %1087 = vmatpush.bf16.msra.mxu0 %v1078
      %1088 = vmatmul.bf16.gmra.mxu0 %v1075
      %v1089 = vpop.f32.mrf.mxu0
      %v1090 = vadd.f32 0.0, %v1089
      %v1091 = vpop.f32.mrf.mxu0
      %1092 = vdwg.mxu0
      %1093 = vrot.lane.b32.xlu0 %v715, 88
      %v1094 = vpop.permute.xlu0 %1093
      %v1096 = vsel %vm836, %v1069, 0
      %v1099 = vsel %vm840, %v1094, 0
      %1101 = vmatpush.bf16.msra.mxu0 0
      %1102 = vmatpush.bf16.msra.mxu0 0
      %1103 = vmatpush.bf16.msra.mxu0 0
      %1104 = vmatpush.bf16.msra.mxu0 0
      %1105 = vmatpush.bf16.msra.mxu0 0
      %1106 = vmatpush.bf16.msra.mxu0 0
      %1107 = vmatpush.bf16.msra.mxu0 0
      %1108 = vmatpush.bf16.msra.mxu0 %v1099
      %1109 = vmatmul.bf16.gmra.mxu0 %v1096
      %v1110 = vpop.f32.mrf.mxu0
      %v1111 = vadd.f32 0.0, %v1110
      %v1112 = vpop.f32.mrf.mxu0
      %1113 = vdwg.mxu0
      %1114 = vrot.lane.b32.xlu0 %v739, 88
      %v1115 = vpop.permute.xlu0 %1114
      %v1117 = vsel %vm836, %v1070, 0
      %v1120 = vsel %vm840, %v1115, 0
      %1122 = vmatpush.bf16.msra.mxu0 0
      %1123 = vmatpush.bf16.msra.mxu0 0
      %1124 = vmatpush.bf16.msra.mxu0 0
      %1125 = vmatpush.bf16.msra.mxu0 0
      %1126 = vmatpush.bf16.msra.mxu0 0
      %1127 = vmatpush.bf16.msra.mxu0 0
      %1128 = vmatpush.bf16.msra.mxu0 0
      %1129 = vmatpush.bf16.msra.mxu0 %v1120
      %1130 = vmatmul.bf16.gmra.mxu0 %v1117
      %v1131 = vpop.f32.mrf.mxu0
      %v1132 = vadd.f32 0.0, %v1131
      %v1133 = vpop.f32.mrf.mxu0
      %1134 = vdwg.mxu0
      %1135 = vrot.lane.b32.xlu0 %v763, 88
      %v1136 = vpop.permute.xlu0 %1135
      %v1138 = vsel %vm836, %v1071, 0
      %v1141 = vsel %vm840, %v1136, 0
      %1143 = vmatpush.bf16.msra.mxu0 0
      %1144 = vmatpush.bf16.msra.mxu0 0
      %1145 = vmatpush.bf16.msra.mxu0 0
      %1146 = vmatpush.bf16.msra.mxu0 0
      %1147 = vmatpush.bf16.msra.mxu0 0
      %1148 = vmatpush.bf16.msra.mxu0 0
      %1149 = vmatpush.bf16.msra.mxu0 0
      %1150 = vmatpush.bf16.msra.mxu0 %v1141
      %1151 = vmatmul.bf16.gmra.mxu0 %v1138
      %v1152 = vpop.f32.mrf.mxu0
      %v1153 = vadd.f32 0.0, %v1152
      %v1154 = vpop.f32.mrf.mxu0
      %1155 = vdwg.mxu0
      %1160 = vrot.lane.b32.xlu0 %v1090, 8
      %v1161 = vpop.permute.xlu0 %1160
      %1162 = vrot.lane.b32.xlu0 %v1111, 8
      %v1163 = vpop.permute.xlu0 %1162
      %1164 = vrot.lane.b32.xlu0 %v1132, 8
      %v1165 = vpop.permute.xlu0 %1164
      %1166 = vrot.lane.b32.xlu0 %v1153, 8
      %v1167 = vpop.permute.xlu0 %1166
      %v1172 = vsel %vm693, %v854, %v1161
      %v1173 = vsel %vm693, %v875, %v1163
      %v1174 = vsel %vm693, %v896, %v1165
      %v1175 = vsel %vm693, %v917, %v1167
      %v1176 = vld [vmem:[%s6] sm:$0xff]
      %v1177 = vld [vmem:[%s6 + $0x8] sm:$0xff]
      %1182 = vst [vmem:[#allocation1] ss:$2 sm:$0xff] %v1172
      %s1183 = scalar_lea.vmem [#allocation1], 1
      %1184 = vst [vmem:[%s1183] ss:$2 sm:$0xff] %v1173
      %s1185 = scalar_lea.vmem [#allocation1], 16
      %1186 = vst [vmem:[%s1185] ss:$2 sm:$0xff] %v1174
      %s1187 = scalar_lea.vmem [#allocation1], 17
      %1188 = vst [vmem:[%s1187] ss:$2 sm:$0xff] %v1175
      %v1189 = vld.sshfl [vmem:[#allocation1] sm:$0xff pattern:$0x75316420]
      %v1190 = vld.sshfl [vmem:[#allocation1 + $0x10] sm:$0xff pattern:$0x75316420]
      %v1193 = vpack.c.bf16 %v1190, %v1189
      %v1194 = vpack.c.bf16 %v1177, %v1176
      %v1195 = vld [vmem:[%s7] sm:$0x1]
      %v1197 = vperm.slane %v1195, 0
      %v1200 = vsel %vm493, %v1193, 0
      %1202 = vmatpush.bf16.msra.mxu0 0
      %1203 = vmatpush.bf16.msra.mxu0 0
      %1204 = vmatpush.bf16.msra.mxu0 0
      %1205 = vmatpush.bf16.msra.mxu0 0
      %1206 = vmatpush.bf16.msra.mxu0 0
      %1207 = vmatpush.bf16.msra.mxu0 0
      %1208 = vmatpush.bf16.msra.mxu0 0
      %1209 = vmatpush.bf16.msra.mxu0 %v1194
      %1210 = vmatmul.bf16.gmra.mxu0 %v1200
      %v1211 = vpop.f32.mrf.mxu0
      %v1212 = vadd.f32 %v1197, %v1211
      %v1213 = vpop.f32.mrf.mxu0
      %v1214 = vadd.f32 %v1197, %v1213
      %1215 = vdwg.mxu0
      %1216 = vst [vmem:[#allocation1] ss:$2 sm:$0xff] %v472
      %s1217 = scalar_lea.vmem [#allocation1], 1
      %1218 = vst [vmem:[%s1217] ss:$2 sm:$0xff] %v473
      %s1219 = scalar_lea.vmem [#allocation1], 16
      %1220 = vst [vmem:[%s1219] ss:$2 sm:$0xff] %v474
      %s1221 = scalar_lea.vmem [#allocation1], 17
      %1222 = vst [vmem:[%s1221] ss:$2 sm:$0xff] %v475
      %v1223 = vld.sshfl [vmem:[#allocation1] sm:$0xff pattern:$0x75316420]
      %v1224 = vld.sshfl [vmem:[#allocation1 + $0x10] sm:$0xff pattern:$0x75316420]
      %v1227 = vadd.f32 %v1212, %v1223
      %v1228 = vadd.f32 %v1214, %v1224
      %v1229 = vld [vmem:[%s8] sm:$0x1]
      %v1230 = vld [vmem:[%s9] sm:$0x1]
      %v1231 = vsel %vm493, %v1227, 0.0
      %1232 = vadd.xlane.f32.xlu0 %v1231
      %v1233 = vpop.xlane.xlu0 %1232
      %v1234 = vsel %vm493, %v1228, 0.0
      %1235 = vadd.xlane.f32.xlu0 %v1234
      %v1236 = vpop.xlane.xlu0 %1235
      %v1237 = vmul.f32 %v1233, %v506
      %v1238 = vmul.f32 %v1236, %v506
      %v1239 = vsub.f32 %v1227, %v1237
      %v1240 = vsub.f32 %v1228, %v1238
      %v1241 = vmul.f32 %v1239, %v1239
      %v1242 = vmul.f32 %v1240, %v1240
      %v1243 = vsel %vm493, %v1241, 0.0
      %1244 = vadd.xlane.f32.xlu0 %v1243
      %v1245 = vpop.xlane.xlu0 %1244
      %v1246 = vsel %vm493, %v1242, 0.0
      %1247 = vadd.xlane.f32.xlu0 %v1246
      %v1248 = vpop.xlane.xlu0 %1247
      %v1249 = vmul.f32 %v1245, %v506
      %v1250 = vmul.f32 %v1248, %v506
      %v1251 = vadd.f32 %v1249, 1e-05
      %v1252 = vadd.f32 %v1250, 1e-05
      %v1253 = vrsqrt.pop %v1251
      %v1254 = vmul.f32 %v1253, %v1251
      %v1255 = vmul.f32 %v1254, %v1253
      %v1256 = vmul.f32 0.5, %v1255
      %v1257 = vsub.f32 1.5, %v1256
      %v1258 = vmul.f32 %v1253, %v1257
      %vm1259 = vweird.f32 %v1251
      %vm1260 = vweird.f32 %v1253
      %vm1261 = vmor %vm1259, %vm1260
      %v1262 = vsel %vm1261, %v1253, %v1258
      %v1263 = vrsqrt.pop %v1252
      %v1264 = vmul.f32 %v1263, %v1252
      %v1265 = vmul.f32 %v1264, %v1263
      %v1266 = vmul.f32 0.5, %v1265
      %v1267 = vsub.f32 1.5, %v1266
      %v1268 = vmul.f32 %v1263, %v1267
      %vm1269 = vweird.f32 %v1252
      %vm1270 = vweird.f32 %v1263
      %vm1271 = vmor %vm1269, %vm1270
      %v1272 = vsel %vm1271, %v1263, %v1268
      %v1273 = vmul.f32 %v1239, %v1262
      %v1274 = vmul.f32 %v1240, %v1272
      %v1276 = vperm.slane %v1229, 0
      %v1278 = vmul.f32 %v1273, %v1276
      %v1279 = vmul.f32 %v1274, %v1276
      %v1281 = vperm.slane %v1230, 0
      %v1283 = vadd.f32 %v1278, %v1281
      %v1284 = vadd.f32 %v1279, %v1281
      %v1285 = vld [vmem:[%s10] sm:$0xff]
      %v1286 = vld [vmem:[%s10 + $0x8] sm:$0xff]
      %v1287 = vpack.c.bf16 %v1284, %v1283
      %v1288 = vpack.c.bf16 %v1286, %v1285
      %v1289 = vld [vmem:[%s11] sm:$0x1]
      %v1291 = vperm.slane %v1289, 0
      %v1294 = vsel %vm493, %v1287, 0
      %1296 = vmatpush.bf16.msra.mxu0 0
      %1297 = vmatpush.bf16.msra.mxu0 0
      %1298 = vmatpush.bf16.msra.mxu0 0
      %1299 = vmatpush.bf16.msra.mxu0 0
      %1300 = vmatpush.bf16.msra.mxu0 0
      %1301 = vmatpush.bf16.msra.mxu0 0
      %1302 = vmatpush.bf16.msra.mxu0 0
      %1303 = vmatpush.bf16.msra.mxu0 %v1288
      %1304 = vmatmul.bf16.gmra.mxu0 %v1294
      %v1305 = vpop.f32.mrf.mxu0
      %v1306 = vadd.f32 %v1291, %v1305
      %v1307 = vpop.f32.mrf.mxu0
      %v1308 = vadd.f32 %v1291, %v1307
      %1309 = vdwg.mxu0
      %v1310 = vmul.f32 %v1306, 0.5
      %v1311 = vmul.f32 %v1308, 0.5
      %v1312 = vmul.f32 %v1306, 0.70710677
      %v1313 = vmul.f32 %v1308, 0.70710677
      %v1314 = vmul.f32 %v1312, %v1312
      %v1315 = vmin.f32 16.0, %v1314
      %v1316 = vmul.f32 %v1315, 2.1237322e-06
      %v1317 = vadd.f32 %v1316, 0.00028619796
      %v1318 = vmul.f32 %v1315, %v1317
      %v1319 = vadd.f32 %v1318, 0.0036580483
      %v1320 = vmul.f32 %v1315, %v1319
      %v1321 = vadd.f32 %v1320, 0.05243302
      %v1322 = vmul.f32 %v1315, %v1321
      %v1323 = vadd.f32 %v1322, 0.18741608
      %v1324 = vmul.f32 %v1315, %v1323
      %v1325 = vadd.f32 %v1324, 1.1283791
      %v1326 = vmul.f32 %v1312, %v1325
      %v1327 = vmul.f32 %v1315, 3.8918573e-05
      %v1328 = vadd.f32 %v1327, 0.001143296
      %v1329 = vmul.f32 %v1315, %v1328
      %v1330 = vadd.f32 %v1329, 0.014752088
      %v1331 = vmul.f32 %v1315, %v1330
      %v1332 = vadd.f32 %v1331, 0.112945676
      %v1333 = vmul.f32 %v1315, %v1332
      %v1334 = vadd.f32 %v1333, 0.4994258
      %v1335 = vmul.f32 %v1315, %v1334
      %v1336 = vadd.f32 %v1335, 1.0
      %v1337 = vrcp.pop %v1336
      %v1338 = vmul.f32 %v1336, %v1337
      %v1339 = vsub.f32 1.0, %v1338
      %v1340 = vmul.f32 %v1337, %v1339
      %v1341 = vadd.f32 %v1337, %v1340
      %vm1342 = vweird.f32 %v1336
      %vm1343 = vweird.f32 %v1337
      %vm1344 = vmor %vm1342, %vm1343
      %v1345 = vsel %vm1344, %v1337, %v1341
      %v1346 = vand.u32 2147483647, %v1336
      %vm1347 = vcmp.eq.f32.partialorder %v1346, 8.507059e+37
      %v1348 = vand.u32 %v1336, 2147483648
      %v1349 = vor.u32 1.1754944e-38, %v1348
      %v1350 = vsel %vm1347, %v1349, %v1345
      %v1351 = vmul.f32 %v1326, %v1350
      %v1352 = vmin.f32 %v1351, 1.0
      %v1353 = vmax.f32 %v1352, -1.0
      %v1354 = vmul.f32 %v1313, %v1313
      %v1355 = vmin.f32 16.0, %v1354
      %v1356 = vmul.f32 %v1355, 2.1237322e-06
      %v1357 = vadd.f32 %v1356, 0.00028619796
      %v1358 = vmul.f32 %v1355, %v1357
      %v1359 = vadd.f32 %v1358, 0.0036580483
      %v1360 = vmul.f32 %v1355, %v1359
      %v1361 = vadd.f32 %v1360, 0.05243302
      %v1362 = vmul.f32 %v1355, %v1361
      %v1363 = vadd.f32 %v1362, 0.18741608
      %v1364 = vmul.f32 %v1355, %v1363
      %v1365 = vadd.f32 %v1364, 1.1283791
      %v1366 = vmul.f32 %v1313, %v1365
      %v1367 = vmul.f32 %v1355, 3.8918573e-05
      %v1368 = vadd.f32 %v1367, 0.001143296
      %v1369 = vmul.f32 %v1355, %v1368
      %v1370 = vadd.f32 %v1369, 0.014752088
      %v1371 = vmul.f32 %v1355, %v1370
      %v1372 = vadd.f32 %v1371, 0.112945676
      %v1373 = vmul.f32 %v1355, %v1372
      %v1374 = vadd.f32 %v1373, 0.4994258
      %v1375 = vmul.f32 %v1355, %v1374
      %v1376 = vadd.f32 %v1375, 1.0
      %v1377 = vrcp.pop %v1376
      %v1378 = vmul.f32 %v1376, %v1377
      %v1379 = vsub.f32 1.0, %v1378
      %v1380 = vmul.f32 %v1377, %v1379
      %v1381 = vadd.f32 %v1377, %v1380
      %vm1382 = vweird.f32 %v1376
      %vm1383 = vweird.f32 %v1377
      %vm1384 = vmor %vm1382, %vm1383
      %v1385 = vsel %vm1384, %v1377, %v1381
      %v1386 = vand.u32 2147483647, %v1376
      %vm1387 = vcmp.eq.f32.partialorder %v1386, 8.507059e+37
      %v1388 = vand.u32 %v1376, 2147483648
      %v1389 = vor.u32 1.1754944e-38, %v1388
      %v1390 = vsel %vm1387, %v1389, %v1385
      %v1391 = vmul.f32 %v1366, %v1390
      %v1392 = vmin.f32 %v1391, 1.0
      %v1393 = vmax.f32 %v1392, -1.0
      %v1394 = vadd.f32 %v1353, 1.0
      %v1395 = vadd.f32 %v1393, 1.0
      %v1396 = vmul.f32 %v1310, %v1394
      %v1397 = vmul.f32 %v1311, %v1395
      %v1398 = vld [vmem:[%s12] sm:$0xff]
      %v1399 = vld [vmem:[%s12 + $0x8] sm:$0xff]
      %v1400 = vld [vmem:[%s12 + $0x10] sm:$0xff]
      %v1401 = vld [vmem:[%s12 + $0x18] sm:$0xff]
      %v1402 = vld [vmem:[%s12 + $0x20] sm:$0xff]
      %v1403 = vld [vmem:[%s12 + $0x28] sm:$0xff]
      %v1404 = vld [vmem:[%s12 + $0x30] sm:$0xff]
      %v1405 = vld [vmem:[%s12 + $0x38] sm:$0xff]
      %v1406 = vpack.c.bf16 %v1397, %v1396
      %v1407 = vpack.c.bf16 %v1399, %v1398
      %v1408 = vpack.c.bf16 %v1401, %v1400
      %v1409 = vpack.c.bf16 %v1403, %v1402
      %v1410 = vpack.c.bf16 %v1405, %v1404
      %v1411 = vld [vmem:[%s13] sm:$0x1]
      %v1413 = vperm.slane %v1411, 0
      %vm1415 = vcmask 523264
      %v1417 = vsel %vm1415, %v1406, 0
      %1419 = vmatpush.bf16.msra.mxu0 0
      %1420 = vmatpush.bf16.msra.mxu0 0
      %1421 = vmatpush.bf16.msra.mxu0 0
      %1422 = vmatpush.bf16.msra.mxu0 0
      %1423 = vmatpush.bf16.msra.mxu0 %v1410
      %1424 = vmatpush.bf16.msra.mxu0 %v1409
      %1425 = vmatpush.bf16.msra.mxu0 %v1408
      %1426 = vmatpush.bf16.msra.mxu0 %v1407
      %1427 = vmatmul.bf16.gmra.mxu0 %v1417
      %v1428 = vpop.f32.mrf.mxu0
      %v1429 = vadd.f32 %v1413, %v1428
      %v1430 = vpop.f32.mrf.mxu0
      %v1431 = vadd.f32 %v1413, %v1430
      %1432 = vdwg.mxu0
      %v1433 = vadd.f32 %v1429, %v1227
      %v1434 = vadd.f32 %v1431, %v1228
      %v1437 = vrot.slane %v1433, 4
      %v1438 = vrot.slane %v1434, 4
      %vm1441 = vcmask 125952
      %1442 = vst.msk [vmem:[%s469] sm:$0xf] %vm1441, %v1433
      %1443 = vst.msk [vmem:[%s469 + $0x4] sm:$0xf] %vm1441, %v1437
      %1444 = vst.msk [vmem:[%s469 + $0x8] sm:$0xf] %vm1441, %v1434
      %1445 = vst.msk [vmem:[%s469 + $0xc] sm:$0xf] %vm1441, %v1438
      %s1446 = smul.u32 4, %s25
      %p1447 = scmp.lt.s32.totalorder %s1446, 7
      %s1448 = scalar_select %p1447, %s1446, 7
      %s1449 = smul.addr %s1448, 4
      %s1450 = scalar_lea.vmem %s14, %s1449
      // Predicated region
      $region77: #{_lambda_.6} parent=75 // pred_check
        %p1451 = pneg %p342
      $region78: #{_lambda_.6} parent=75 // pred_check_branch
        %1453 = sbr.rel (%p1451) target = $region80
      $region79: #{_lambda_.6} parent=75 // pred_region
        %s1454 = smul.u32 4, %s25
      $region80: #{_lambda_.6} parent=75 // pred_fallthru
        _
    $region76: #{_lambda_.6} parent=5 // pred_fallthru
      _
    %p1455 = scmp.le.s32.totalorder 2, %s20
    // Predicated region
    $region81: #{_lambda_.6} parent=5 // pred_check
      %p1456 = pneg %p1455
    $region82: #{_lambda_.6} parent=5 // pred_check_branch
      %1458 = sbr.rel (%p1456) target = $region84
    $region83: #{_lambda_.6} parent=5 // pred_region
      %s1459 = ssub.s32 %s20, 2
      // Predicated region
      $region85: #{_lambda_.6} parent=83 // pred_check
        %p1460 = pneg %p348
      $region86: #{_lambda_.6} parent=83 // pred_check_branch
        %1462 = sbr.rel (%p1460) target = $region88
      $region87: #{_lambda_.6} parent=83 // pred_region
        %s1463 = smul.u32 4, %s26
        %p1464 = scmp.lt.s32.totalorder %s1463, 7
        %s1465 = scalar_select %p1464, %s1463, 7
        %s1466 = smul.addr %s1465, 4
        %s1467 = scalar_lea.vmem %s14, %s1466
      $region88: #{_lambda_.6} parent=83 // pred_fallthru
        _
    $region84: #{_lambda_.6} parent=5 // pred_fallthru
      _
  $region6: #{_lambda_.6} parent=0 // loop_footer
    %s24 = sadd.s32 1, %s20
  $region7: #{_lambda_.6} parent=0 // loop_footer_branch
    %19 = sbr.rel target = $region3
  $region8: #{_lambda_.6} parent=0 // loop_exit
    _

// kernel: _lambda_.9
$region0: #{_lambda_.9}
  #allocation0 [shape = 'u32[]', space=smem, size = 0x4, offset = 0x4, fixed_abs, tag = 'smem constant byte address 0x4 - core index']
  #allocation1 [shape = 'u32[72,128]{1,0:T(1,128)}', space=vmem, size = 0x9000, scoped, tag = 'internal scratch']
  %s0 = inlined_call_operand.vmem [shape: f32[2,4,32], index: 0, kind: input, shape index: {}]
  %s1 = inlined_call_operand.vmem [shape: f32[1,32], index: 1, kind: input, shape index: {}]
  %s2 = inlined_call_operand.vmem [shape: f32[1,32], index: 2, kind: input, shape index: {}]
  %s3 = inlined_call_operand.vmem [shape: f32[32,32], index: 3, kind: input, shape index: {}]
  %s4 = inlined_call_operand.vmem [shape: f32[1,32], index: 4, kind: input, shape index: {}]
  %s5 = inlined_call_operand.vmem [shape: f32[1,32], index: 5, kind: input, shape index: {}]
  %s6 = inlined_call_operand.vmem [shape: f32[1,32], index: 6, kind: input, shape index: {}]
  %s7 = inlined_call_operand.vmem [shape: f32[32,8], index: 7, kind: input, shape index: {}]
  %s8 = inlined_call_operand.hbm [shape: f32[2,32], index: 8, kind: output, shape index: {0}]
  %s9 = inlined_call_operand.hbm [shape: f32[2,32], index: 9, kind: output, shape index: {1}]
  %s10 = inlined_call_operand.hbm [shape: f32[2,8], index: 10, kind: output, shape index: {2}]
  %11 = xla_tuple %s8, %s9, %s10
  %s12 = sld [smem:[#allocation0]]
  $region58: #{_lambda_.9} parent=0
    _
  %s14 = ssub.s32 1, %s12
  %s15 = scalar_select 0, %s14, %s12
  $region1: #{_lambda_.9} parent=0
    #allocation2 [shape = 'u8[1024]{0}', space=vmem, size = 0x400, scoped, tag = 'output window, operand 0, single buffered']
    #allocation3 [shape = 's32[1]{0}', space=sflag, size = 0x4, scoped, tag = 'scoped memory for _lambda_.9']
    #allocation4 [shape = 'u8[1024]{0}', space=vmem, size = 0x400, scoped, tag = 'output window, operand 1, single buffered']
    #allocation5 [shape = 's32[1]{0}', space=sflag, size = 0x4, scoped, tag = 'scoped memory for _lambda_.9']
    #allocation6 [shape = 'u8[1024]{0}', space=vmem, size = 0x400, scoped, tag = 'output window, operand 2, single buffered']
    %16 = vsyncpa [#allocation3], 0
    %17 = vsyncpa [#allocation5], 0
    // Predicated region
    $region2: #{_lambda_.9} parent=1 // pred_check
      _
    $region3: #{_lambda_.9} parent=1 // pred_check_branch
      %19 = sbr.rel (0) target = $region5
    $region4: #{_lambda_.9} parent=1 // pred_region
      _
    $region5: #{_lambda_.9} parent=1 // pred_fallthru
      _
    // Predicated region
    $region6: #{_lambda_.9} parent=1 // pred_check
      _
    $region7: #{_lambda_.9} parent=1 // pred_check_branch
      %21 = sbr.rel (0) target = $region9
    $region8: #{_lambda_.9} parent=1 // pred_region
      _
    $region9: #{_lambda_.9} parent=1 // pred_fallthru
      _
    // Predicated region
    $region10: #{_lambda_.9} parent=1 // pred_check
      _
    $region11: #{_lambda_.9} parent=1 // pred_check_branch
      %23 = sbr.rel (0) target = $region13
    $region12: #{_lambda_.9} parent=1 // pred_region
      _
    $region13: #{_lambda_.9} parent=1 // pred_fallthru
      _
    // Predicated region
    $region14: #{_lambda_.9} parent=1 // pred_check
      _
    $region15: #{_lambda_.9} parent=1 // pred_check_branch
      %25 = sbr.rel (0) target = $region17
    $region16: #{_lambda_.9} parent=1 // pred_region
      _
    $region17: #{_lambda_.9} parent=1 // pred_fallthru
      _
    // Predicated region
    $region18: #{_lambda_.9} parent=1 // pred_check
      _
    $region19: #{_lambda_.9} parent=1 // pred_check_branch
      %27 = sbr.rel (0) target = $region21
    $region20: #{_lambda_.9} parent=1 // pred_region
      _
    $region21: #{_lambda_.9} parent=1 // pred_fallthru
      _
    // Predicated region
    $region22: #{_lambda_.9} parent=1 // pred_check
      _
    $region23: #{_lambda_.9} parent=1 // pred_check_branch
      %29 = sbr.rel (0) target = $region25
    $region24: #{_lambda_.9} parent=1 // pred_region
      _
    $region25: #{_lambda_.9} parent=1 // pred_fallthru
      _
    // Predicated region
    $region26: #{_lambda_.9} parent=1 // pred_check
      _
    $region27: #{_lambda_.9} parent=1 // pred_check_branch
      %31 = sbr.rel (0) target = $region29
    $region28: #{_lambda_.9} parent=1 // pred_region
      _
    $region29: #{_lambda_.9} parent=1 // pred_fallthru
      _
    // Predicated region
    $region30: #{_lambda_.9} parent=1 // pred_check
      _
    $region31: #{_lambda_.9} parent=1 // pred_check_branch
      %33 = sbr.rel (0) target = $region33
    $region32: #{_lambda_.9} parent=1 // pred_region
      _
    $region33: #{_lambda_.9} parent=1 // pred_fallthru
      _
    %v35 = vld [vmem:[%s0] sm:$0xf]
    %v36 = vld [vmem:[%s0 + $0x4] sm:$0xf]
    %v37 = vld [vmem:[%s1] sm:$0x1]
    %v38 = vld [vmem:[%s2] sm:$0x1]
    %41 = vst [vmem:[#allocation1] ss:$2 sm:$0xff] %v35
    %s42 = scalar_lea.vmem [#allocation1], 1
    %43 = vst [vmem:[%s42] ss:$2 sm:$0xff] %v36
    %v44 = vld.sshfl [vmem:[#allocation1] sm:$0xff pattern:$0x75316420]
    %vm46 = vcmask 261120
    %v47 = vsel %vm46, %v44, 0.0
    %48 = vadd.xlane.f32.xlu0 %v47
    %v49 = vpop.xlane.xlu0 %48
    %v50 = vrcp.pop 32.0
    %v51 = vmul.f32 32.0, %v50
    %v52 = vsub.f32 1.0, %v51
    %v53 = vmul.f32 %v50, %v52
    %v54 = vadd.f32 %v50, %v53
    %vm55 = vweird.f32 %v50
    %v56 = vsel %vm55, %v50, %v54
    %v57 = vmul.f32 %v49, %v56
    %v60 = vunpack.c.l.s4 839922192
    %v61 = vunpack.c.0.s8 %v60
    %v62 = vperm.slane %v57, %v61
    %v64 = vunpack.c.l.s4 1985246804
    %v65 = vunpack.c.0.s8 %v64
    %v66 = vperm.slane %v57, %v65
    %v69 = vsub.f32 %v35, %v62
    %v70 = vsub.f32 %v36, %v66
    %v71 = vmul.f32 %v69, %v69
    %v72 = vmul.f32 %v70, %v70
    %75 = vst [vmem:[#allocation1] ss:$2 sm:$0xff] %v71
    %s76 = scalar_lea.vmem [#allocation1], 1
    %77 = vst [vmem:[%s76] ss:$2 sm:$0xff] %v72
    %v78 = vld.sshfl [vmem:[#allocation1] sm:$0xff pattern:$0x75316420]
    %v80 = vsel %vm46, %v78, 0.0
    %81 = vadd.xlane.f32.xlu0 %v80
    %v82 = vpop.xlane.xlu0 %81
    %v83 = vmul.f32 %v82, %v56
    %v84 = vadd.f32 %v83, 1e-05
    %v85 = vrsqrt.pop %v84
    %v86 = vmul.f32 %v85, %v84
    %v87 = vmul.f32 %v86, %v85
    %v88 = vmul.f32 0.5, %v87
    %v89 = vsub.f32 1.5, %v88
    %v90 = vmul.f32 %v85, %v89
    %vm91 = vweird.f32 %v84
    %vm92 = vweird.f32 %v85
    %vm93 = vmor %vm91, %vm92
    %v94 = vsel %vm93, %v85, %v90
    %v97 = vunpack.c.l.s4 839922192
    %v98 = vunpack.c.0.s8 %v97
    %v99 = vperm.slane %v94, %v98
    %v101 = vunpack.c.l.s4 1985246804
    %v102 = vunpack.c.0.s8 %v101
    %v103 = vperm.slane %v94, %v102
    %v106 = vmul.f32 %v69, %v99
    %v107 = vmul.f32 %v70, %v103
    %v109 = vperm.slane %v37, 0
    %v111 = vrot.slane %v109, 4
    %v113 = vmul.f32 %v106, %v109
    %v114 = vmul.f32 %v107, %v111
    %v116 = vperm.slane %v38, 0
    %v118 = vrot.slane %v116, 4
    %v120 = vadd.f32 %v113, %v116
    %v121 = vadd.f32 %v114, %v118
    %vm122 = vcmask 257024
    %v123 = vsel %vm122, %v120, 0.0
    %v124 = vrot.slane %v123, 4
    %v125 = vadd.f32 %v123, %v124
    %v126 = vrot.slane %v125, 2
    %v127 = vadd.f32 %v125, %v126
    %v128 = vrot.slane %v127, 1
    %v129 = vadd.f32 %v127, %v128
    %v130 = vsel %vm122, %v121, 0.0
    %v131 = vrot.slane %v130, 4
    %v132 = vadd.f32 %v130, %v131
    %v133 = vrot.slane %v132, 2
    %v134 = vadd.f32 %v132, %v133
    %v135 = vrot.slane %v134, 1
    %v136 = vadd.f32 %v134, %v135
    %v137 = vrcp.pop 4.0
    %v138 = vmul.f32 4.0, %v137
    %v139 = vsub.f32 1.0, %v138
    %v140 = vmul.f32 %v137, %v139
    %v141 = vadd.f32 %v137, %v140
    %vm142 = vweird.f32 %v137
    %v143 = vsel %vm142, %v137, %v141
    %v144 = vmul.f32 %v129, %v143
    %v145 = vmul.f32 %v136, %v143
    %v146 = vld [vmem:[%s3] sm:$0xff]
    %v147 = vld [vmem:[%s3 + $0x8] sm:$0xff]
    %v148 = vld [vmem:[%s3 + $0x10] sm:$0xff]
    %v149 = vld [vmem:[%s3 + $0x18] sm:$0xff]
    %v150 = vpack.c.bf16 %v144, %v144
    %v151 = vpack.c.bf16 %v145, %v145
    %v152 = vpack.c.bf16 %v147, %v146
    %v153 = vpack.c.bf16 %v149, %v148
    %v154 = vld [vmem:[%s4] sm:$0x1]
    %v156 = vperm.slane %v154, 0
    %v160 = vunpack.c.l.b16 %v150
    %v161 = vunpack.c.l.b16 %v151
    %vm162 = vcmask 1041409
    %v163 = vsel %vm162, %v161, %v160
    %v164 = vpack.c.b16 %v163, %v163
    %v166 = vsel %vm46, %v164, 0
    %168 = vmatpush.bf16.msra.mxu0 0
    %169 = vmatpush.bf16.msra.mxu0 0
    %170 = vmatpush.bf16.msra.mxu0 0
    %171 = vmatpush.bf16.msra.mxu0 0
    %172 = vmatpush.bf16.msra.mxu0 0
    %173 = vmatpush.bf16.msra.mxu0 0
    %174 = vmatpush.bf16.msra.mxu0 %v153
    %175 = vmatpush.bf16.msra.mxu0 %v152
    %176 = vmatmul.bf16.gmra.mxu0 %v166
    %v177 = vpop.f32.mrf.mxu0
    %v178 = vadd.f32 %v156, %v177
    %v179 = vpop.f32.mrf.mxu0
    %180 = vdwg.mxu0
    %vm181 = vcmask 254976
    %v182 = vsel %vm181, %v178, 0.0
    %v183 = vrot.slane %v182, 4
    %v184 = vadd.f32 %v182, %v183
    %v185 = vrot.slane %v184, 2
    %v186 = vadd.f32 %v184, %v185
    %v187 = vrot.slane %v186, 1
    %v188 = vadd.f32 %v186, %v187
    %v189 = vrcp.pop 2.0
    %v190 = vmul.f32 2.0, %v189
    %v191 = vsub.f32 1.0, %v190
    %v192 = vmul.f32 %v189, %v191
    %v193 = vadd.f32 %v189, %v192
    %vm194 = vweird.f32 %v189
    %v195 = vsel %vm194, %v189, %v193
    %v196 = vmul.f32 %v188, %v195
    %v197 = vsub.f32 %v178, %v196
    %v198 = vmul.f32 %v197, %v197
    %v199 = vsel %vm181, %v198, 0.0
    %v200 = vrot.slane %v199, 4
    %v201 = vadd.f32 %v199, %v200
    %v202 = vrot.slane %v201, 2
    %v203 = vadd.f32 %v201, %v202
    %v204 = vrot.slane %v203, 1
    %v205 = vadd.f32 %v203, %v204
    %v206 = vmul.f32 %v205, %v195
    %v207 = vadd.f32 %v206, 1e-05
    %v208 = vrsqrt.pop %v207
    %v209 = vmul.f32 %v208, %v207
    %v210 = vmul.f32 %v209, %v208
    %v211 = vmul.f32 0.5, %v210
    %v212 = vsub.f32 1.5, %v211
    %v213 = vmul.f32 %v208, %v212
    %vm214 = vweird.f32 %v207
    %vm215 = vweird.f32 %v208
    %vm216 = vmor %vm214, %vm215
    %v217 = vsel %vm216, %v208, %v213
    %v218 = vmul.f32 %v197, %v217
    %v219 = vld [vmem:[%s5] sm:$0x1]
    %v221 = vperm.slane %v219, 0
    %v223 = vmul.f32 %v218, %v221
    %v224 = vld [vmem:[%s6] sm:$0x1]
    %v226 = vperm.slane %v224, 0
    %v228 = vadd.f32 %v223, %v226
    %229 = vst.msk [vmem:[#allocation2] sm:$0x3] %vm181, %v178
    %230 = vst.msk [vmem:[#allocation4] sm:$0x3] %vm181, %v228
    %v231 = vld [vmem:[%s7] sm:$0xff]
    %v232 = vld [vmem:[%s7 + $0x8] sm:$0xff]
    %v233 = vld [vmem:[%s7 + $0x10] sm:$0xff]
    %v234 = vld [vmem:[%s7 + $0x18] sm:$0xff]
    %v235 = vpack.c.bf16 %v228, %v228
    %v236 = vpack.c.bf16 %v232, %v231
    %v237 = vpack.c.bf16 %v234, %v233
    %v239 = vsel %vm46, %v235, 0
    %241 = vmatpush.bf16.msra.mxu0 0
    %242 = vmatpush.bf16.msra.mxu0 0
    %243 = vmatpush.bf16.msra.mxu0 0
    %244 = vmatpush.bf16.msra.mxu0 0
    %245 = vmatpush.bf16.msra.mxu0 0
    %246 = vmatpush.bf16.msra.mxu0 0
    %247 = vmatpush.bf16.msra.mxu0 %v237
    %248 = vmatpush.bf16.msra.mxu0 %v236
    %249 = vmatmul.bf16.gmra.mxu0 %v239
    %v250 = vpop.f32.mrf.mxu0
    %v251 = vadd.f32 0.0, %v250
    %v252 = vpop.f32.mrf.mxu0
    %253 = vdwg.mxu0
    %vm254 = vcmask 58368
    %255 = vst.msk [vmem:[#allocation6] sm:$0x3] %vm254, %v251
    // Predicated region
    $region34: #{_lambda_.9} parent=1 // pred_check
      _
    $region35: #{_lambda_.9} parent=1 // pred_check_branch
      %257 = sbr.rel (0) target = $region37
    $region36: #{_lambda_.9} parent=1 // pred_region
      %259 = vsyncadd [#allocation3], 0
      %s261 = sshll.u32 [#allocation2], 4
      %s262 = int_to_ptr.vmem [resolvable:$true] %s261
      %s263 = sshll.u32 %s8, 4
      %s264 = int_to_ptr.hbm [resolvable:$true] %s263
      %266 = dma.vmem_to_hbm [thread:$0]  %s262, 32, %s264, [#allocation3]
    $region37: #{_lambda_.9} parent=1 // pred_fallthru
      _
    // Predicated region
    $region38: #{_lambda_.9} parent=1 // pred_check
      _
    $region39: #{_lambda_.9} parent=1 // pred_check_branch
      %268 = sbr.rel (0) target = $region41
    $region40: #{_lambda_.9} parent=1 // pred_region
      %270 = vsyncadd [#allocation5], 0
      %s272 = sshll.u32 [#allocation4], 4
      %s273 = int_to_ptr.vmem [resolvable:$true] %s272
      %s274 = sshll.u32 %s9, 4
      %s275 = int_to_ptr.hbm [resolvable:$true] %s274
      %277 = dma.vmem_to_hbm [thread:$0]  %s273, 32, %s275, [#allocation5]
    $region41: #{_lambda_.9} parent=1 // pred_fallthru
      _
    // Predicated region
    $region42: #{_lambda_.9} parent=1 // pred_check
      _
    $region43: #{_lambda_.9} parent=1 // pred_check_branch
      %279 = sbr.rel (0) target = $region45
    $region44: #{_lambda_.9} parent=1 // pred_region
      %281 = vsyncadd [#allocation5], 0
      %s283 = sshll.u32 [#allocation6], 4
      %s284 = int_to_ptr.vmem [resolvable:$true] %s283
      %s285 = sshll.u32 %s10, 4
      %s286 = int_to_ptr.hbm [resolvable:$true] %s285
      %288 = dma.vmem_to_hbm [thread:$0]  %s284, 32, %s286, [#allocation5]
    $region45: #{_lambda_.9} parent=1 // pred_fallthru
      _
    // Predicated region
    $region46: #{_lambda_.9} parent=1 // pred_check
      _
    $region47: #{_lambda_.9} parent=1 // pred_check_branch
      %290 = sbr.rel (0) target = $region49
    $region48: #{_lambda_.9} parent=1 // pred_region
      %292 = dma.done [#allocation3], 32
    $region49: #{_lambda_.9} parent=1 // pred_fallthru
      _
    // Predicated region
    $region50: #{_lambda_.9} parent=1 // pred_check
      _
    $region51: #{_lambda_.9} parent=1 // pred_check_branch
      %294 = sbr.rel (0) target = $region53
    $region52: #{_lambda_.9} parent=1 // pred_region
      %296 = dma.done [#allocation5], 32
    $region53: #{_lambda_.9} parent=1 // pred_fallthru
      _
    // Predicated region
    $region54: #{_lambda_.9} parent=1 // pred_check
      _
    $region55: #{_lambda_.9} parent=1 // pred_check_branch
      %298 = sbr.rel (0) target = $region57
    $region56: #{_lambda_.9} parent=1 // pred_region
      %300 = dma.done [#allocation5], 32
    $region57: #{_lambda_.9} parent=1 // pred_fallthru
      _
    %301 = vsyncpa [#allocation3], 1
    %302 = vsyncpa [#allocation5], 1

// kernel: _lambda_.8
$region0: #{_lambda_.8}
  #allocation0 [shape = 'u32[]', space=smem, size = 0x4, offset = 0x4, fixed_abs, tag = 'smem constant byte address 0x4 - core index']
  #allocation1 [shape = 'u32[72,128]{1,0:T(1,128)}', space=vmem, size = 0x9000, scoped, tag = 'internal scratch']
  %s0 = inlined_call_operand.vmem [shape: f32[2,4,32], index: 0, kind: input, shape index: {}]
  %s1 = inlined_call_operand.vmem [shape: f32[1,32], index: 1, kind: input, shape index: {}]
  %s2 = inlined_call_operand.vmem [shape: f32[1,32], index: 2, kind: input, shape index: {}]
  %s3 = inlined_call_operand.vmem [shape: f32[32,96], index: 3, kind: input, shape index: {}]
  %s4 = inlined_call_operand.vmem [shape: f32[1,96], index: 4, kind: input, shape index: {}]
  %s5 = inlined_call_operand.vmem [shape: f32[4,4,4], index: 5, kind: input, shape index: {}]
  %s6 = inlined_call_operand.vmem [shape: f32[32,32], index: 6, kind: input, shape index: {}]
  %s7 = inlined_call_operand.vmem [shape: f32[1,32], index: 7, kind: input, shape index: {}]
  %s8 = inlined_call_operand.vmem [shape: f32[1,32], index: 8, kind: input, shape index: {}]
  %s9 = inlined_call_operand.vmem [shape: f32[1,32], index: 9, kind: input, shape index: {}]
  %s10 = inlined_call_operand.vmem [shape: f32[32,128], index: 10, kind: input, shape index: {}]
  %s11 = inlined_call_operand.vmem [shape: f32[1,128], index: 11, kind: input, shape index: {}]
  %s12 = inlined_call_operand.vmem [shape: f32[128,32], index: 12, kind: input, shape index: {}]
  %s13 = inlined_call_operand.vmem [shape: f32[1,32], index: 13, kind: input, shape index: {}]
  %s14 = inlined_call_operand.vmem [shape: f32[2,4,32], index: 14, kind: output, shape index: {}]
  %s15 = sld [smem:[#allocation0]]
  $region89: #{_lambda_.8} parent=0
    _
  %s17 = ssub.s32 1, %s15
  %s18 = scalar_select 0, %s17, %s15
  loop: start=0, step=1, limit=4
  $region2: #{_lambda_.8} parent=0 // loop_pre_header
    _
  $region3: #{_lambda_.8} parent=0 // loop_header
    %s20 = sphi 0, %s24
    %p21 = scmp.ge.s32.totalorder %s20, 4
    %s30 = sphi 0, %s32
    %s33 = sphi 0, %s30
    %s34 = sphi 0, %s33
    %s50 = sphi 0, %s34
    %s54 = sphi 0, %s54
    %s56 = sphi 0, %s54
    %s57 = sphi 0, %s56
    %s71 = sphi 0, %s57
    %s75 = sphi 0, %s75
    %s77 = sphi 0, %s75
    %s78 = sphi 0, %s77
    %s92 = sphi 0, %s78
    %s96 = sphi 0, %s96
    %s98 = sphi 0, %s96
    %s99 = sphi 0, %s98
    %s113 = sphi 0, %s99
    %s117 = sphi 0, %s117
    %s119 = sphi 0, %s117
    %s120 = sphi 0, %s119
    %s134 = sphi 0, %s120
    %s138 = sphi 0, %s138
    %s140 = sphi 0, %s138
    %s141 = sphi 0, %s140
    %s155 = sphi 0, %s141
    %s159 = sphi 0, %s159
    %s161 = sphi 0, %s159
    %s162 = sphi 0, %s161
    %s176 = sphi 0, %s162
    %s180 = sphi 0, %s180
    %s182 = sphi 0, %s180
    %s183 = sphi 0, %s182
    %s197 = sphi 0, %s183
    %s201 = sphi 0, %s201
    %s203 = sphi 0, %s201
    %s204 = sphi 0, %s203
    %s218 = sphi 0, %s204
    %s222 = sphi 0, %s222
    %s224 = sphi 0, %s222
    %s225 = sphi 0, %s224
    %s239 = sphi 0, %s225
    %s243 = sphi 0, %s243
    %s245 = sphi 0, %s243
    %s246 = sphi 0, %s245
    %s260 = sphi 0, %s246
    %s264 = sphi 0, %s264
    %s266 = sphi 0, %s264
    %s267 = sphi 0, %s266
    %s281 = sphi 0, %s267
    %s285 = sphi 0, %s285
    %s287 = sphi 0, %s285
    %s288 = sphi 0, %s287
    %s302 = sphi 0, %s288
    %s306 = sphi 0, %s306
    %s308 = sphi 0, %s306
    %s309 = sphi 0, %s308
    %s323 = sphi 0, %s309
    %s329 = sphi 0, %s331
    %s332 = sphi 0, %s329
    %s333 = sphi 0, %s332
    %s349 = sphi 0, %s333
  $region4: #{_lambda_.8} parent=0 // loop_header_branch
    %23 = sbr.rel (%p21) target = $region8
  $region5: #{_lambda_.8} parent=0 // loop_body
    %s25 = ssub.s32 %s20, 1
    %s26 = ssub.s32 %s20, 2
    %s27 = sadd.s32 %s20, 1
    %s28 = ssub.s32 %s20, %s27
    %p29 = scmp.eq.s32.totalorder %s28, 0
    %s31 = sadd.s32 %s30, 1
    %s32 = scalar_select %p29, %s30, %s31
    %p35 = pneg %p29
    %p36 = scmp.eq.s32.totalorder %s20, 1
    %p37 = por %p35, %p36
    %p38 = scmp.ne.s32.totalorder %s30, %s33
    %p39 = scmp.eq.s32.totalorder %s20, 0
    %p40 = por %p38, %p39
    %p41 = scmp.ne.s32.totalorder %s30, %s33
    %p42 = scmp.eq.s32.totalorder %s25, 1
    %p43 = por %p41, %p42
    %p44 = scmp.ne.s32.totalorder %s33, %s34
    %p45 = scmp.eq.s32.totalorder %s25, 0
    %p46 = por %p44, %p45
    %p47 = scmp.ne.s32.totalorder %s33, %s34
    %p48 = scmp.eq.s32.totalorder %s26, 1
    %p49 = por %p47, %p48
    %p51 = scmp.ne.s32.totalorder %s34, %s50
    %p52 = scmp.eq.s32.totalorder %s26, 0
    %p53 = por %p51, %p52
    %s55 = sadd.s32 %s54, 1
    %p58 = scmp.eq.s32.totalorder %s20, 1
    %p59 = scmp.ne.s32.totalorder %s54, %s56
    %p60 = scmp.eq.s32.totalorder %s20, 0
    %p61 = por %p59, %p60
    %p62 = scmp.ne.s32.totalorder %s54, %s56
    %p63 = scmp.eq.s32.totalorder %s25, 1
    %p64 = por %p62, %p63
    %p65 = scmp.ne.s32.totalorder %s56, %s57
    %p66 = scmp.eq.s32.totalorder %s25, 0
    %p67 = por %p65, %p66
    %p68 = scmp.ne.s32.totalorder %s56, %s57
    %p69 = scmp.eq.s32.totalorder %s26, 1
    %p70 = por %p68, %p69
    %p72 = scmp.ne.s32.totalorder %s57, %s71
    %p73 = scmp.eq.s32.totalorder %s26, 0
    %p74 = por %p72, %p73
    %s76 = sadd.s32 %s75, 1
    %p79 = scmp.eq.s32.totalorder %s20, 1
    %p80 = scmp.ne.s32.totalorder %s75, %s77
    %p81 = scmp.eq.s32.totalorder %s20, 0
    %p82 = por %p80, %p81
    %p83 = scmp.ne.s32.totalorder %s75, %s77
    %p84 = scmp.eq.s32.totalorder %s25, 1
    %p85 = por %p83, %p84
    %p86 = scmp.ne.s32.totalorder %s77, %s78
    %p87 = scmp.eq.s32.totalorder %s25, 0
    %p88 = por %p86, %p87
    %p89 = scmp.ne.s32.totalorder %s77, %s78
    %p90 = scmp.eq.s32.totalorder %s26, 1
    %p91 = por %p89, %p90
    %p93 = scmp.ne.s32.totalorder %s78, %s92
    %p94 = scmp.eq.s32.totalorder %s26, 0
    %p95 = por %p93, %p94
    %s97 = sadd.s32 %s96, 1
    %p100 = scmp.eq.s32.totalorder %s20, 1
    %p101 = scmp.ne.s32.totalorder %s96, %s98
    %p102 = scmp.eq.s32.totalorder %s20, 0
    %p103 = por %p101, %p102
    %p104 = scmp.ne.s32.totalorder %s96, %s98
    %p105 = scmp.eq.s32.totalorder %s25, 1
    %p106 = por %p104, %p105
    %p107 = scmp.ne.s32.totalorder %s98, %s99
    %p108 = scmp.eq.s32.totalorder %s25, 0
    %p109 = por %p107, %p108
    %p110 = scmp.ne.s32.totalorder %s98, %s99
    %p111 = scmp.eq.s32.totalorder %s26, 1
    %p112 = por %p110, %p111
    %p114 = scmp.ne.s32.totalorder %s99, %s113
    %p115 = scmp.eq.s32.totalorder %s26, 0
    %p116 = por %p114, %p115
    %s118 = sadd.s32 %s117, 1
    %p121 = scmp.eq.s32.totalorder %s20, 1
    %p122 = scmp.ne.s32.totalorder %s117, %s119
    %p123 = scmp.eq.s32.totalorder %s20, 0
    %p124 = por %p122, %p123
    %p125 = scmp.ne.s32.totalorder %s117, %s119
    %p126 = scmp.eq.s32.totalorder %s25, 1
    %p127 = por %p125, %p126
    %p128 = scmp.ne.s32.totalorder %s119, %s120
    %p129 = scmp.eq.s32.totalorder %s25, 0
    %p130 = por %p128, %p129
    %p131 = scmp.ne.s32.totalorder %s119, %s120
    %p132 = scmp.eq.s32.totalorder %s26, 1
    %p133 = por %p131, %p132
    %p135 = scmp.ne.s32.totalorder %s120, %s134
    %p136 = scmp.eq.s32.totalorder %s26, 0
    %p137 = por %p135, %p136
    %s139 = sadd.s32 %s138, 1
    %p142 = scmp.eq.s32.totalorder %s20, 1
    %p143 = scmp.ne.s32.totalorder %s138, %s140
    %p144 = scmp.eq.s32.totalorder %s20, 0
    %p145 = por %p143, %p144
    %p146 = scmp.ne.s32.totalorder %s138, %s140
    %p147 = scmp.eq.s32.totalorder %s25, 1
    %p148 = por %p146, %p147
    %p149 = scmp.ne.s32.totalorder %s140, %s141
    %p150 = scmp.eq.s32.totalorder %s25, 0
    %p151 = por %p149, %p150
    %p152 = scmp.ne.s32.totalorder %s140, %s141
    %p153 = scmp.eq.s32.totalorder %s26, 1
    %p154 = por %p152, %p153
    %p156 = scmp.ne.s32.totalorder %s141, %s155
    %p157 = scmp.eq.s32.totalorder %s26, 0
    %p158 = por %p156, %p157
    %s160 = sadd.s32 %s159, 1
    %p163 = scmp.eq.s32.totalorder %s20, 1
    %p164 = scmp.ne.s32.totalorder %s159, %s161
    %p165 = scmp.eq.s32.totalorder %s20, 0
    %p166 = por %p164, %p165
    %p167 = scmp.ne.s32.totalorder %s159, %s161
    %p168 = scmp.eq.s32.totalorder %s25, 1
    %p169 = por %p167, %p168
    %p170 = scmp.ne.s32.totalorder %s161, %s162
    %p171 = scmp.eq.s32.totalorder %s25, 0
    %p172 = por %p170, %p171
    %p173 = scmp.ne.s32.totalorder %s161, %s162
    %p174 = scmp.eq.s32.totalorder %s26, 1
    %p175 = por %p173, %p174
    %p177 = scmp.ne.s32.totalorder %s162, %s176
    %p178 = scmp.eq.s32.totalorder %s26, 0
    %p179 = por %p177, %p178
    %s181 = sadd.s32 %s180, 1
    %p184 = scmp.eq.s32.totalorder %s20, 1
    %p185 = scmp.ne.s32.totalorder %s180, %s182
    %p186 = scmp.eq.s32.totalorder %s20, 0
    %p187 = por %p185, %p186
    %p188 = scmp.ne.s32.totalorder %s180, %s182
    %p189 = scmp.eq.s32.totalorder %s25, 1
    %p190 = por %p188, %p189
    %p191 = scmp.ne.s32.totalorder %s182, %s183
    %p192 = scmp.eq.s32.totalorder %s25, 0
    %p193 = por %p191, %p192
    %p194 = scmp.ne.s32.totalorder %s182, %s183
    %p195 = scmp.eq.s32.totalorder %s26, 1
    %p196 = por %p194, %p195
    %p198 = scmp.ne.s32.totalorder %s183, %s197
    %p199 = scmp.eq.s32.totalorder %s26, 0
    %p200 = por %p198, %p199
    %s202 = sadd.s32 %s201, 1
    %p205 = scmp.eq.s32.totalorder %s20, 1
    %p206 = scmp.ne.s32.totalorder %s201, %s203
    %p207 = scmp.eq.s32.totalorder %s20, 0
    %p208 = por %p206, %p207
    %p209 = scmp.ne.s32.totalorder %s201, %s203
    %p210 = scmp.eq.s32.totalorder %s25, 1
    %p211 = por %p209, %p210
    %p212 = scmp.ne.s32.totalorder %s203, %s204
    %p213 = scmp.eq.s32.totalorder %s25, 0
    %p214 = por %p212, %p213
    %p215 = scmp.ne.s32.totalorder %s203, %s204
    %p216 = scmp.eq.s32.totalorder %s26, 1
    %p217 = por %p215, %p216
    %p219 = scmp.ne.s32.totalorder %s204, %s218
    %p220 = scmp.eq.s32.totalorder %s26, 0
    %p221 = por %p219, %p220
    %s223 = sadd.s32 %s222, 1
    %p226 = scmp.eq.s32.totalorder %s20, 1
    %p227 = scmp.ne.s32.totalorder %s222, %s224
    %p228 = scmp.eq.s32.totalorder %s20, 0
    %p229 = por %p227, %p228
    %p230 = scmp.ne.s32.totalorder %s222, %s224
    %p231 = scmp.eq.s32.totalorder %s25, 1
    %p232 = por %p230, %p231
    %p233 = scmp.ne.s32.totalorder %s224, %s225
    %p234 = scmp.eq.s32.totalorder %s25, 0
    %p235 = por %p233, %p234
    %p236 = scmp.ne.s32.totalorder %s224, %s225
    %p237 = scmp.eq.s32.totalorder %s26, 1
    %p238 = por %p236, %p237
    %p240 = scmp.ne.s32.totalorder %s225, %s239
    %p241 = scmp.eq.s32.totalorder %s26, 0
    %p242 = por %p240, %p241
    %s244 = sadd.s32 %s243, 1
    %p247 = scmp.eq.s32.totalorder %s20, 1
    %p248 = scmp.ne.s32.totalorder %s243, %s245
    %p249 = scmp.eq.s32.totalorder %s20, 0
    %p250 = por %p248, %p249
    %p251 = scmp.ne.s32.totalorder %s243, %s245
    %p252 = scmp.eq.s32.totalorder %s25, 1
    %p253 = por %p251, %p252
    %p254 = scmp.ne.s32.totalorder %s245, %s246
    %p255 = scmp.eq.s32.totalorder %s25, 0
    %p256 = por %p254, %p255
    %p257 = scmp.ne.s32.totalorder %s245, %s246
    %p258 = scmp.eq.s32.totalorder %s26, 1
    %p259 = por %p257, %p258
    %p261 = scmp.ne.s32.totalorder %s246, %s260
    %p262 = scmp.eq.s32.totalorder %s26, 0
    %p263 = por %p261, %p262
    %s265 = sadd.s32 %s264, 1
    %p268 = scmp.eq.s32.totalorder %s20, 1
    %p269 = scmp.ne.s32.totalorder %s264, %s266
    %p270 = scmp.eq.s32.totalorder %s20, 0
    %p271 = por %p269, %p270
    %p272 = scmp.ne.s32.totalorder %s264, %s266
    %p273 = scmp.eq.s32.totalorder %s25, 1
    %p274 = por %p272, %p273
    %p275 = scmp.ne.s32.totalorder %s266, %s267
    %p276 = scmp.eq.s32.totalorder %s25, 0
    %p277 = por %p275, %p276
    %p278 = scmp.ne.s32.totalorder %s266, %s267
    %p279 = scmp.eq.s32.totalorder %s26, 1
    %p280 = por %p278, %p279
    %p282 = scmp.ne.s32.totalorder %s267, %s281
    %p283 = scmp.eq.s32.totalorder %s26, 0
    %p284 = por %p282, %p283
    %s286 = sadd.s32 %s285, 1
    %p289 = scmp.eq.s32.totalorder %s20, 1
    %p290 = scmp.ne.s32.totalorder %s285, %s287
    %p291 = scmp.eq.s32.totalorder %s20, 0
    %p292 = por %p290, %p291
    %p293 = scmp.ne.s32.totalorder %s285, %s287
    %p294 = scmp.eq.s32.totalorder %s25, 1
    %p295 = por %p293, %p294
    %p296 = scmp.ne.s32.totalorder %s287, %s288
    %p297 = scmp.eq.s32.totalorder %s25, 0
    %p298 = por %p296, %p297
    %p299 = scmp.ne.s32.totalorder %s287, %s288
    %p300 = scmp.eq.s32.totalorder %s26, 1
    %p301 = por %p299, %p300
    %p303 = scmp.ne.s32.totalorder %s288, %s302
    %p304 = scmp.eq.s32.totalorder %s26, 0
    %p305 = por %p303, %p304
    %s307 = sadd.s32 %s306, 1
    %p310 = scmp.eq.s32.totalorder %s20, 1
    %p311 = scmp.ne.s32.totalorder %s306, %s308
    %p312 = scmp.eq.s32.totalorder %s20, 0
    %p313 = por %p311, %p312
    %p314 = scmp.ne.s32.totalorder %s306, %s308
    %p315 = scmp.eq.s32.totalorder %s25, 1
    %p316 = por %p314, %p315
    %p317 = scmp.ne.s32.totalorder %s308, %s309
    %p318 = scmp.eq.s32.totalorder %s25, 0
    %p319 = por %p317, %p318
    %p320 = scmp.ne.s32.totalorder %s308, %s309
    %p321 = scmp.eq.s32.totalorder %s26, 1
    %p322 = por %p320, %p321
    %p324 = scmp.ne.s32.totalorder %s309, %s323
    %p325 = scmp.eq.s32.totalorder %s26, 0
    %p326 = por %p324, %p325
    %s327 = ssub.s32 %s20, %s27
    %p328 = scmp.eq.s32.totalorder %s327, 0
    %s330 = sadd.s32 %s329, 1
    %s331 = scalar_select %p328, %s329, %s330
    %p334 = pneg %p328
    %p335 = scmp.eq.s32.totalorder %s20, 1
    %p336 = por %p334, %p335
    %p337 = scmp.ne.s32.totalorder %s329, %s332
    %p338 = scmp.eq.s32.totalorder %s20, 0
    %p339 = por %p337, %p338
    %p340 = scmp.ne.s32.totalorder %s329, %s332
    %p341 = scmp.eq.s32.totalorder %s25, 1
    %p342 = por %p340, %p341
    %p343 = scmp.ne.s32.totalorder %s332, %s333
    %p344 = scmp.eq.s32.totalorder %s25, 0
    %p345 = por %p343, %p344
    %p346 = scmp.ne.s32.totalorder %s332, %s333
    %p347 = scmp.eq.s32.totalorder %s26, 1
    %p348 = por %p346, %p347
    %p350 = scmp.ne.s32.totalorder %s333, %s349
    %p351 = scmp.eq.s32.totalorder %s26, 0
    %p352 = por %p350, %p351
    %p353 = scmp.le.s32.totalorder 1, %s20
    %p354 = scmp.lt.s32.totalorder %s20, 3
    %p355 = pnand %p353, %p354
    %p356 = pneg %p355
    // Predicated region
    $region9: #{_lambda_.8} parent=5 // pred_check
      _
    $region10: #{_lambda_.8} parent=5 // pred_check_branch
      %358 = sbr.rel (%p355) target = $region12
    $region11: #{_lambda_.8} parent=5 // pred_region
      %s359 = ssub.s32 %s20, 1
      // Predicated region
      $region13: #{_lambda_.8} parent=11 // pred_check
        %p360 = pneg %p67
      $region14: #{_lambda_.8} parent=11 // pred_check_branch
        %362 = sbr.rel (%p360) target = $region16
      $region15: #{_lambda_.8} parent=11 // pred_region
        _
      $region16: #{_lambda_.8} parent=11 // pred_fallthru
        _
      // Predicated region
      $region17: #{_lambda_.8} parent=11 // pred_check
        %p363 = pneg %p88
      $region18: #{_lambda_.8} parent=11 // pred_check_branch
        %365 = sbr.rel (%p363) target = $region20
      $region19: #{_lambda_.8} parent=11 // pred_region
        _
      $region20: #{_lambda_.8} parent=11 // pred_fallthru
        _
      // Predicated region
      $region21: #{_lambda_.8} parent=11 // pred_check
        %p366 = pneg %p109
      $region22: #{_lambda_.8} parent=11 // pred_check_branch
        %368 = sbr.rel (%p366) target = $region24
      $region23: #{_lambda_.8} parent=11 // pred_region
        _
      $region24: #{_lambda_.8} parent=11 // pred_fallthru
        _
      // Predicated region
      $region25: #{_lambda_.8} parent=11 // pred_check
        %p369 = pneg %p130
      $region26: #{_lambda_.8} parent=11 // pred_check_branch
        %371 = sbr.rel (%p369) target = $region28
      $region27: #{_lambda_.8} parent=11 // pred_region
        _
      $region28: #{_lambda_.8} parent=11 // pred_fallthru
        _
      // Predicated region
      $region29: #{_lambda_.8} parent=11 // pred_check
        %p372 = pneg %p151
      $region30: #{_lambda_.8} parent=11 // pred_check_branch
        %374 = sbr.rel (%p372) target = $region32
      $region31: #{_lambda_.8} parent=11 // pred_region
        _
      $region32: #{_lambda_.8} parent=11 // pred_fallthru
        _
      // Predicated region
      $region33: #{_lambda_.8} parent=11 // pred_check
        %p375 = pneg %p172
      $region34: #{_lambda_.8} parent=11 // pred_check_branch
        %377 = sbr.rel (%p375) target = $region36
      $region35: #{_lambda_.8} parent=11 // pred_region
        _
      $region36: #{_lambda_.8} parent=11 // pred_fallthru
        _
      // Predicated region
      $region37: #{_lambda_.8} parent=11 // pred_check
        %p378 = pneg %p193
      $region38: #{_lambda_.8} parent=11 // pred_check_branch
        %380 = sbr.rel (%p378) target = $region40
      $region39: #{_lambda_.8} parent=11 // pred_region
        _
      $region40: #{_lambda_.8} parent=11 // pred_fallthru
        _
      // Predicated region
      $region41: #{_lambda_.8} parent=11 // pred_check
        %p381 = pneg %p214
      $region42: #{_lambda_.8} parent=11 // pred_check_branch
        %383 = sbr.rel (%p381) target = $region44
      $region43: #{_lambda_.8} parent=11 // pred_region
        _
      $region44: #{_lambda_.8} parent=11 // pred_fallthru
        _
      // Predicated region
      $region45: #{_lambda_.8} parent=11 // pred_check
        %p384 = pneg %p235
      $region46: #{_lambda_.8} parent=11 // pred_check_branch
        %386 = sbr.rel (%p384) target = $region48
      $region47: #{_lambda_.8} parent=11 // pred_region
        _
      $region48: #{_lambda_.8} parent=11 // pred_fallthru
        _
      // Predicated region
      $region49: #{_lambda_.8} parent=11 // pred_check
        %p387 = pneg %p256
      $region50: #{_lambda_.8} parent=11 // pred_check_branch
        %389 = sbr.rel (%p387) target = $region52
      $region51: #{_lambda_.8} parent=11 // pred_region
        _
      $region52: #{_lambda_.8} parent=11 // pred_fallthru
        _
      // Predicated region
      $region53: #{_lambda_.8} parent=11 // pred_check
        %p390 = pneg %p277
      $region54: #{_lambda_.8} parent=11 // pred_check_branch
        %392 = sbr.rel (%p390) target = $region56
      $region55: #{_lambda_.8} parent=11 // pred_region
        _
      $region56: #{_lambda_.8} parent=11 // pred_fallthru
        _
      // Predicated region
      $region57: #{_lambda_.8} parent=11 // pred_check
        %p393 = pneg %p298
      $region58: #{_lambda_.8} parent=11 // pred_check_branch
        %395 = sbr.rel (%p393) target = $region60
      $region59: #{_lambda_.8} parent=11 // pred_region
        _
      $region60: #{_lambda_.8} parent=11 // pred_fallthru
        _
      // Predicated region
      $region61: #{_lambda_.8} parent=11 // pred_check
        %p396 = pneg %p319
      $region62: #{_lambda_.8} parent=11 // pred_check_branch
        %398 = sbr.rel (%p396) target = $region64
      $region63: #{_lambda_.8} parent=11 // pred_region
        _
      $region64: #{_lambda_.8} parent=11 // pred_fallthru
        _
    $region12: #{_lambda_.8} parent=5 // pred_fallthru
      _
    %p399 = scmp.lt.s32.totalorder %s20, 2
    // Predicated region
    $region65: #{_lambda_.8} parent=5 // pred_check
      %p400 = pneg %p399
    $region66: #{_lambda_.8} parent=5 // pred_check_branch
      %402 = sbr.rel (%p400) target = $region68
    $region67: #{_lambda_.8} parent=5 // pred_region
      // Predicated region
      $region69: #{_lambda_.8} parent=67 // pred_check
        %p403 = pneg %p40
      $region70: #{_lambda_.8} parent=67 // pred_check_branch
        %405 = sbr.rel (%p403) target = $region72
      $region71: #{_lambda_.8} parent=67 // pred_region
        %p406 = scmp.lt.s32.totalorder %s20, 1
        %s407 = scalar_select %p406, %s20, 1
        %s408 = smul.addr %s407, 4
        %s409 = scalar_lea.vmem %s0, %s408
      $region72: #{_lambda_.8} parent=67 // pred_fallthru
        _
    $region68: #{_lambda_.8} parent=5 // pred_fallthru
      _
    %p410 = scmp.le.s32.totalorder 1, %s20
    %p411 = scmp.lt.s32.totalorder %s20, 3
    %p412 = pnand %p410, %p411
    %p413 = pneg %p412
    // Predicated region
    $region73: #{_lambda_.8} parent=5 // pred_check
      _
    $region74: #{_lambda_.8} parent=5 // pred_check_branch
      %415 = sbr.rel (%p412) target = $region76
    $region75: #{_lambda_.8} parent=5 // pred_region
      %s416 = ssub.s32 %s20, 1
      %p417 = scmp.lt.s32.totalorder %s25, 1
      %s418 = scalar_select %p417, %s25, 1
      %s419 = smul.addr %s418, 4
      %s420 = scalar_lea.vmem %s0, %s419
      %p421 = pneg %p46
      %p422 = pneg %p43
      %p423 = pneg %p67
      %p424 = pneg %p64
      %p425 = pneg %p88
      %p426 = pneg %p85
      %p427 = pneg %p109
      %p428 = pneg %p106
      %p429 = pneg %p130
      %p430 = pneg %p127
      %p431 = pneg %p151
      %p432 = pneg %p148
      %p433 = pneg %p172
      %p434 = pneg %p169
      %p435 = pneg %p193
      %p436 = pneg %p190
      %p437 = pneg %p214
      %p438 = pneg %p211
      %p439 = pneg %p235
      %p440 = pneg %p232
      %p441 = pneg %p256
      %p442 = pneg %p253
      %p443 = pneg %p277
      %p444 = pneg %p274
      %p445 = pneg %p298
      %p446 = pneg %p295
      %p447 = pneg %p319
      %p448 = pneg %p316
      %p449 = pneg %p345
      %p450 = pneg %p342
      %p451 = scmp.lt.s32.totalorder %s25, 1
      %s452 = scalar_select %p451, %s25, 1
      %s453 = smul.addr %s452, 4
      %s454 = scalar_lea.vmem %s14, %s453
      %p455 = scmp.lt.s32.totalorder %s25, 1
      %s456 = scalar_select %p455, %s25, 1
      %s457 = smul.addr %s456, 4
      %s458 = scalar_lea.vmem %s0, %s457
      %p459 = scmp.lt.s32.totalorder %s25, 1
      %s460 = scalar_select %p459, %s25, 1
      %s461 = smul.addr %s460, 4
      %s462 = scalar_lea.vmem %s14, %s461
      %v464 = vld [vmem:[%s458] sm:$0xf]
      %v465 = vld [vmem:[%s1] sm:$0x1]
      %v466 = vld [vmem:[%s2] sm:$0x1]
      %vm467 = vcmask 257024
      %v468 = vsel %vm467, %v464, 0.0
      %469 = vadd.xlane.f32.xlu0 %v468
      %v470 = vpop.xlane.xlu0 %469
      %v471 = vrcp.pop 32.0
      %v472 = vmul.f32 32.0, %v471
      %v473 = vsub.f32 1.0, %v472
      %v474 = vmul.f32 %v471, %v473
      %v475 = vadd.f32 %v471, %v474
      %vm476 = vweird.f32 %v471
      %v477 = vsel %vm476, %v471, %v475
      %v478 = vmul.f32 %v470, %v477
      %v479 = vsub.f32 %v464, %v478
      %v480 = vmul.f32 %v479, %v479
      %v481 = vsel %vm467, %v480, 0.0
      %482 = vadd.xlane.f32.xlu0 %v481
      %v483 = vpop.xlane.xlu0 %482
      %v484 = vmul.f32 %v483, %v477
      %v485 = vadd.f32 %v484, 1e-05
      %v486 = vrsqrt.pop %v485
      %v487 = vmul.f32 %v486, %v485
      %v488 = vmul.f32 %v487, %v486
      %v489 = vmul.f32 0.5, %v488
      %v490 = vsub.f32 1.5, %v489
      %v491 = vmul.f32 %v486, %v490
      %vm492 = vweird.f32 %v485
      %vm493 = vweird.f32 %v486
      %vm494 = vmor %vm492, %vm493
      %v495 = vsel %vm494, %v486, %v491
      %v496 = vmul.f32 %v479, %v495
      %v498 = vperm.slane %v465, 0
      %v500 = vmul.f32 %v496, %v498
      %v502 = vperm.slane %v466, 0
      %v504 = vadd.f32 %v500, %v502
      %v505 = vld [vmem:[%s3] sm:$0xff]
      %v506 = vld [vmem:[%s3 + $0x8] sm:$0xff]
      %v507 = vld [vmem:[%s3 + $0x10] sm:$0xff]
      %v508 = vld [vmem:[%s3 + $0x18] sm:$0xff]
      %v509 = vpack.c.bf16 %v504, %v504
      %v510 = vpack.c.bf16 %v506, %v505
      %v511 = vpack.c.bf16 %v508, %v507
      %v512 = vld [vmem:[%s4] sm:$0x1]
      %v514 = vperm.slane %v512, 0
      %vm516 = vcmask 261120
      %v518 = vsel %vm516, %v509, 0
      %520 = vmatpush.bf16.msra.mxu0 0
      %521 = vmatpush.bf16.msra.mxu0 0
      %522 = vmatpush.bf16.msra.mxu0 0
      %523 = vmatpush.bf16.msra.mxu0 0
      %524 = vmatpush.bf16.msra.mxu0 0
      %525 = vmatpush.bf16.msra.mxu0 0
      %526 = vmatpush.bf16.msra.mxu0 %v511
      %527 = vmatpush.bf16.msra.mxu0 %v510
      %528 = vmatmul.bf16.gmra.mxu0 %v518
      %v529 = vpop.f32.mrf.mxu0
      %v530 = vadd.f32 %v514, %v529
      %v531 = vpop.f32.mrf.mxu0
      %532 = vdwg.mxu0
      %v533 = vld [vmem:[%s5] sm:$0xf]
      %v534 = vld [vmem:[%s5 + $0x4] sm:$0xf]
      %v535 = vld [vmem:[%s5 + $0x8] sm:$0xf]
      %v536 = vld [vmem:[%s5 + $0xc] sm:$0xf]
      %v537 = vmul.f32 %v530, 0.35355338
      %v538 = vpack.c.bf16 %v537, %v537
      %v539 = vpack.c.bf16 %v530, %v530
      %v541 = vunpack.c.l.b16 %v539
      %v542 = vpack.c.b16 %v541, %v541
      %543 = vrot.lane.b32.xlu0 %v542, 96
      %v544 = vpop.permute.xlu0 %543
      %vm545 = vcmask 64512
      %v547 = vsel %vm545, %v538, 0
      %v550 = vsel %vm545, %v544, 0
      %552 = vmatpush.bf16.xpose.msra.mxu0 0
      %553 = vmatpush.bf16.xpose.msra.mxu0 0
      %554 = vmatpush.bf16.xpose.msra.mxu0 0
      %555 = vmatpush.bf16.xpose.msra.mxu0 0
      %556 = vmatpush.bf16.xpose.msra.mxu0 0
      %557 = vmatpush.bf16.xpose.msra.mxu0 0
      %558 = vmatpush.bf16.xpose.msra.mxu0 0
      %559 = vmatpush.bf16.xpose.msra.mxu0 %v550
      %560 = vmatmul.bf16.gmra.mxu0 %v547
      %v561 = vpop.f32.mrf.mxu0
      %v562 = vadd.f32 %v533, %v561
      %v563 = vpop.f32.mrf.mxu0
      %564 = vdwg.mxu0
      %vm565 = vcmask 27648
      %v566 = vsel %vm565, %v562, -inf
      %567 = vmax.xlane.f32.xlu0 %v566
      %v568 = vpop.xlane.xlu0 %567
      %v569 = vsub.f32 %v562, %v568
      %v570 = vmul.f32 %v569, 1.442695
      %v571 = vpow.pop %v570
      %v572 = vsel %vm565, %v571, 0.0
      %573 = vadd.xlane.f32.xlu0 %v572
      %v574 = vpop.xlane.xlu0 %573
      %v575 = vrcp.pop %v574
      %v576 = vmul.f32 %v571, %v575
      %v577 = vpack.c.bf16 %v576, %v576
      %578 = vrot.lane.b32.xlu0 %v542, 64
      %v579 = vpop.permute.xlu0 %578
      %vm580 = vcmask 31744
      %v582 = vsel %vm580, %v577, 0
      %vm584 = vcmask 1041408
      %v586 = vsel %vm584, %v579, 0
      %588 = vmatpush.bf16.msra.mxu0 0
      %589 = vmatpush.bf16.msra.mxu0 0
      %590 = vmatpush.bf16.msra.mxu0 0
      %591 = vmatpush.bf16.msra.mxu0 0
      %592 = vmatpush.bf16.msra.mxu0 0
      %593 = vmatpush.bf16.msra.mxu0 0
      %594 = vmatpush.bf16.msra.mxu0 0
      %595 = vmatpush.bf16.msra.mxu0 %v586
      %596 = vmatmul.bf16.gmra.mxu0 %v582
      %v597 = vpop.f32.mrf.mxu0
      %v598 = vadd.f32 0.0, %v597
      %v599 = vpop.f32.mrf.mxu0
      %600 = vdwg.mxu0
      %v602 = vunpack.c.l.b16 %v538
      %v603 = vpack.c.b16 %v602, %v602
      %604 = vrot.lane.b32.xlu0 %v603, 120
      %v605 = vpop.permute.xlu0 %604
      %606 = vrot.lane.b32.xlu0 %v542, 88
      %v607 = vpop.permute.xlu0 %606
      %v609 = vsel %vm545, %v605, 0
      %v612 = vsel %vm545, %v607, 0
      %614 = vmatpush.bf16.xpose.msra.mxu0 0
      %615 = vmatpush.bf16.xpose.msra.mxu0 0
      %616 = vmatpush.bf16.xpose.msra.mxu0 0
      %617 = vmatpush.bf16.xpose.msra.mxu0 0
      %618 = vmatpush.bf16.xpose.msra.mxu0 0
      %619 = vmatpush.bf16.xpose.msra.mxu0 0
      %620 = vmatpush.bf16.xpose.msra.mxu0 0
      %621 = vmatpush.bf16.xpose.msra.mxu0 %v612
      %622 = vmatmul.bf16.gmra.mxu0 %v609
      %v623 = vpop.f32.mrf.mxu0
      %v624 = vadd.f32 %v534, %v623
      %v625 = vpop.f32.mrf.mxu0
      %626 = vdwg.mxu0
      %v627 = vsel %vm565, %v624, -inf
      %628 = vmax.xlane.f32.xlu0 %v627
      %v629 = vpop.xlane.xlu0 %628
      %v630 = vsub.f32 %v624, %v629
      %v631 = vmul.f32 %v630, 1.442695
      %v632 = vpow.pop %v631
      %v633 = vsel %vm565, %v632, 0.0
      %634 = vadd.xlane.f32.xlu0 %v633
      %v635 = vpop.xlane.xlu0 %634
      %v636 = vrcp.pop %v635
      %v637 = vmul.f32 %v632, %v636
      %v638 = vpack.c.bf16 %v637, %v637
      %639 = vrot.lane.b32.xlu0 %v542, 56
      %v640 = vpop.permute.xlu0 %639
      %v642 = vsel %vm580, %v638, 0
      %v645 = vsel %vm584, %v640, 0
      %647 = vmatpush.bf16.msra.mxu0 0
      %648 = vmatpush.bf16.msra.mxu0 0
      %649 = vmatpush.bf16.msra.mxu0 0
      %650 = vmatpush.bf16.msra.mxu0 0
      %651 = vmatpush.bf16.msra.mxu0 0
      %652 = vmatpush.bf16.msra.mxu0 0
      %653 = vmatpush.bf16.msra.mxu0 0
      %654 = vmatpush.bf16.msra.mxu0 %v645
      %655 = vmatmul.bf16.gmra.mxu0 %v642
      %v656 = vpop.f32.mrf.mxu0
      %v657 = vadd.f32 0.0, %v656
      %v658 = vpop.f32.mrf.mxu0
      %659 = vdwg.mxu0
      %660 = vrot.lane.b32.xlu0 %v603, 112
      %v661 = vpop.permute.xlu0 %660
      %662 = vrot.lane.b32.xlu0 %v542, 80
      %v663 = vpop.permute.xlu0 %662
      %v665 = vsel %vm545, %v661, 0
      %v668 = vsel %vm545, %v663, 0
      %670 = vmatpush.bf16.xpose.msra.mxu0 0
      %671 = vmatpush.bf16.xpose.msra.mxu0 0
      %672 = vmatpush.bf16.xpose.msra.mxu0 0
      %673 = vmatpush.bf16.xpose.msra.mxu0 0
      %674 = vmatpush.bf16.xpose.msra.mxu0 0
      %675 = vmatpush.bf16.xpose.msra.mxu0 0
      %676 = vmatpush.bf16.xpose.msra.mxu0 0
      %677 = vmatpush.bf16.xpose.msra.mxu0 %v668
      %678 = vmatmul.bf16.gmra.mxu0 %v665
      %v679 = vpop.f32.mrf.mxu0
      %v680 = vadd.f32 %v535, %v679
      %v681 = vpop.f32.mrf.mxu0
      %682 = vdwg.mxu0
      %v683 = vsel %vm565, %v680, -inf
      %684 = vmax.xlane.f32.xlu0 %v683
      %v685 = vpop.xlane.xlu0 %684
      %v686 = vsub.f32 %v680, %v685
      %v687 = vmul.f32 %v686, 1.442695
      %v688 = vpow.pop %v687
      %v689 = vsel %vm565, %v688, 0.0
      %690 = vadd.xlane.f32.xlu0 %v689
      %v691 = vpop.xlane.xlu0 %690
      %v692 = vrcp.pop %v691
      %v693 = vmul.f32 %v688, %v692
      %v694 = vpack.c.bf16 %v693, %v693
      %695 = vrot.lane.b32.xlu0 %v542, 48
      %v696 = vpop.permute.xlu0 %695
      %v698 = vsel %vm580, %v694, 0
      %v701 = vsel %vm584, %v696, 0
      %703 = vmatpush.bf16.msra.mxu0 0
      %704 = vmatpush.bf16.msra.mxu0 0
      %705 = vmatpush.bf16.msra.mxu0 0
      %706 = vmatpush.bf16.msra.mxu0 0
      %707 = vmatpush.bf16.msra.mxu0 0
      %708 = vmatpush.bf16.msra.mxu0 0
      %709 = vmatpush.bf16.msra.mxu0 0
      %710 = vmatpush.bf16.msra.mxu0 %v701
      %711 = vmatmul.bf16.gmra.mxu0 %v698
      %v712 = vpop.f32.mrf.mxu0
      %v713 = vadd.f32 0.0, %v712
      %v714 = vpop.f32.mrf.mxu0
      %715 = vdwg.mxu0
      %716 = vrot.lane.b32.xlu0 %v603, 104
      %v717 = vpop.permute.xlu0 %716
      %718 = vrot.lane.b32.xlu0 %v542, 72
      %v719 = vpop.permute.xlu0 %718
      %v721 = vsel %vm545, %v717, 0
      %v724 = vsel %vm545, %v719, 0
      %726 = vmatpush.bf16.xpose.msra.mxu0 0
      %727 = vmatpush.bf16.xpose.msra.mxu0 0
      %728 = vmatpush.bf16.xpose.msra.mxu0 0
      %729 = vmatpush.bf16.xpose.msra.mxu0 0
      %730 = vmatpush.bf16.xpose.msra.mxu0 0
      %731 = vmatpush.bf16.xpose.msra.mxu0 0
      %732 = vmatpush.bf16.xpose.msra.mxu0 0
      %733 = vmatpush.bf16.xpose.msra.mxu0 %v724
      %734 = vmatmul.bf16.gmra.mxu0 %v721
      %v735 = vpop.f32.mrf.mxu0
      %v736 = vadd.f32 %v536, %v735
      %v737 = vpop.f32.mrf.mxu0
      %738 = vdwg.mxu0
      %v739 = vsel %vm565, %v736, -inf
      %740 = vmax.xlane.f32.xlu0 %v739
      %v741 = vpop.xlane.xlu0 %740
      %v742 = vsub.f32 %v736, %v741
      %v743 = vmul.f32 %v742, 1.442695
      %v744 = vpow.pop %v743
      %v745 = vsel %vm565, %v744, 0.0
      %746 = vadd.xlane.f32.xlu0 %v745
      %v747 = vpop.xlane.xlu0 %746
      %v748 = vrcp.pop %v747
      %v749 = vmul.f32 %v744, %v748
      %v750 = vpack.c.bf16 %v749, %v749
      %751 = vrot.lane.b32.xlu0 %v542, 40
      %v752 = vpop.permute.xlu0 %751
      %v754 = vsel %vm580, %v750, 0
      %v757 = vsel %vm584, %v752, 0
      %759 = vmatpush.bf16.msra.mxu0 0
      %760 = vmatpush.bf16.msra.mxu0 0
      %761 = vmatpush.bf16.msra.mxu0 0
      %762 = vmatpush.bf16.msra.mxu0 0
      %763 = vmatpush.bf16.msra.mxu0 0
      %764 = vmatpush.bf16.msra.mxu0 0
      %765 = vmatpush.bf16.msra.mxu0 0
      %766 = vmatpush.bf16.msra.mxu0 %v757
      %767 = vmatmul.bf16.gmra.mxu0 %v754
      %v768 = vpop.f32.mrf.mxu0
      %v769 = vadd.f32 0.0, %v768
      %v770 = vpop.f32.mrf.mxu0
      %771 = vdwg.mxu0
      %773 = vrot.lane.b32.xlu0 %v657, 8
      %v774 = vpop.permute.xlu0 %773
      %777 = vrot.lane.b32.xlu0 %v713, 16
      %v778 = vpop.permute.xlu0 %777
      %781 = vrot.lane.b32.xlu0 %v769, 24
      %v782 = vpop.permute.xlu0 %781
      %v784 = vsel %vm545, %v598, %v774
      %vm785 = vcmask 130048
      %v786 = vsel %vm785, %v784, %v778
      %vm787 = vcmask 195584
      %v788 = vsel %vm787, %v786, %v782
      %v789 = vld [vmem:[%s6] sm:$0xff]
      %v790 = vld [vmem:[%s6 + $0x8] sm:$0xff]
      %v791 = vld [vmem:[%s6 + $0x10] sm:$0xff]
      %v792 = vld [vmem:[%s6 + $0x18] sm:$0xff]
      %v793 = vpack.c.bf16 %v788, %v788
      %v794 = vpack.c.bf16 %v790, %v789
      %v795 = vpack.c.bf16 %v792, %v791
      %v796 = vld [vmem:[%s7] sm:$0x1]
      %v798 = vperm.slane %v796, 0
      %v801 = vsel %vm516, %v793, 0
      %803 = vmatpush.bf16.msra.mxu0 0
      %804 = vmatpush.bf16.msra.mxu0 0
      %805 = vmatpush.bf16.msra.mxu0 0
      %806 = vmatpush.bf16.msra.mxu0 0
      %807 = vmatpush.bf16.msra.mxu0 0
      %808 = vmatpush.bf16.msra.mxu0 0
      %809 = vmatpush.bf16.msra.mxu0 %v795
      %810 = vmatpush.bf16.msra.mxu0 %v794
      %811 = vmatmul.bf16.gmra.mxu0 %v801
      %v812 = vpop.f32.mrf.mxu0
      %v813 = vadd.f32 %v798, %v812
      %v814 = vpop.f32.mrf.mxu0
      %815 = vdwg.mxu0
      %v816 = vadd.f32 %v813, %v464
      %v817 = vld [vmem:[%s8] sm:$0x1]
      %v818 = vld [vmem:[%s9] sm:$0x1]
      %v819 = vsel %vm467, %v816, 0.0
      %820 = vadd.xlane.f32.xlu0 %v819
      %v821 = vpop.xlane.xlu0 %820
      %v822 = vmul.f32 %v821, %v477
      %v823 = vsub.f32 %v816, %v822
      %v824 = vmul.f32 %v823, %v823
      %v825 = vsel %vm467, %v824, 0.0
      %826 = vadd.xlane.f32.xlu0 %v825
      %v827 = vpop.xlane.xlu0 %826
      %v828 = vmul.f32 %v827, %v477
      %v829 = vadd.f32 %v828, 1e-05
      %v830 = vrsqrt.pop %v829
      %v831 = vmul.f32 %v830, %v829
      %v832 = vmul.f32 %v831, %v830
      %v833 = vmul.f32 0.5, %v832
      %v834 = vsub.f32 1.5, %v833
      %v835 = vmul.f32 %v830, %v834
      %vm836 = vweird.f32 %v829
      %vm837 = vweird.f32 %v830
      %vm838 = vmor %vm836, %vm837
      %v839 = vsel %vm838, %v830, %v835
      %v840 = vmul.f32 %v823, %v839
      %v842 = vperm.slane %v817, 0
      %v844 = vmul.f32 %v840, %v842
      %v846 = vperm.slane %v818, 0
      %v848 = vadd.f32 %v844, %v846
      %v849 = vld [vmem:[%s10] sm:$0xff]
      %v850 = vld [vmem:[%s10 + $0x8] sm:$0xff]
      %v851 = vld [vmem:[%s10 + $0x10] sm:$0xff]
      %v852 = vld [vmem:[%s10 + $0x18] sm:$0xff]
      %v853 = vpack.c.bf16 %v848, %v848
      %v854 = vpack.c.bf16 %v850, %v849
      %v855 = vpack.c.bf16 %v852, %v851
      %v856 = vld [vmem:[%s11] sm:$0x1]
      %v858 = vperm.slane %v856, 0
      %v861 = vsel %vm516, %v853, 0
      %863 = vmatpush.bf16.msra.mxu0 0
      %864 = vmatpush.bf16.msra.mxu0 0
      %865 = vmatpush.bf16.msra.mxu0 0
      %866 = vmatpush.bf16.msra.mxu0 0
      %867 = vmatpush.bf16.msra.mxu0 0
      %868 = vmatpush.bf16.msra.mxu0 0
      %869 = vmatpush.bf16.msra.mxu0 %v855
      %870 = vmatpush.bf16.msra.mxu0 %v854
      %871 = vmatmul.bf16.gmra.mxu0 %v861
      %v872 = vpop.f32.mrf.mxu0
      %v873 = vadd.f32 %v858, %v872
      %v874 = vpop.f32.mrf.mxu0
      %875 = vdwg.mxu0
      %v876 = vmul.f32 %v873, 0.5
      %v877 = vmul.f32 %v873, 0.70710677
      %v878 = vmul.f32 %v877, %v877
      %v879 = vmin.f32 16.0, %v878
      %v880 = vmul.f32 %v879, 2.1237322e-06
      %v881 = vadd.f32 %v880, 0.00028619796
      %v882 = vmul.f32 %v879, %v881
      %v883 = vadd.f32 %v882, 0.0036580483
      %v884 = vmul.f32 %v879, %v883
      %v885 = vadd.f32 %v884, 0.05243302
      %v886 = vmul.f32 %v879, %v885
      %v887 = vadd.f32 %v886, 0.18741608
      %v888 = vmul.f32 %v879, %v887
      %v889 = vadd.f32 %v888, 1.1283791
      %v890 = vmul.f32 %v877, %v889
      %v891 = vmul.f32 %v879, 3.8918573e-05
      %v892 = vadd.f32 %v891, 0.001143296
      %v893 = vmul.f32 %v879, %v892
      %v894 = vadd.f32 %v893, 0.014752088
      %v895 = vmul.f32 %v879, %v894
      %v896 = vadd.f32 %v895, 0.112945676
      %v897 = vmul.f32 %v879, %v896
      %v898 = vadd.f32 %v897, 0.4994258
      %v899 = vmul.f32 %v879, %v898
      %v900 = vadd.f32 %v899, 1.0
      %v901 = vrcp.pop %v900
      %v902 = vmul.f32 %v900, %v901
      %v903 = vsub.f32 1.0, %v902
      %v904 = vmul.f32 %v901, %v903
      %v905 = vadd.f32 %v901, %v904
      %vm906 = vweird.f32 %v900
      %vm907 = vweird.f32 %v901
      %vm908 = vmor %vm906, %vm907
      %v909 = vsel %vm908, %v901, %v905
      %v910 = vand.u32 2147483647, %v900
      %vm911 = vcmp.eq.f32.partialorder %v910, 8.507059e+37
      %v912 = vand.u32 %v900, 2147483648
      %v913 = vor.u32 1.1754944e-38, %v912
      %v914 = vsel %vm911, %v913, %v909
      %v915 = vmul.f32 %v890, %v914
      %v916 = vmin.f32 %v915, 1.0
      %v917 = vmax.f32 %v916, -1.0
      %v918 = vadd.f32 %v917, 1.0
      %v919 = vmul.f32 %v876, %v918
      %v920 = vld [vmem:[%s12] sm:$0xff]
      %v921 = vld [vmem:[%s12 + $0x8] sm:$0xff]
      %v922 = vld [vmem:[%s12 + $0x10] sm:$0xff]
      %v923 = vld [vmem:[%s12 + $0x18] sm:$0xff]
      %v924 = vld [vmem:[%s12 + $0x20] sm:$0xff]
      %v925 = vld [vmem:[%s12 + $0x28] sm:$0xff]
      %v926 = vld [vmem:[%s12 + $0x30] sm:$0xff]
      %v927 = vld [vmem:[%s12 + $0x38] sm:$0xff]
      %v928 = vld [vmem:[%s12 + $0x40] sm:$0xff]
      %v929 = vld [vmem:[%s12 + $0x48] sm:$0xff]
      %v930 = vld [vmem:[%s12 + $0x50] sm:$0xff]
      %v931 = vld [vmem:[%s12 + $0x58] sm:$0xff]
      %v932 = vld [vmem:[%s12 + $0x60] sm:$0xff]
      %v933 = vld [vmem:[%s12 + $0x68] sm:$0xff]
      %v934 = vld [vmem:[%s12 + $0x70] sm:$0xff]
      %v935 = vld [vmem:[%s12 + $0x78] sm:$0xff]
      %v936 = vpack.c.bf16 %v919, %v919
      %v937 = vpack.c.bf16 %v921, %v920
      %v938 = vpack.c.bf16 %v923, %v922
      %v939 = vpack.c.bf16 %v925, %v924
      %v940 = vpack.c.bf16 %v927, %v926
      %v941 = vpack.c.bf16 %v929, %v928
      %v942 = vpack.c.bf16 %v931, %v930
      %v943 = vpack.c.bf16 %v933, %v932
      %v944 = vpack.c.bf16 %v935, %v934
      %v945 = vld [vmem:[%s13] sm:$0x1]
      %v947 = vperm.slane %v945, 0
      %949 = vmatpush.bf16.msra.mxu0 %v944
      %950 = vmatpush.bf16.msra.mxu0 %v943
      %951 = vmatpush.bf16.msra.mxu0 %v942
      %952 = vmatpush.bf16.msra.mxu0 %v941
      %953 = vmatpush.bf16.msra.mxu0 %v940
      %954 = vmatpush.bf16.msra.mxu0 %v939
      %955 = vmatpush.bf16.msra.mxu0 %v938
      %956 = vmatpush.bf16.msra.mxu0 %v937
      %957 = vmatmul.bf16.gmra.mxu0 %v936
      %v958 = vpop.f32.mrf.mxu0
      %v959 = vadd.f32 %v947, %v958
      %v960 = vpop.f32.mrf.mxu0
      %961 = vdwg.mxu0
      %v962 = vadd.f32 %v959, %v816
      %963 = vst.msk [vmem:[%s462] sm:$0xf] %vm467, %v962
      %p964 = scmp.lt.s32.totalorder %s25, 1
      %s965 = scalar_select %p964, %s25, 1
      %s966 = smul.addr %s965, 4
      %s967 = scalar_lea.vmem %s14, %s966
      // Predicated region
      $region77: #{_lambda_.8} parent=75 // pred_check
        %p968 = pneg %p342
      $region78: #{_lambda_.8} parent=75 // pred_check_branch
        %970 = sbr.rel (%p968) target = $region80
      $region79: #{_lambda_.8} parent=75 // pred_region
        _
      $region80: #{_lambda_.8} parent=75 // pred_fallthru
        _
    $region76: #{_lambda_.8} parent=5 // pred_fallthru
      _
    %p971 = scmp.le.s32.totalorder 2, %s20
    // Predicated region
    $region81: #{_lambda_.8} parent=5 // pred_check
      %p972 = pneg %p971
    $region82: #{_lambda_.8} parent=5 // pred_check_branch
      %974 = sbr.rel (%p972) target = $region84
    $region83: #{_lambda_.8} parent=5 // pred_region
      %s975 = ssub.s32 %s20, 2
      // Predicated region
      $region85: #{_lambda_.8} parent=83 // pred_check
        %p976 = pneg %p348
      $region86: #{_lambda_.8} parent=83 // pred_check_branch
        %978 = sbr.rel (%p976) target = $region88
      $region87: #{_lambda_.8} parent=83 // pred_region
        %p979 = scmp.lt.s32.totalorder %s26, 1
        %s980 = scalar_select %p979, %s26, 1
        %s981 = smul.addr %s980, 4
        %s982 = scalar_lea.vmem %s14, %s981
      $region88: #{_lambda_.8} parent=83 // pred_fallthru
        _
    $region84: #{_lambda_.8} parent=5 // pred_fallthru
      _
  $region6: #{_lambda_.8} parent=0 // loop_footer
    %s24 = sadd.s32 1, %s20
  $region7: #{_lambda_.8} parent=0 // loop_footer_branch
    %19 = sbr.rel target = $region3
  $region8: #{_lambda_.8} parent=0 // loop_exit
    _

</llo_original>
